<compile_context>
chip_gen: v5e
topology: v5e:2x2
jax: 0.10.0
libtpu: 0.0.40
codegen_flags: <defaults>
</compile_context>

<pallas_src>
import jax
import jax.numpy as jnp
from jax import lax
from jax.experimental import pallas as pl
from jax.experimental.pallas import tpu as pltpu


def _make_kernel(n_blk, H, W, C_in, C_mid, C_out):
    """Fused kernel for a block of n_blk images (M = n_blk*H*W pixel rows)."""

    def kernel(im1_ref, w1_ref, b1_ref, w2_ref, b2_ref, w3_ref, border_ref,
               o_ref, p_ref):
        # ---- conv1: 3x3 (zero pad) -- im2col built in the wrapper ---------------
        s1 = jnp.dot(im1_ref[...], w1_ref[...],
                     preferred_element_type=jnp.float32)            # (M, C_mid)
        s1 = jnp.maximum(s1 + b1_ref[...], 0.0).astype(jnp.bfloat16)

        # ---- conv2: 1x1 conv = plain matmul over pixels --------------------------
        s2 = jnp.dot(s1, w2_ref[...], preferred_element_type=jnp.float32)
        s2 = jnp.maximum(s2 + b2_ref[...], 0.0).astype(jnp.bfloat16)  # (M, C_mid)

        # ---- conv3 (ZeroConv2d): taps in the matmul N dimension ------------------
        # p[m, t*C_out + o] = sum_c s2[m, c] * (w3[o, c, dy, dx] * exp(3*logscale[o]))
        p = jnp.dot(s2, w3_ref[...], preferred_element_type=jnp.float32)  # (M, 9*C_out)
        p_ref[...] = p.reshape(n_blk, H, W, 9 * C_out)

        # Start from the centre tap (dy=dx=1, shift 0) + precomputed border term
        # (border already contains b3 and the constant-1 pad taps, all pre-scaled).
        o_ref[...] = p_ref[:, :, :, 4 * C_out:5 * C_out] + border_ref[...]

        # Remaining 8 taps: statically shifted adds; slice bounds exclude the
        # out-of-range positions (those are covered by the border term).
        for dy in range(3):
            for dx in range(3):
                if dy == 1 and dx == 1:
                    continue
                sy, sx = dy - 1, dx - 1
                t = dy * 3 + dx
                y0, y1 = max(0, -sy), min(H, H - sy)
                x0, x1 = max(0, -sx), min(W, W - sx)
                o_ref[:, y0:y1, x0:x1, :] += p_ref[:, y0 + sy:y1 + sy,
                                                   x0 + sx:x1 + sx,
                                                   t * C_out:(t + 1) * C_out]

    return kernel


def nn_pallas(x_nchw, w1, b1, w2, b2, w3, b3, logscale, *, block_n=None):
    """Forward pass. Weights are in PyTorch layout (OIHW); x is NCHW."""
    N, C_in, H, W = x_nchw.shape
    C_mid = w1.shape[0]
    C_out = w3.shape[0]

    # ---- block_n: target M >= 512 rows (256-wide MXU on v6e/v7x), but prefer an
    # even grid length >= 2 so both v7x TensorCores get equal work.
    if block_n is None:
        block_n = max(1, pl.cdiv(512, H * W))
    block_n = max(1, min(block_n, N))
    divisors = [d for d in range(1, block_n + 1) if N % d == 0]
    even_grid = [d for d in divisors if (N // d) % 2 == 0]
    block_n = max(even_grid) if even_grid else max(divisors)
    M = block_n * H * W

    # ---- conv1 im2col built in XLA (one lane-contiguous DMA per grid step) ------
    x = jnp.transpose(x_nchw, (0, 2, 3, 1))                  # NCHW -> NHWC
    x_pad = jnp.pad(x, ((0, 0), (1, 1), (1, 1), (0, 0)))     # zero pad (conv1)
    im1 = jnp.concatenate(
        [x_pad[:, dy:dy + H, dx:dx + W, :] for dy in range(3) for dx in range(3)],
        axis=-1).reshape(N * H * W, 9 * C_in).astype(jnp.bfloat16)

    # ---- weight packing ----------------------------------------------------------
    # conv1: tap-major, channel-minor rows (matches the im2col column order).
    w1_k = jnp.transpose(w1, (2, 3, 1, 0)).reshape(9 * C_in, C_mid).astype(jnp.bfloat16)
    b1_k = b1.reshape(1, C_mid).astype(jnp.float32)
    w2_k = jnp.transpose(w2[:, :, 0, 0], (1, 0)).astype(jnp.bfloat16)
    b2_k = b2.reshape(1, C_mid).astype(jnp.float32)

    # conv3 / ZeroConv2d: fold exp(3*logscale) into the weights & bias, put the 9
    # taps into the matmul N dim (columns ordered tap-major, out-channel-minor),
    # and fold the constant-1 pad contribution + bias into a border term.
    scale = jnp.exp(3.0 * logscale.reshape(C_out)).astype(jnp.float32)
    w3s = w3.astype(jnp.float32) * scale[:, None, None, None]          # (O, I, 3, 3)
    b3s = b3.astype(jnp.float32) * scale
    w3_k = jnp.transpose(w3s, (1, 2, 3, 0)).reshape(C_mid, 9 * C_out).astype(jnp.bfloat16)

    tap_sum = jnp.sum(w3s, axis=1)                                     # (O, 3, 3)
    ys = jnp.arange(H)[:, None]
    xs = jnp.arange(W)[None, :]
    border = jnp.zeros((H, W, C_out), jnp.float32) + b3s[None, None, :]
    for dy in range(3):
        for dx in range(3):
            oob = ((ys + dy - 1 < 0) | (ys + dy - 1 >= H) |
                   (xs + dx - 1 < 0) | (xs + dx - 1 >= W))             # (H, W)
            border = border + oob[:, :, None] * tap_sum[None, None, :, dy, dx]
    border = border.reshape(1, H, W, C_out)

    kernel = _make_kernel(block_n, H, W, C_in, C_mid, C_out)
    const2 = lambda b: (0, 0)

    out_nhwc = pl.pallas_call(
        kernel,
        out_shape=jax.ShapeDtypeStruct((N, H, W, C_out), jnp.float32),
        grid_spec=pltpu.PrefetchScalarGridSpec(
            num_scalar_prefetch=0,
            grid=(N // block_n,),
            in_specs=[
                pl.BlockSpec((M, 9 * C_in), lambda b: (b, 0)),          # conv1 im2col
                pl.BlockSpec((9 * C_in, C_mid), const2),                # w1
                pl.BlockSpec((1, C_mid), const2),                       # b1
                pl.BlockSpec((C_mid, C_mid), const2),                   # w2
                pl.BlockSpec((1, C_mid), const2),                       # b2
                pl.BlockSpec((C_mid, 9 * C_out), const2),               # w3 (taps in N)
                pl.BlockSpec((1, H, W, C_out), lambda b: (0, 0, 0, 0)),  # border+bias
            ],
            out_specs=pl.BlockSpec((block_n, H, W, C_out), lambda b: (b, 0, 0, 0)),
            scratch_shapes=[
                pltpu.VMEM((block_n, H, W, 9 * C_out), jnp.float32),    # per-tap partials
            ],
        ),
        compiler_params=pltpu.CompilerParams(
            # batch blocks are fully independent -> shard across TCs on v7x.
            dimension_semantics=("parallel",)),
    )(im1, w1_k, b1_k, w2_k, b2_k, w3_k, border)

    return jnp.transpose(out_nhwc, (0, 3, 1, 2))  # NHWC -> NCHW


def ref_forward(x, w1, b1, w2, b2, w3, b3, logscale):
    """Pure-JAX reference with XLA convs (NCHW), matching the PyTorch forward."""
    dn = ('NCHW', 'OIHW', 'NCHW')
    s = lax.conv_general_dilated(x, w1, (1, 1), ((1, 1), (1, 1)),
                                 dimension_numbers=dn)
    s = jnp.maximum(s + b1[None, :, None, None], 0.0)
    s = lax.conv_general_dilated(s, w2, (1, 1), 'VALID', dimension_numbers=dn)
    s = jnp.maximum(s + b2[None, :, None, None], 0.0)
    sp = jnp.pad(s, ((0, 0), (0, 0), (1, 1), (1, 1)), constant_values=1.0)
    o = lax.conv_general_dilated(sp, w3, (1, 1), 'VALID', dimension_numbers=dn)
    return (o + b3[None, :, None, None]) * jnp.exp(3.0 * logscale)


if __name__ == "__main__":
    key = jax.random.PRNGKey(0)

    in_channels = 8        # NN(in_channels=8): conv1 sees in_channels // 2 = 4
    out_channels = 32      # small stand-in for the default 512
    N, H, W = 2, 16, 16
    C_half = in_channels // 2

    k1, k2, k3, kb, kl, kx = jax.random.split(key, 6)

    # conv1/conv2 init mirrors the module's __init__.
    w1 = 0.05 * jax.random.normal(k1, (out_channels, C_half, 3, 3), jnp.float32)
    b1 = jnp.zeros((out_channels,), jnp.float32)
    w2 = 0.05 * jax.random.normal(k2, (out_channels, out_channels, 1, 1), jnp.float32)
    b2 = jnp.zeros((out_channels,), jnp.float32)
    # ZeroConv2d zero-inits w3/b3/logscale (so the module's first output is 0);
    # use random values here so the test actually exercises the conv3 math.
    w3 = 0.05 * jax.random.normal(k3, (in_channels, out_channels, 3, 3), jnp.float32)
    b3 = 0.3 * jax.random.normal(kb, (in_channels,), jnp.float32)
    logscale = 0.1 * jax.random.normal(kl, (1, in_channels, 1, 1), jnp.float32)

    x = jax.random.normal(kx, (N, C_half, H, W), jnp.float32)

    out = jax.block_until_ready(nn_pallas(x, w1, b1, w2, b2, w3, b3, logscale))
    ref = ref_forward(x, w1, b1, w2, b2, w3, b3, logscale)

    assert out.shape == (N, in_channels, H, W), out.shape
    # Matmul operands are bf16 (f32 accumulation) -> bf16-level tolerance.
    max_err = float(jnp.max(jnp.abs(out - ref)))
    assert jnp.allclose(out, ref, atol=3e-2, rtol=3e-2), max_err
    print("KERNEL_OK")
</pallas_src>

<mosaic_0001>
module attributes {stable_mosaic.version = 11 : i64} {
  func.func @kernel(%arg0: i32, %arg1: memref<256x36xbf16, #tpu.memory_space<vmem>>, %arg2: memref<36x32xbf16, #tpu.memory_space<vmem>>, %arg3: memref<1x32xf32, #tpu.memory_space<vmem>>, %arg4: memref<32x32xbf16, #tpu.memory_space<vmem>>, %arg5: memref<1x32xf32, #tpu.memory_space<vmem>>, %arg6: memref<32x72xbf16, #tpu.memory_space<vmem>>, %arg7: memref<1x16x16x8xf32, #tpu.memory_space<vmem>>, %arg8: memref<1x16x16x8xf32, #tpu.memory_space<vmem>>, %arg9: memref<1x16x16x72xf32, #tpu.memory_space<vmem>>) attributes {dimension_semantics = [#tpu.dimension_semantics<parallel>], iteration_bounds = array<i64: 2>, scalar_prefetch = 0 : i64, scratch_operands = 1 : i64, tpu.core_type = #tpu.core_type<tc>, window_params = [{transform_indices = @transform_0, window_bounds = array<i64: 256, 36>}, {pipeline_mode = #tpu.pipeline_mode<synchronous>, transform_indices = @transform_1, window_bounds = array<i64: 36, 32>}, {pipeline_mode = #tpu.pipeline_mode<synchronous>, transform_indices = @transform_2, window_bounds = array<i64: 1, 32>}, {pipeline_mode = #tpu.pipeline_mode<synchronous>, transform_indices = @transform_3, window_bounds = array<i64: 32, 32>}, {pipeline_mode = #tpu.pipeline_mode<synchronous>, transform_indices = @transform_4, window_bounds = array<i64: 1, 32>}, {pipeline_mode = #tpu.pipeline_mode<synchronous>, transform_indices = @transform_5, window_bounds = array<i64: 32, 72>}, {pipeline_mode = #tpu.pipeline_mode<synchronous>, transform_indices = @transform_6, window_bounds = array<i64: 1, 16, 16, 8>}, {transform_indices = @transform_7, window_bounds = array<i64: 1, 16, 16, 8>}]} {
    %c0 = arith.constant 0 : index
    %c0_0 = arith.constant 0 : index
    %0 = vector.load %arg1[%c0, %c0_0] : memref<256x36xbf16, #tpu.memory_space<vmem>>, vector<256x36xbf16>
    %c0_1 = arith.constant 0 : index
    %c0_2 = arith.constant 0 : index
    %1 = vector.load %arg2[%c0_1, %c0_2] : memref<36x32xbf16, #tpu.memory_space<vmem>>, vector<36x32xbf16>
    %cst = arith.constant dense<0.000000e+00> : vector<256x32xf32>
    %2 = tpu.matmul %0, %1, %cst {dimension_numbers = #tpu.dot_dimension_numbers<[1], [0], [0], [1], [0, 0, 1, 1], [], []>} : vector<256x36xbf16>, vector<36x32xbf16>, vector<256x32xf32> -> vector<256x32xf32>
    %c0_3 = arith.constant 0 : index
    %c0_4 = arith.constant 0 : index
    %3 = vector.load %arg3[%c0_3, %c0_4] : memref<1x32xf32, #tpu.memory_space<vmem>>, vector<1x32xf32>
    %4 = vector.broadcast %3 : vector<1x32xf32> to vector<256x32xf32>
    %5 = arith.addf %2, %4 : vector<256x32xf32>
    %cst_5 = arith.constant 0.000000e+00 : f32
    %6 = vector.broadcast %cst_5 : f32 to vector<256x32xf32>
    %7 = arith.maximumf %5, %6 : vector<256x32xf32>
    %8 = arith.truncf %7 : vector<256x32xf32> to vector<256x32xbf16>
    %c0_6 = arith.constant 0 : index
    %c0_7 = arith.constant 0 : index
    %9 = vector.load %arg4[%c0_6, %c0_7] : memref<32x32xbf16, #tpu.memory_space<vmem>>, vector<32x32xbf16>
    %cst_8 = arith.constant dense<0.000000e+00> : vector<256x32xf32>
    %10 = tpu.matmul %8, %9, %cst_8 {dimension_numbers = #tpu.dot_dimension_numbers<[1], [0], [0], [1], [0, 0, 1, 1], [], []>} : vector<256x32xbf16>, vector<32x32xbf16>, vector<256x32xf32> -> vector<256x32xf32>
    %c0_9 = arith.constant 0 : index
    %c0_10 = arith.constant 0 : index
    %11 = vector.load %arg5[%c0_9, %c0_10] : memref<1x32xf32, #tpu.memory_space<vmem>>, vector<1x32xf32>
    %12 = vector.broadcast %11 : vector<1x32xf32> to vector<256x32xf32>
    %13 = arith.addf %10, %12 : vector<256x32xf32>
    %cst_11 = arith.constant 0.000000e+00 : f32
    %14 = vector.broadcast %cst_11 : f32 to vector<256x32xf32>
    %15 = arith.maximumf %13, %14 : vector<256x32xf32>
    %16 = arith.truncf %15 : vector<256x32xf32> to vector<256x32xbf16>
    %c0_12 = arith.constant 0 : index
    %c0_13 = arith.constant 0 : index
    %17 = vector.load %arg6[%c0_12, %c0_13] : memref<32x72xbf16, #tpu.memory_space<vmem>>, vector<32x72xbf16>
    %cst_14 = arith.constant dense<0.000000e+00> : vector<256x72xf32>
    %18 = tpu.matmul %16, %17, %cst_14 {dimension_numbers = #tpu.dot_dimension_numbers<[1], [0], [0], [1], [0, 0, 1, 1], [], []>} : vector<256x32xbf16>, vector<32x72xbf16>, vector<256x72xf32> -> vector<256x72xf32>
    %19 = vector.shape_cast %18 : vector<256x72xf32> to vector<1x16x16x72xf32>
    %c0_15 = arith.constant 0 : index
    %c0_16 = arith.constant 0 : index
    %c0_17 = arith.constant 0 : index
    %c0_18 = arith.constant 0 : index
    %20 = vector.load %arg9[%c0_15, %c0_16, %c0_17, %c0_18] : memref<1x16x16x72xf32, #tpu.memory_space<vmem>>, vector<1x16x16x72xf32>
    tpu.vector_store %arg9[%c0_15, %c0_16, %c0_17, %c0_18], %19 {strides = array<i32>} : memref<1x16x16x72xf32, #tpu.memory_space<vmem>>, vector<1x16x16x72xf32>,
    %c0_19 = arith.constant 0 : index
    %c0_20 = arith.constant 0 : index
    %c0_21 = arith.constant 0 : index
    %c32 = arith.constant 32 : index
    %21 = vector.load %arg9[%c0_19, %c0_20, %c0_21, %c32] : memref<1x16x16x72xf32, #tpu.memory_space<vmem>>, vector<1x16x16x8xf32>
    %c0_22 = arith.constant 0 : index
    %c0_23 = arith.constant 0 : index
    %c0_24 = arith.constant 0 : index
    %c0_25 = arith.constant 0 : index
    %22 = vector.load %arg7[%c0_22, %c0_23, %c0_24, %c0_25] : memref<1x16x16x8xf32, #tpu.memory_space<vmem>>, vector<1x16x16x8xf32>
    %23 = arith.addf %21, %22 : vector<1x16x16x8xf32>
    %c0_26 = arith.constant 0 : index
    %c0_27 = arith.constant 0 : index
    %c0_28 = arith.constant 0 : index
    %c0_29 = arith.constant 0 : index
    %24 = vector.load %arg8[%c0_26, %c0_27, %c0_28, %c0_29] : memref<1x16x16x8xf32, #tpu.memory_space<vmem>>, vector<1x16x16x8xf32>
    tpu.vector_store %arg8[%c0_26, %c0_27, %c0_28, %c0_29], %23 {strides = array<i32>} : memref<1x16x16x8xf32, #tpu.memory_space<vmem>>, vector<1x16x16x8xf32>,
    %c0_30 = arith.constant 0 : index
    %c1 = arith.constant 1 : index
    %c1_31 = arith.constant 1 : index
    %c0_32 = arith.constant 0 : index
    %25 = vector.load %arg8[%c0_30, %c1, %c1_31, %c0_32] : memref<1x16x16x8xf32, #tpu.memory_space<vmem>>, vector<1x15x15x8xf32>
    %c0_33 = arith.constant 0 : index
    %c0_34 = arith.constant 0 : index
    %c0_35 = arith.constant 0 : index
    %c0_36 = arith.constant 0 : index
    %26 = vector.load %arg9[%c0_33, %c0_34, %c0_35, %c0_36] : memref<1x16x16x72xf32, #tpu.memory_space<vmem>>, vector<1x15x15x8xf32>
    %27 = arith.addf %25, %26 : vector<1x15x15x8xf32>
    %c0_37 = arith.constant 0 : index
    %c1_38 = arith.constant 1 : index
    %c1_39 = arith.constant 1 : index
    %c0_40 = arith.constant 0 : index
    %28 = vector.load %arg8[%c0_37, %c1_38, %c1_39, %c0_40] : memref<1x16x16x8xf32, #tpu.memory_space<vmem>>, vector<1x15x15x8xf32>
    tpu.vector_store %arg8[%c0_37, %c1_38, %c1_39, %c0_40], %27 {strides = array<i32>} : memref<1x16x16x8xf32, #tpu.memory_space<vmem>>, vector<1x15x15x8xf32>,
    %c0_41 = arith.constant 0 : index
    %c1_42 = arith.constant 1 : index
    %c0_43 = arith.constant 0 : index
    %c0_44 = arith.constant 0 : index
    %29 = vector.load %arg8[%c0_41, %c1_42, %c0_43, %c0_44] : memref<1x16x16x8xf32, #tpu.memory_space<vmem>>, vector<1x15x16x8xf32>
    %c0_45 = arith.constant 0 : index
    %c0_46 = arith.constant 0 : index
    %c0_47 = arith.constant 0 : index
    %c8 = arith.constant 8 : index
    %30 = vector.load %arg9[%c0_45, %c0_46, %c0_47, %c8] : memref<1x16x16x72xf32, #tpu.memory_space<vmem>>, vector<1x15x16x8xf32>
    %31 = arith.addf %29, %30 : vector<1x15x16x8xf32>
    %c0_48 = arith.constant 0 : index
    %c1_49 = arith.constant 1 : index
    %c0_50 = arith.constant 0 : index
    %c0_51 = arith.constant 0 : index
    %32 = vector.load %arg8[%c0_48, %c1_49, %c0_50, %c0_51] : memref<1x16x16x8xf32, #tpu.memory_space<vmem>>, vector<1x15x16x8xf32>
    tpu.vector_store %arg8[%c0_48, %c1_49, %c0_50, %c0_51], %31 {strides = array<i32>} : memref<1x16x16x8xf32, #tpu.memory_space<vmem>>, vector<1x15x16x8xf32>,
    %c0_52 = arith.constant 0 : index
    %c1_53 = arith.constant 1 : index
    %c0_54 = arith.constant 0 : index
    %c0_55 = arith.constant 0 : index
    %33 = vector.load %arg8[%c0_52, %c1_53, %c0_54, %c0_55] : memref<1x16x16x8xf32, #tpu.memory_space<vmem>>, vector<1x15x15x8xf32>
    %c0_56 = arith.constant 0 : index
    %c0_57 = arith.constant 0 : index
    %c1_58 = arith.constant 1 : index
    %c16 = arith.constant 16 : index
    %34 = vector.load %arg9[%c0_56, %c0_57, %c1_58, %c16] : memref<1x16x16x72xf32, #tpu.memory_space<vmem>>, vector<1x15x15x8xf32>
    %35 = arith.addf %33, %34 : vector<1x15x15x8xf32>
    %c0_59 = arith.constant 0 : index
    %c1_60 = arith.constant 1 : index
    %c0_61 = arith.constant 0 : index
    %c0_62 = arith.constant 0 : index
    %36 = vector.load %arg8[%c0_59, %c1_60, %c0_61, %c0_62] : memref<1x16x16x8xf32, #tpu.memory_space<vmem>>, vector<1x15x15x8xf32>
    tpu.vector_store %arg8[%c0_59, %c1_60, %c0_61, %c0_62], %35 {strides = array<i32>} : memref<1x16x16x8xf32, #tpu.memory_space<vmem>>, vector<1x15x15x8xf32>,
    %c0_63 = arith.constant 0 : index
    %c0_64 = arith.constant 0 : index
    %c1_65 = arith.constant 1 : index
    %c0_66 = arith.constant 0 : index
    %37 = vector.load %arg8[%c0_63, %c0_64, %c1_65, %c0_66] : memref<1x16x16x8xf32, #tpu.memory_space<vmem>>, vector<1x16x15x8xf32>
    %c0_67 = arith.constant 0 : index
    %c0_68 = arith.constant 0 : index
    %c0_69 = arith.constant 0 : index
    %c24 = arith.constant 24 : index
    %38 = vector.load %arg9[%c0_67, %c0_68, %c0_69, %c24] : memref<1x16x16x72xf32, #tpu.memory_space<vmem>>, vector<1x16x15x8xf32>
    %39 = arith.addf %37, %38 : vector<1x16x15x8xf32>
    %c0_70 = arith.constant 0 : index
    %c0_71 = arith.constant 0 : index
    %c1_72 = arith.constant 1 : index
    %c0_73 = arith.constant 0 : index
    %40 = vector.load %arg8[%c0_70, %c0_71, %c1_72, %c0_73] : memref<1x16x16x8xf32, #tpu.memory_space<vmem>>, vector<1x16x15x8xf32>
    tpu.vector_store %arg8[%c0_70, %c0_71, %c1_72, %c0_73], %39 {strides = array<i32>} : memref<1x16x16x8xf32, #tpu.memory_space<vmem>>, vector<1x16x15x8xf32>,
    %c0_74 = arith.constant 0 : index
    %c0_75 = arith.constant 0 : index
    %c0_76 = arith.constant 0 : index
    %c0_77 = arith.constant 0 : index
    %41 = vector.load %arg8[%c0_74, %c0_75, %c0_76, %c0_77] : memref<1x16x16x8xf32, #tpu.memory_space<vmem>>, vector<1x16x15x8xf32>
    %c0_78 = arith.constant 0 : index
    %c0_79 = arith.constant 0 : index
    %c1_80 = arith.constant 1 : index
    %c40 = arith.constant 40 : index
    %42 = vector.load %arg9[%c0_78, %c0_79, %c1_80, %c40] : memref<1x16x16x72xf32, #tpu.memory_space<vmem>>, vector<1x16x15x8xf32>
    %43 = arith.addf %41, %42 : vector<1x16x15x8xf32>
    %c0_81 = arith.constant 0 : index
    %c0_82 = arith.constant 0 : index
    %c0_83 = arith.constant 0 : index
    %c0_84 = arith.constant 0 : index
    %44 = vector.load %arg8[%c0_81, %c0_82, %c0_83, %c0_84] : memref<1x16x16x8xf32, #tpu.memory_space<vmem>>, vector<1x16x15x8xf32>
    tpu.vector_store %arg8[%c0_81, %c0_82, %c0_83, %c0_84], %43 {strides = array<i32>} : memref<1x16x16x8xf32, #tpu.memory_space<vmem>>, vector<1x16x15x8xf32>,
    %c0_85 = arith.constant 0 : index
    %c0_86 = arith.constant 0 : index
    %c1_87 = arith.constant 1 : index
    %c0_88 = arith.constant 0 : index
    %45 = vector.load %arg8[%c0_85, %c0_86, %c1_87, %c0_88] : memref<1x16x16x8xf32, #tpu.memory_space<vmem>>, vector<1x15x15x8xf32>
    %c0_89 = arith.constant 0 : index
    %c1_90 = arith.constant 1 : index
    %c0_91 = arith.constant 0 : index
    %c48 = arith.constant 48 : index
    %46 = vector.load %arg9[%c0_89, %c1_90, %c0_91, %c48] : memref<1x16x16x72xf32, #tpu.memory_space<vmem>>, vector<1x15x15x8xf32>
    %47 = arith.addf %45, %46 : vector<1x15x15x8xf32>
    %c0_92 = arith.constant 0 : index
    %c0_93 = arith.constant 0 : index
    %c1_94 = arith.constant 1 : index
    %c0_95 = arith.constant 0 : index
    %48 = vector.load %arg8[%c0_92, %c0_93, %c1_94, %c0_95] : memref<1x16x16x8xf32, #tpu.memory_space<vmem>>, vector<1x15x15x8xf32>
    tpu.vector_store %arg8[%c0_92, %c0_93, %c1_94, %c0_95], %47 {strides = array<i32>} : memref<1x16x16x8xf32, #tpu.memory_space<vmem>>, vector<1x15x15x8xf32>,
    %c0_96 = arith.constant 0 : index
    %c0_97 = arith.constant 0 : index
    %c0_98 = arith.constant 0 : index
    %c0_99 = arith.constant 0 : index
    %49 = vector.load %arg8[%c0_96, %c0_97, %c0_98, %c0_99] : memref<1x16x16x8xf32, #tpu.memory_space<vmem>>, vector<1x15x16x8xf32>
    %c0_100 = arith.constant 0 : index
    %c1_101 = arith.constant 1 : index
    %c0_102 = arith.constant 0 : index
    %c56 = arith.constant 56 : index
    %50 = vector.load %arg9[%c0_100, %c1_101, %c0_102, %c56] : memref<1x16x16x72xf32, #tpu.memory_space<vmem>>, vector<1x15x16x8xf32>
    %51 = arith.addf %49, %50 : vector<1x15x16x8xf32>
    %c0_103 = arith.constant 0 : index
    %c0_104 = arith.constant 0 : index
    %c0_105 = arith.constant 0 : index
    %c0_106 = arith.constant 0 : index
    %52 = vector.load %arg8[%c0_103, %c0_104, %c0_105, %c0_106] : memref<1x16x16x8xf32, #tpu.memory_space<vmem>>, vector<1x15x16x8xf32>
    tpu.vector_store %arg8[%c0_103, %c0_104, %c0_105, %c0_106], %51 {strides = array<i32>} : memref<1x16x16x8xf32, #tpu.memory_space<vmem>>, vector<1x15x16x8xf32>,
    %c0_107 = arith.constant 0 : index
    %c0_108 = arith.constant 0 : index
    %c0_109 = arith.constant 0 : index
    %c0_110 = arith.constant 0 : index
    %53 = vector.load %arg8[%c0_107, %c0_108, %c0_109, %c0_110] : memref<1x16x16x8xf32, #tpu.memory_space<vmem>>, vector<1x15x15x8xf32>
    %c0_111 = arith.constant 0 : index
    %c1_112 = arith.constant 1 : index
    %c1_113 = arith.constant 1 : index
    %c64 = arith.constant 64 : index
    %54 = vector.load %arg9[%c0_111, %c1_112, %c1_113, %c64] : memref<1x16x16x72xf32, #tpu.memory_space<vmem>>, vector<1x15x15x8xf32>
    %55 = arith.addf %53, %54 : vector<1x15x15x8xf32>
    %c0_114 = arith.constant 0 : index
    %c0_115 = arith.constant 0 : index
    %c0_116 = arith.constant 0 : index
    %c0_117 = arith.constant 0 : index
    %56 = vector.load %arg8[%c0_114, %c0_115, %c0_116, %c0_117] : memref<1x16x16x8xf32, #tpu.memory_space<vmem>>, vector<1x15x15x8xf32>
    tpu.vector_store %arg8[%c0_114, %c0_115, %c0_116, %c0_117], %55 {strides = array<i32>} : memref<1x16x16x8xf32, #tpu.memory_space<vmem>>, vector<1x15x15x8xf32>,
    return
  }
  func.func @transform_0(%arg0: i32) -> (i32, i32) {
    %c0_i32 = arith.constant 0 : i32
    %c0_i32_0 = arith.constant 0 : i32
    return %arg0, %c0_i32 : i32, i32
  }
  func.func @transform_1(%arg0: i32) -> (i32, i32) {
    %c0_i32 = arith.constant 0 : i32
    %c0_i32_0 = arith.constant 0 : i32
    %c0_i32_1 = arith.constant 0 : i32
    return %c0_i32, %c0_i32_0 : i32, i32
  }
  func.func @transform_2(%arg0: i32) -> (i32, i32) {
    %c0_i32 = arith.constant 0 : i32
    %c0_i32_0 = arith.constant 0 : i32
    %c0_i32_1 = arith.constant 0 : i32
    return %c0_i32, %c0_i32_0 : i32, i32
  }
  func.func @transform_3(%arg0: i32) -> (i32, i32) {
    %c0_i32 = arith.constant 0 : i32
    %c0_i32_0 = arith.constant 0 : i32
    %c0_i32_1 = arith.constant 0 : i32
    return %c0_i32, %c0_i32_0 : i32, i32
  }
  func.func @transform_4(%arg0: i32) -> (i32, i32) {
    %c0_i32 = arith.constant 0 : i32
    %c0_i32_0 = arith.constant 0 : i32
    %c0_i32_1 = arith.constant 0 : i32
    return %c0_i32, %c0_i32_0 : i32, i32
  }
  func.func @transform_5(%arg0: i32) -> (i32, i32) {
    %c0_i32 = arith.constant 0 : i32
    %c0_i32_0 = arith.constant 0 : i32
    %c0_i32_1 = arith.constant 0 : i32
    return %c0_i32, %c0_i32_0 : i32, i32
  }
  func.func @transform_6(%arg0: i32) -> (i32, i32, i32, i32) {
    %c0_i32 = arith.constant 0 : i32
    %c0_i32_0 = arith.constant 0 : i32
    %c0_i32_1 = arith.constant 0 : i32
    %c0_i32_2 = arith.constant 0 : i32
    %c0_i32_3 = arith.constant 0 : i32
    return %c0_i32, %c0_i32_0, %c0_i32_1, %c0_i32_2 : i32, i32, i32, i32
  }
  func.func @transform_7(%arg0: i32) -> (i32, i32, i32, i32) {
    %c0_i32 = arith.constant 0 : i32
    %c0_i32_0 = arith.constant 0 : i32
    %c0_i32_1 = arith.constant 0 : i32
    %c0_i32_2 = arith.constant 0 : i32
    return %arg0, %c0_i32, %c0_i32_0, %c0_i32_1 : i32, i32, i32, i32
  }
}

</mosaic_0001>

<llo_original>
// kernel: tpu_custom_call.1
$region0: #{tpu_custom_call.1}
  #allocation0 [shape = 'u32[]', space=smem, size = 0x4, offset = 0x4, fixed_abs, tag = 'smem constant byte address 0x4 - core index']
  #allocation1 [shape = 'u32[72,128]{1,0:T(1,128)}', space=vmem, size = 0x9000, scoped, tag = 'internal scratch']
  #allocation2 [shape = 'f32[1,16,16,72]{3,2,1,0:T(8,128)}', space=vmem, size = 0x20000, scoped, tag = 'scratch operand']
  %s0 = inlined_call_operand.vmem [shape: bf16[512,36], index: 0, kind: input, shape index: {}]
  %s1 = inlined_call_operand.vmem [shape: bf16[36,32], index: 1, kind: input, shape index: {}]
  %s2 = inlined_call_operand.vmem [shape: f32[1,32], index: 2, kind: input, shape index: {}]
  %s3 = inlined_call_operand.vmem [shape: bf16[32,32], index: 3, kind: input, shape index: {}]
  %s4 = inlined_call_operand.vmem [shape: f32[1,32], index: 4, kind: input, shape index: {}]
  %s5 = inlined_call_operand.vmem [shape: bf16[32,72], index: 5, kind: input, shape index: {}]
  %s6 = inlined_call_operand.vmem [shape: f32[1,16,16,8], index: 6, kind: input, shape index: {}]
  %s7 = inlined_call_operand.vmem [shape: f32[2,16,16,8], index: 7, kind: output, shape index: {}]
  %s8 = sld [smem:[#allocation0]]
  $region61: #{tpu_custom_call.1} parent=0
    _
  %s10 = ssub.s32 1, %s8
  %s11 = scalar_select 0, %s10, %s8
  loop: start=0, step=1, limit=4
  $region2: #{tpu_custom_call.1} parent=0 // loop_pre_header
    _
  $region3: #{tpu_custom_call.1} parent=0 // loop_header
    %s13 = sphi 0, %s17
    %p14 = scmp.ge.s32.totalorder %s13, 4
    %s23 = sphi 0, %s25
    %s26 = sphi 0, %s23
    %s27 = sphi 0, %s26
    %s43 = sphi 0, %s27
    %s47 = sphi 0, %s47
    %s49 = sphi 0, %s47
    %s50 = sphi 0, %s49
    %s64 = sphi 0, %s50
    %s68 = sphi 0, %s68
    %s70 = sphi 0, %s68
    %s71 = sphi 0, %s70
    %s85 = sphi 0, %s71
    %s89 = sphi 0, %s89
    %s91 = sphi 0, %s89
    %s92 = sphi 0, %s91
    %s106 = sphi 0, %s92
    %s110 = sphi 0, %s110
    %s112 = sphi 0, %s110
    %s113 = sphi 0, %s112
    %s127 = sphi 0, %s113
    %s131 = sphi 0, %s131
    %s133 = sphi 0, %s131
    %s134 = sphi 0, %s133
    %s148 = sphi 0, %s134
    %s152 = sphi 0, %s152
    %s154 = sphi 0, %s152
    %s155 = sphi 0, %s154
    %s169 = sphi 0, %s155
    %s175 = sphi 0, %s177
    %s178 = sphi 0, %s175
    %s179 = sphi 0, %s178
    %s195 = sphi 0, %s179
  $region4: #{tpu_custom_call.1} parent=0 // loop_header_branch
    %16 = sbr.rel (%p14) target = $region8
  $region5: #{tpu_custom_call.1} parent=0 // loop_body
    %s18 = ssub.s32 %s13, 1
    %s19 = ssub.s32 %s13, 2
    %s20 = sadd.s32 %s13, 1
    %s21 = ssub.s32 %s13, %s20
    %p22 = scmp.eq.s32.totalorder %s21, 0
    %s24 = sadd.s32 %s23, 1
    %s25 = scalar_select %p22, %s23, %s24
    %p28 = pneg %p22
    %p29 = scmp.eq.s32.totalorder %s13, 1
    %p30 = por %p28, %p29
    %p31 = scmp.ne.s32.totalorder %s23, %s26
    %p32 = scmp.eq.s32.totalorder %s13, 0
    %p33 = por %p31, %p32
    %p34 = scmp.ne.s32.totalorder %s23, %s26
    %p35 = scmp.eq.s32.totalorder %s18, 1
    %p36 = por %p34, %p35
    %p37 = scmp.ne.s32.totalorder %s26, %s27
    %p38 = scmp.eq.s32.totalorder %s18, 0
    %p39 = por %p37, %p38
    %p40 = scmp.ne.s32.totalorder %s26, %s27
    %p41 = scmp.eq.s32.totalorder %s19, 1
    %p42 = por %p40, %p41
    %p44 = scmp.ne.s32.totalorder %s27, %s43
    %p45 = scmp.eq.s32.totalorder %s19, 0
    %p46 = por %p44, %p45
    %s48 = sadd.s32 %s47, 1
    %p51 = scmp.eq.s32.totalorder %s13, 1
    %p52 = scmp.ne.s32.totalorder %s47, %s49
    %p53 = scmp.eq.s32.totalorder %s13, 0
    %p54 = por %p52, %p53
    %p55 = scmp.ne.s32.totalorder %s47, %s49
    %p56 = scmp.eq.s32.totalorder %s18, 1
    %p57 = por %p55, %p56
    %p58 = scmp.ne.s32.totalorder %s49, %s50
    %p59 = scmp.eq.s32.totalorder %s18, 0
    %p60 = por %p58, %p59
    %p61 = scmp.ne.s32.totalorder %s49, %s50
    %p62 = scmp.eq.s32.totalorder %s19, 1
    %p63 = por %p61, %p62
    %p65 = scmp.ne.s32.totalorder %s50, %s64
    %p66 = scmp.eq.s32.totalorder %s19, 0
    %p67 = por %p65, %p66
    %s69 = sadd.s32 %s68, 1
    %p72 = scmp.eq.s32.totalorder %s13, 1
    %p73 = scmp.ne.s32.totalorder %s68, %s70
    %p74 = scmp.eq.s32.totalorder %s13, 0
    %p75 = por %p73, %p74
    %p76 = scmp.ne.s32.totalorder %s68, %s70
    %p77 = scmp.eq.s32.totalorder %s18, 1
    %p78 = por %p76, %p77
    %p79 = scmp.ne.s32.totalorder %s70, %s71
    %p80 = scmp.eq.s32.totalorder %s18, 0
    %p81 = por %p79, %p80
    %p82 = scmp.ne.s32.totalorder %s70, %s71
    %p83 = scmp.eq.s32.totalorder %s19, 1
    %p84 = por %p82, %p83
    %p86 = scmp.ne.s32.totalorder %s71, %s85
    %p87 = scmp.eq.s32.totalorder %s19, 0
    %p88 = por %p86, %p87
    %s90 = sadd.s32 %s89, 1
    %p93 = scmp.eq.s32.totalorder %s13, 1
    %p94 = scmp.ne.s32.totalorder %s89, %s91
    %p95 = scmp.eq.s32.totalorder %s13, 0
    %p96 = por %p94, %p95
    %p97 = scmp.ne.s32.totalorder %s89, %s91
    %p98 = scmp.eq.s32.totalorder %s18, 1
    %p99 = por %p97, %p98
    %p100 = scmp.ne.s32.totalorder %s91, %s92
    %p101 = scmp.eq.s32.totalorder %s18, 0
    %p102 = por %p100, %p101
    %p103 = scmp.ne.s32.totalorder %s91, %s92
    %p104 = scmp.eq.s32.totalorder %s19, 1
    %p105 = por %p103, %p104
    %p107 = scmp.ne.s32.totalorder %s92, %s106
    %p108 = scmp.eq.s32.totalorder %s19, 0
    %p109 = por %p107, %p108
    %s111 = sadd.s32 %s110, 1
    %p114 = scmp.eq.s32.totalorder %s13, 1
    %p115 = scmp.ne.s32.totalorder %s110, %s112
    %p116 = scmp.eq.s32.totalorder %s13, 0
    %p117 = por %p115, %p116
    %p118 = scmp.ne.s32.totalorder %s110, %s112
    %p119 = scmp.eq.s32.totalorder %s18, 1
    %p120 = por %p118, %p119
    %p121 = scmp.ne.s32.totalorder %s112, %s113
    %p122 = scmp.eq.s32.totalorder %s18, 0
    %p123 = por %p121, %p122
    %p124 = scmp.ne.s32.totalorder %s112, %s113
    %p125 = scmp.eq.s32.totalorder %s19, 1
    %p126 = por %p124, %p125
    %p128 = scmp.ne.s32.totalorder %s113, %s127
    %p129 = scmp.eq.s32.totalorder %s19, 0
    %p130 = por %p128, %p129
    %s132 = sadd.s32 %s131, 1
    %p135 = scmp.eq.s32.totalorder %s13, 1
    %p136 = scmp.ne.s32.totalorder %s131, %s133
    %p137 = scmp.eq.s32.totalorder %s13, 0
    %p138 = por %p136, %p137
    %p139 = scmp.ne.s32.totalorder %s131, %s133
    %p140 = scmp.eq.s32.totalorder %s18, 1
    %p141 = por %p139, %p140
    %p142 = scmp.ne.s32.totalorder %s133, %s134
    %p143 = scmp.eq.s32.totalorder %s18, 0
    %p144 = por %p142, %p143
    %p145 = scmp.ne.s32.totalorder %s133, %s134
    %p146 = scmp.eq.s32.totalorder %s19, 1
    %p147 = por %p145, %p146
    %p149 = scmp.ne.s32.totalorder %s134, %s148
    %p150 = scmp.eq.s32.totalorder %s19, 0
    %p151 = por %p149, %p150
    %s153 = sadd.s32 %s152, 1
    %p156 = scmp.eq.s32.totalorder %s13, 1
    %p157 = scmp.ne.s32.totalorder %s152, %s154
    %p158 = scmp.eq.s32.totalorder %s13, 0
    %p159 = por %p157, %p158
    %p160 = scmp.ne.s32.totalorder %s152, %s154
    %p161 = scmp.eq.s32.totalorder %s18, 1
    %p162 = por %p160, %p161
    %p163 = scmp.ne.s32.totalorder %s154, %s155
    %p164 = scmp.eq.s32.totalorder %s18, 0
    %p165 = por %p163, %p164
    %p166 = scmp.ne.s32.totalorder %s154, %s155
    %p167 = scmp.eq.s32.totalorder %s19, 1
    %p168 = por %p166, %p167
    %p170 = scmp.ne.s32.totalorder %s155, %s169
    %p171 = scmp.eq.s32.totalorder %s19, 0
    %p172 = por %p170, %p171
    %s173 = ssub.s32 %s13, %s20
    %p174 = scmp.eq.s32.totalorder %s173, 0
    %s176 = sadd.s32 %s175, 1
    %s177 = scalar_select %p174, %s175, %s176
    %p180 = pneg %p174
    %p181 = scmp.eq.s32.totalorder %s13, 1
    %p182 = por %p180, %p181
    %p183 = scmp.ne.s32.totalorder %s175, %s178
    %p184 = scmp.eq.s32.totalorder %s13, 0
    %p185 = por %p183, %p184
    %p186 = scmp.ne.s32.totalorder %s175, %s178
    %p187 = scmp.eq.s32.totalorder %s18, 1
    %p188 = por %p186, %p187
    %p189 = scmp.ne.s32.totalorder %s178, %s179
    %p190 = scmp.eq.s32.totalorder %s18, 0
    %p191 = por %p189, %p190
    %p192 = scmp.ne.s32.totalorder %s178, %s179
    %p193 = scmp.eq.s32.totalorder %s19, 1
    %p194 = por %p192, %p193
    %p196 = scmp.ne.s32.totalorder %s179, %s195
    %p197 = scmp.eq.s32.totalorder %s19, 0
    %p198 = por %p196, %p197
    %p199 = scmp.le.s32.totalorder 1, %s13
    %p200 = scmp.lt.s32.totalorder %s13, 3
    %p201 = pnand %p199, %p200
    %p202 = pneg %p201
    // Predicated region
    $region9: #{tpu_custom_call.1} parent=5 // pred_check
      _
    $region10: #{tpu_custom_call.1} parent=5 // pred_check_branch
      %204 = sbr.rel (%p201) target = $region12
    $region11: #{tpu_custom_call.1} parent=5 // pred_region
      %s205 = ssub.s32 %s13, 1
      // Predicated region
      $region13: #{tpu_custom_call.1} parent=11 // pred_check
        %p206 = pneg %p60
      $region14: #{tpu_custom_call.1} parent=11 // pred_check_branch
        %208 = sbr.rel (%p206) target = $region16
      $region15: #{tpu_custom_call.1} parent=11 // pred_region
        _
      $region16: #{tpu_custom_call.1} parent=11 // pred_fallthru
        _
      // Predicated region
      $region17: #{tpu_custom_call.1} parent=11 // pred_check
        %p209 = pneg %p81
      $region18: #{tpu_custom_call.1} parent=11 // pred_check_branch
        %211 = sbr.rel (%p209) target = $region20
      $region19: #{tpu_custom_call.1} parent=11 // pred_region
        _
      $region20: #{tpu_custom_call.1} parent=11 // pred_fallthru
        _
      // Predicated region
      $region21: #{tpu_custom_call.1} parent=11 // pred_check
        %p212 = pneg %p102
      $region22: #{tpu_custom_call.1} parent=11 // pred_check_branch
        %214 = sbr.rel (%p212) target = $region24
      $region23: #{tpu_custom_call.1} parent=11 // pred_region
        _
      $region24: #{tpu_custom_call.1} parent=11 // pred_fallthru
        _
      // Predicated region
      $region25: #{tpu_custom_call.1} parent=11 // pred_check
        %p215 = pneg %p123
      $region26: #{tpu_custom_call.1} parent=11 // pred_check_branch
        %217 = sbr.rel (%p215) target = $region28
      $region27: #{tpu_custom_call.1} parent=11 // pred_region
        _
      $region28: #{tpu_custom_call.1} parent=11 // pred_fallthru
        _
      // Predicated region
      $region29: #{tpu_custom_call.1} parent=11 // pred_check
        %p218 = pneg %p144
      $region30: #{tpu_custom_call.1} parent=11 // pred_check_branch
        %220 = sbr.rel (%p218) target = $region32
      $region31: #{tpu_custom_call.1} parent=11 // pred_region
        _
      $region32: #{tpu_custom_call.1} parent=11 // pred_fallthru
        _
      // Predicated region
      $region33: #{tpu_custom_call.1} parent=11 // pred_check
        %p221 = pneg %p165
      $region34: #{tpu_custom_call.1} parent=11 // pred_check_branch
        %223 = sbr.rel (%p221) target = $region36
      $region35: #{tpu_custom_call.1} parent=11 // pred_region
        _
      $region36: #{tpu_custom_call.1} parent=11 // pred_fallthru
        _
    $region12: #{tpu_custom_call.1} parent=5 // pred_fallthru
      _
    %p224 = scmp.lt.s32.totalorder %s13, 2
    // Predicated region
    $region37: #{tpu_custom_call.1} parent=5 // pred_check
      %p225 = pneg %p224
    $region38: #{tpu_custom_call.1} parent=5 // pred_check_branch
      %227 = sbr.rel (%p225) target = $region40
    $region39: #{tpu_custom_call.1} parent=5 // pred_region
      // Predicated region
      $region41: #{tpu_custom_call.1} parent=39 // pred_check
        %p228 = pneg %p33
      $region42: #{tpu_custom_call.1} parent=39 // pred_check_branch
        %230 = sbr.rel (%p228) target = $region44
      $region43: #{tpu_custom_call.1} parent=39 // pred_region
        %s231 = smul.u32 32, %s13
        %p232 = scmp.lt.s32.totalorder %s231, 63
        %s233 = scalar_select %p232, %s231, 63
        %s234 = smul.addr %s233, 4
        %s235 = scalar_lea.vmem %s0, %s234
        %s236 = smul.u32 32, %s13
      $region44: #{tpu_custom_call.1} parent=39 // pred_fallthru
        _
    $region40: #{tpu_custom_call.1} parent=5 // pred_fallthru
      _
    %p237 = scmp.le.s32.totalorder 1, %s13
    %p238 = scmp.lt.s32.totalorder %s13, 3
    %p239 = pnand %p237, %p238
    %p240 = pneg %p239
    // Predicated region
    $region45: #{tpu_custom_call.1} parent=5 // pred_check
      _
    $region46: #{tpu_custom_call.1} parent=5 // pred_check_branch
      %242 = sbr.rel (%p239) target = $region48
    $region47: #{tpu_custom_call.1} parent=5 // pred_region
      %s243 = ssub.s32 %s13, 1
      %s244 = smul.u32 32, %s18
      %p245 = scmp.lt.s32.totalorder %s244, 63
      %s246 = scalar_select %p245, %s244, 63
      %s247 = smul.addr %s246, 4
      %s248 = scalar_lea.vmem %s0, %s247
      %p249 = pneg %p39
      %p250 = pneg %p36
      %p251 = pneg %p60
      %p252 = pneg %p57
      %p253 = pneg %p81
      %p254 = pneg %p78
      %p255 = pneg %p102
      %p256 = pneg %p99
      %p257 = pneg %p123
      %p258 = pneg %p120
      %p259 = pneg %p144
      %p260 = pneg %p141
      %p261 = pneg %p165
      %p262 = pneg %p162
      %p263 = pneg %p191
      %p264 = pneg %p188
      %p265 = scmp.lt.s32.totalorder %s18, 1
      %s266 = scalar_select %p265, %s18, 1
      %s267 = smul.addr %s266, 32
      %s268 = smul.addr %s267, 8
      %s269 = scalar_lea.vmem %s7, %s268
      %s270 = smul.u32 32, %s18
      %p271 = scmp.lt.s32.totalorder %s270, 63
      %s272 = scalar_select %p271, %s270, 63
      %s273 = smul.addr %s272, 4
      %s274 = scalar_lea.vmem %s0, %s273
      %s275 = smul.u32 32, %s18
      %p276 = scmp.lt.s32.totalorder %s18, 1
      %s277 = scalar_select %p276, %s18, 1
      %s278 = smul.addr %s277, 32
      %s279 = smul.addr %s278, 8
      %s280 = scalar_lea.vmem %s7, %s279
      %v282 = vld [vmem:[%s274] sm:$0xf]
      %v283 = vld [vmem:[%s274 + $0x4] sm:$0xf]
      %v284 = vld [vmem:[%s274 + $0x8] sm:$0xf]
      %v285 = vld [vmem:[%s274 + $0xc] sm:$0xf]
      %v286 = vld [vmem:[%s274 + $0x10] sm:$0xf]
      %v287 = vld [vmem:[%s274 + $0x14] sm:$0xf]
      %v288 = vld [vmem:[%s274 + $0x18] sm:$0xf]
      %v289 = vld [vmem:[%s274 + $0x1c] sm:$0xf]
      %v290 = vld [vmem:[%s274 + $0x20] sm:$0xf]
      %v291 = vld [vmem:[%s274 + $0x24] sm:$0xf]
      %v292 = vld [vmem:[%s274 + $0x28] sm:$0xf]
      %v293 = vld [vmem:[%s274 + $0x2c] sm:$0xf]
      %v294 = vld [vmem:[%s274 + $0x30] sm:$0xf]
      %v295 = vld [vmem:[%s274 + $0x34] sm:$0xf]
      %v296 = vld [vmem:[%s274 + $0x38] sm:$0xf]
      %v297 = vld [vmem:[%s274 + $0x3c] sm:$0xf]
      %v298 = vld [vmem:[%s274 + $0x40] sm:$0xf]
      %v299 = vld [vmem:[%s274 + $0x44] sm:$0xf]
      %v300 = vld [vmem:[%s274 + $0x48] sm:$0xf]
      %v301 = vld [vmem:[%s274 + $0x4c] sm:$0xf]
      %v302 = vld [vmem:[%s274 + $0x50] sm:$0xf]
      %v303 = vld [vmem:[%s274 + $0x54] sm:$0xf]
      %v304 = vld [vmem:[%s274 + $0x58] sm:$0xf]
      %v305 = vld [vmem:[%s274 + $0x5c] sm:$0xf]
      %v306 = vld [vmem:[%s274 + $0x60] sm:$0xf]
      %v307 = vld [vmem:[%s274 + $0x64] sm:$0xf]
      %v308 = vld [vmem:[%s274 + $0x68] sm:$0xf]
      %v309 = vld [vmem:[%s274 + $0x6c] sm:$0xf]
      %v310 = vld [vmem:[%s274 + $0x70] sm:$0xf]
      %v311 = vld [vmem:[%s274 + $0x74] sm:$0xf]
      %v312 = vld [vmem:[%s274 + $0x78] sm:$0xf]
      %v313 = vld [vmem:[%s274 + $0x7c] sm:$0xf]
      %v314 = vld [vmem:[%s1] sm:$0xf]
      %v315 = vld [vmem:[%s1 + $0x4] sm:$0xf]
      %v316 = vld [vmem:[%s1 + $0x8] sm:$0xf]
      %v317 = vld [vmem:[%s1 + $0xc] sm:$0xf]
      %v318 = vld [vmem:[%s1 + $0x10] sm:$0x3]
      %v319 = vld [vmem:[%s2] sm:$0x1]
      %v321 = vperm.slane %v319, 0
      %v355 = vunpack.c.l.b16 %v282
      %v356 = vunpack.c.l.b16 %v283
      %v357 = vunpack.c.l.b16 %v284
      %v358 = vunpack.c.l.b16 %v285
      %v359 = vunpack.c.l.b16 %v286
      %v360 = vunpack.c.l.b16 %v287
      %v361 = vunpack.c.l.b16 %v288
      %v362 = vunpack.c.l.b16 %v289
      %v363 = vunpack.c.l.b16 %v290
      %v364 = vunpack.c.l.b16 %v291
      %v365 = vunpack.c.l.b16 %v292
      %v366 = vunpack.c.l.b16 %v293
      %v367 = vunpack.c.l.b16 %v294
      %v368 = vunpack.c.l.b16 %v295
      %v369 = vunpack.c.l.b16 %v296
      %v370 = vunpack.c.l.b16 %v297
      %v371 = vunpack.c.l.b16 %v298
      %v372 = vunpack.c.l.b16 %v299
      %v373 = vunpack.c.l.b16 %v300
      %v374 = vunpack.c.l.b16 %v301
      %v375 = vunpack.c.l.b16 %v302
      %v376 = vunpack.c.l.b16 %v303
      %v377 = vunpack.c.l.b16 %v304
      %v378 = vunpack.c.l.b16 %v305
      %v379 = vunpack.c.l.b16 %v306
      %v380 = vunpack.c.l.b16 %v307
      %v381 = vunpack.c.l.b16 %v308
      %v382 = vunpack.c.l.b16 %v309
      %v383 = vunpack.c.l.b16 %v310
      %v384 = vunpack.c.l.b16 %v311
      %v385 = vunpack.c.l.b16 %v312
      %v386 = vunpack.c.l.b16 %v313
      %v387 = vpack.c.b16 %v356, %v355
      %v388 = vpack.c.b16 %v358, %v357
      %v389 = vpack.c.b16 %v360, %v359
      %v390 = vpack.c.b16 %v362, %v361
      %v391 = vpack.c.b16 %v364, %v363
      %v392 = vpack.c.b16 %v366, %v365
      %v393 = vpack.c.b16 %v368, %v367
      %v394 = vpack.c.b16 %v370, %v369
      %v395 = vpack.c.b16 %v372, %v371
      %v396 = vpack.c.b16 %v374, %v373
      %v397 = vpack.c.b16 %v376, %v375
      %v398 = vpack.c.b16 %v378, %v377
      %v399 = vpack.c.b16 %v380, %v379
      %v400 = vpack.c.b16 %v382, %v381
      %v401 = vpack.c.b16 %v384, %v383
      %v402 = vpack.c.b16 %v386, %v385
      %v408 = vunpack.c.l.b16 %v314
      %v409 = vunpack.c.l.b16 %v315
      %v410 = vunpack.c.l.b16 %v316
      %v411 = vunpack.c.l.b16 %v317
      %v412 = vunpack.c.l.b16 %v318
      %v413 = vpack.c.b16 %v409, %v408
      %v414 = vpack.c.b16 %v411, %v410
      %v415 = vpack.c.b16 %v412, %v412
      %vm418 = vcmask 293888
      %v420 = vsel %vm418, %v387, 0
      %v423 = vsel %vm418, %v388, 0
      %v426 = vsel %vm418, %v389, 0
      %v429 = vsel %vm418, %v390, 0
      %v432 = vsel %vm418, %v391, 0
      %v435 = vsel %vm418, %v392, 0
      %v438 = vsel %vm418, %v393, 0
      %v441 = vsel %vm418, %v394, 0
      %v444 = vsel %vm418, %v395, 0
      %v447 = vsel %vm418, %v396, 0
      %v450 = vsel %vm418, %v397, 0
      %v453 = vsel %vm418, %v398, 0
      %v456 = vsel %vm418, %v399, 0
      %v459 = vsel %vm418, %v400, 0
      %v462 = vsel %vm418, %v401, 0
      %v465 = vsel %vm418, %v402, 0
      %vm467 = vcmask 1041408
      %v469 = vsel %vm467, %v415, 0
      %471 = vmatpush.bf16.msra.mxu0 0
      %472 = vmatpush.bf16.msra.mxu0 0
      %473 = vmatpush.bf16.msra.mxu0 0
      %474 = vmatpush.bf16.msra.mxu0 0
      %475 = vmatpush.bf16.msra.mxu0 0
      %476 = vmatpush.bf16.msra.mxu0 %v469
      %477 = vmatpush.bf16.msra.mxu0 %v414
      %478 = vmatpush.bf16.msra.mxu0 %v413
      %479 = vmatmul.bf16.gmra.mxu0 %v420
      %v480 = vpop.f32.mrf.mxu0
      %v481 = vadd.f32 %v321, %v480
      %v482 = vpop.f32.mrf.mxu0
      %v483 = vadd.f32 %v321, %v482
      %484 = vmatmul.bf16.gmra.mxu0 %v423
      %v485 = vpop.f32.mrf.mxu0
      %v486 = vadd.f32 %v321, %v485
      %v487 = vpop.f32.mrf.mxu0
      %v488 = vadd.f32 %v321, %v487
      %489 = vmatmul.bf16.gmra.mxu0 %v426
      %v490 = vpop.f32.mrf.mxu0
      %v491 = vadd.f32 %v321, %v490
      %v492 = vpop.f32.mrf.mxu0
      %v493 = vadd.f32 %v321, %v492
      %494 = vmatmul.bf16.gmra.mxu0 %v429
      %v495 = vpop.f32.mrf.mxu0
      %v496 = vadd.f32 %v321, %v495
      %v497 = vpop.f32.mrf.mxu0
      %v498 = vadd.f32 %v321, %v497
      %499 = vmatmul.bf16.gmra.mxu0 %v432
      %v500 = vpop.f32.mrf.mxu0
      %v501 = vadd.f32 %v321, %v500
      %v502 = vpop.f32.mrf.mxu0
      %v503 = vadd.f32 %v321, %v502
      %504 = vmatmul.bf16.gmra.mxu0 %v435
      %v505 = vpop.f32.mrf.mxu0
      %v506 = vadd.f32 %v321, %v505
      %v507 = vpop.f32.mrf.mxu0
      %v508 = vadd.f32 %v321, %v507
      %509 = vmatmul.bf16.gmra.mxu0 %v438
      %v510 = vpop.f32.mrf.mxu0
      %v511 = vadd.f32 %v321, %v510
      %v512 = vpop.f32.mrf.mxu0
      %v513 = vadd.f32 %v321, %v512
      %514 = vmatmul.bf16.gmra.mxu0 %v441
      %v515 = vpop.f32.mrf.mxu0
      %v516 = vadd.f32 %v321, %v515
      %v517 = vpop.f32.mrf.mxu0
      %v518 = vadd.f32 %v321, %v517
      %519 = vmatmul.bf16.gmra.mxu0 %v444
      %v520 = vpop.f32.mrf.mxu0
      %v521 = vadd.f32 %v321, %v520
      %v522 = vpop.f32.mrf.mxu0
      %v523 = vadd.f32 %v321, %v522
      %524 = vmatmul.bf16.gmra.mxu0 %v447
      %v525 = vpop.f32.mrf.mxu0
      %v526 = vadd.f32 %v321, %v525
      %v527 = vpop.f32.mrf.mxu0
      %v528 = vadd.f32 %v321, %v527
      %529 = vmatmul.bf16.gmra.mxu0 %v450
      %v530 = vpop.f32.mrf.mxu0
      %v531 = vadd.f32 %v321, %v530
      %v532 = vpop.f32.mrf.mxu0
      %v533 = vadd.f32 %v321, %v532
      %534 = vmatmul.bf16.gmra.mxu0 %v453
      %v535 = vpop.f32.mrf.mxu0
      %v536 = vadd.f32 %v321, %v535
      %v537 = vpop.f32.mrf.mxu0
      %v538 = vadd.f32 %v321, %v537
      %539 = vmatmul.bf16.gmra.mxu0 %v456
      %v540 = vpop.f32.mrf.mxu0
      %v541 = vadd.f32 %v321, %v540
      %v542 = vpop.f32.mrf.mxu0
      %v543 = vadd.f32 %v321, %v542
      %544 = vmatmul.bf16.gmra.mxu0 %v459
      %v545 = vpop.f32.mrf.mxu0
      %v546 = vadd.f32 %v321, %v545
      %v547 = vpop.f32.mrf.mxu0
      %v548 = vadd.f32 %v321, %v547
      %549 = vmatmul.bf16.gmra.mxu0 %v462
      %v550 = vpop.f32.mrf.mxu0
      %v551 = vadd.f32 %v321, %v550
      %v552 = vpop.f32.mrf.mxu0
      %v553 = vadd.f32 %v321, %v552
      %554 = vmatmul.bf16.gmra.mxu0 %v465
      %v555 = vpop.f32.mrf.mxu0
      %v556 = vadd.f32 %v321, %v555
      %v557 = vpop.f32.mrf.mxu0
      %v558 = vadd.f32 %v321, %v557
      %559 = vdwg.mxu0
      %v560 = vmax.f32 %v481, 0.0
      %v561 = vmax.f32 %v483, 0.0
      %v562 = vmax.f32 %v486, 0.0
      %v563 = vmax.f32 %v488, 0.0
      %v564 = vmax.f32 %v491, 0.0
      %v565 = vmax.f32 %v493, 0.0
      %v566 = vmax.f32 %v496, 0.0
      %v567 = vmax.f32 %v498, 0.0
      %v568 = vmax.f32 %v501, 0.0
      %v569 = vmax.f32 %v503, 0.0
      %v570 = vmax.f32 %v506, 0.0
      %v571 = vmax.f32 %v508, 0.0
      %v572 = vmax.f32 %v511, 0.0
      %v573 = vmax.f32 %v513, 0.0
      %v574 = vmax.f32 %v516, 0.0
      %v575 = vmax.f32 %v518, 0.0
      %v576 = vmax.f32 %v521, 0.0
      %v577 = vmax.f32 %v523, 0.0
      %v578 = vmax.f32 %v526, 0.0
      %v579 = vmax.f32 %v528, 0.0
      %v580 = vmax.f32 %v531, 0.0
      %v581 = vmax.f32 %v533, 0.0
      %v582 = vmax.f32 %v536, 0.0
      %v583 = vmax.f32 %v538, 0.0
      %v584 = vmax.f32 %v541, 0.0
      %v585 = vmax.f32 %v543, 0.0
      %v586 = vmax.f32 %v546, 0.0
      %v587 = vmax.f32 %v548, 0.0
      %v588 = vmax.f32 %v551, 0.0
      %v589 = vmax.f32 %v553, 0.0
      %v590 = vmax.f32 %v556, 0.0
      %v591 = vmax.f32 %v558, 0.0
      %v592 = vpack.c.bf16 %v561, %v560
      %v593 = vpack.c.bf16 %v563, %v562
      %v594 = vpack.c.bf16 %v565, %v564
      %v595 = vpack.c.bf16 %v567, %v566
      %v596 = vpack.c.bf16 %v569, %v568
      %v597 = vpack.c.bf16 %v571, %v570
      %v598 = vpack.c.bf16 %v573, %v572
      %v599 = vpack.c.bf16 %v575, %v574
      %v600 = vpack.c.bf16 %v577, %v576
      %v601 = vpack.c.bf16 %v579, %v578
      %v602 = vpack.c.bf16 %v581, %v580
      %v603 = vpack.c.bf16 %v583, %v582
      %v604 = vpack.c.bf16 %v585, %v584
      %v605 = vpack.c.bf16 %v587, %v586
      %v606 = vpack.c.bf16 %v589, %v588
      %v607 = vpack.c.bf16 %v591, %v590
      %v608 = vld [vmem:[%s3] sm:$0xf]
      %v609 = vld [vmem:[%s3 + $0x4] sm:$0xf]
      %v610 = vld [vmem:[%s3 + $0x8] sm:$0xf]
      %v611 = vld [vmem:[%s3 + $0xc] sm:$0xf]
      %v612 = vld [vmem:[%s4] sm:$0x1]
      %v614 = vperm.slane %v612, 0
      %v620 = vunpack.c.l.b16 %v608
      %v621 = vunpack.c.l.b16 %v609
      %v622 = vunpack.c.l.b16 %v610
      %v623 = vunpack.c.l.b16 %v611
      %v624 = vpack.c.b16 %v621, %v620
      %v625 = vpack.c.b16 %v623, %v622
      %vm628 = vcmask 261120
      %v630 = vsel %vm628, %v592, 0
      %v633 = vsel %vm628, %v593, 0
      %v636 = vsel %vm628, %v594, 0
      %v639 = vsel %vm628, %v595, 0
      %v642 = vsel %vm628, %v596, 0
      %v645 = vsel %vm628, %v597, 0
      %v648 = vsel %vm628, %v598, 0
      %v651 = vsel %vm628, %v599, 0
      %v654 = vsel %vm628, %v600, 0
      %v657 = vsel %vm628, %v601, 0
      %v660 = vsel %vm628, %v602, 0
      %v663 = vsel %vm628, %v603, 0
      %v666 = vsel %vm628, %v604, 0
      %v669 = vsel %vm628, %v605, 0
      %v672 = vsel %vm628, %v606, 0
      %v675 = vsel %vm628, %v607, 0
      %677 = vmatpush.bf16.msra.mxu0 0
      %678 = vmatpush.bf16.msra.mxu0 0
      %679 = vmatpush.bf16.msra.mxu0 0
      %680 = vmatpush.bf16.msra.mxu0 0
      %681 = vmatpush.bf16.msra.mxu0 0
      %682 = vmatpush.bf16.msra.mxu0 0
      %683 = vmatpush.bf16.msra.mxu0 %v625
      %684 = vmatpush.bf16.msra.mxu0 %v624
      %685 = vmatmul.bf16.gmra.mxu0 %v630
      %v686 = vpop.f32.mrf.mxu0
      %v687 = vadd.f32 %v614, %v686
      %v688 = vpop.f32.mrf.mxu0
      %v689 = vadd.f32 %v614, %v688
      %690 = vmatmul.bf16.gmra.mxu0 %v633
      %v691 = vpop.f32.mrf.mxu0
      %v692 = vadd.f32 %v614, %v691
      %v693 = vpop.f32.mrf.mxu0
      %v694 = vadd.f32 %v614, %v693
      %695 = vmatmul.bf16.gmra.mxu0 %v636
      %v696 = vpop.f32.mrf.mxu0
      %v697 = vadd.f32 %v614, %v696
      %v698 = vpop.f32.mrf.mxu0
      %v699 = vadd.f32 %v614, %v698
      %700 = vmatmul.bf16.gmra.mxu0 %v639
      %v701 = vpop.f32.mrf.mxu0
      %v702 = vadd.f32 %v614, %v701
      %v703 = vpop.f32.mrf.mxu0
      %v704 = vadd.f32 %v614, %v703
      %705 = vmatmul.bf16.gmra.mxu0 %v642
      %v706 = vpop.f32.mrf.mxu0
      %v707 = vadd.f32 %v614, %v706
      %v708 = vpop.f32.mrf.mxu0
      %v709 = vadd.f32 %v614, %v708
      %710 = vmatmul.bf16.gmra.mxu0 %v645
      %v711 = vpop.f32.mrf.mxu0
      %v712 = vadd.f32 %v614, %v711
      %v713 = vpop.f32.mrf.mxu0
      %v714 = vadd.f32 %v614, %v713
      %715 = vmatmul.bf16.gmra.mxu0 %v648
      %v716 = vpop.f32.mrf.mxu0
      %v717 = vadd.f32 %v614, %v716
      %v718 = vpop.f32.mrf.mxu0
      %v719 = vadd.f32 %v614, %v718
      %720 = vmatmul.bf16.gmra.mxu0 %v651
      %v721 = vpop.f32.mrf.mxu0
      %v722 = vadd.f32 %v614, %v721
      %v723 = vpop.f32.mrf.mxu0
      %v724 = vadd.f32 %v614, %v723
      %725 = vmatmul.bf16.gmra.mxu0 %v654
      %v726 = vpop.f32.mrf.mxu0
      %v727 = vadd.f32 %v614, %v726
      %v728 = vpop.f32.mrf.mxu0
      %v729 = vadd.f32 %v614, %v728
      %730 = vmatmul.bf16.gmra.mxu0 %v657
      %v731 = vpop.f32.mrf.mxu0
      %v732 = vadd.f32 %v614, %v731
      %v733 = vpop.f32.mrf.mxu0
      %v734 = vadd.f32 %v614, %v733
      %735 = vmatmul.bf16.gmra.mxu0 %v660
      %v736 = vpop.f32.mrf.mxu0
      %v737 = vadd.f32 %v614, %v736
      %v738 = vpop.f32.mrf.mxu0
      %v739 = vadd.f32 %v614, %v738
      %740 = vmatmul.bf16.gmra.mxu0 %v663
      %v741 = vpop.f32.mrf.mxu0
      %v742 = vadd.f32 %v614, %v741
      %v743 = vpop.f32.mrf.mxu0
      %v744 = vadd.f32 %v614, %v743
      %745 = vmatmul.bf16.gmra.mxu0 %v666
      %v746 = vpop.f32.mrf.mxu0
      %v747 = vadd.f32 %v614, %v746
      %v748 = vpop.f32.mrf.mxu0
      %v749 = vadd.f32 %v614, %v748
      %750 = vmatmul.bf16.gmra.mxu0 %v669
      %v751 = vpop.f32.mrf.mxu0
      %v752 = vadd.f32 %v614, %v751
      %v753 = vpop.f32.mrf.mxu0
      %v754 = vadd.f32 %v614, %v753
      %755 = vmatmul.bf16.gmra.mxu0 %v672
      %v756 = vpop.f32.mrf.mxu0
      %v757 = vadd.f32 %v614, %v756
      %v758 = vpop.f32.mrf.mxu0
      %v759 = vadd.f32 %v614, %v758
      %760 = vmatmul.bf16.gmra.mxu0 %v675
      %v761 = vpop.f32.mrf.mxu0
      %v762 = vadd.f32 %v614, %v761
      %v763 = vpop.f32.mrf.mxu0
      %v764 = vadd.f32 %v614, %v763
      %765 = vdwg.mxu0
      %v766 = vmax.f32 %v687, 0.0
      %v767 = vmax.f32 %v689, 0.0
      %v768 = vmax.f32 %v692, 0.0
      %v769 = vmax.f32 %v694, 0.0
      %v770 = vmax.f32 %v697, 0.0
      %v771 = vmax.f32 %v699, 0.0
      %v772 = vmax.f32 %v702, 0.0
      %v773 = vmax.f32 %v704, 0.0
      %v774 = vmax.f32 %v707, 0.0
      %v775 = vmax.f32 %v709, 0.0
      %v776 = vmax.f32 %v712, 0.0
      %v777 = vmax.f32 %v714, 0.0
      %v778 = vmax.f32 %v717, 0.0
      %v779 = vmax.f32 %v719, 0.0
      %v780 = vmax.f32 %v722, 0.0
      %v781 = vmax.f32 %v724, 0.0
      %v782 = vmax.f32 %v727, 0.0
      %v783 = vmax.f32 %v729, 0.0
      %v784 = vmax.f32 %v732, 0.0
      %v785 = vmax.f32 %v734, 0.0
      %v786 = vmax.f32 %v737, 0.0
      %v787 = vmax.f32 %v739, 0.0
      %v788 = vmax.f32 %v742, 0.0
      %v789 = vmax.f32 %v744, 0.0
      %v790 = vmax.f32 %v747, 0.0
      %v791 = vmax.f32 %v749, 0.0
      %v792 = vmax.f32 %v752, 0.0
      %v793 = vmax.f32 %v754, 0.0
      %v794 = vmax.f32 %v757, 0.0
      %v795 = vmax.f32 %v759, 0.0
      %v796 = vmax.f32 %v762, 0.0
      %v797 = vmax.f32 %v764, 0.0
      %v798 = vpack.c.bf16 %v767, %v766
      %v799 = vpack.c.bf16 %v769, %v768
      %v800 = vpack.c.bf16 %v771, %v770
      %v801 = vpack.c.bf16 %v773, %v772
      %v802 = vpack.c.bf16 %v775, %v774
      %v803 = vpack.c.bf16 %v777, %v776
      %v804 = vpack.c.bf16 %v779, %v778
      %v805 = vpack.c.bf16 %v781, %v780
      %v806 = vpack.c.bf16 %v783, %v782
      %v807 = vpack.c.bf16 %v785, %v784
      %v808 = vpack.c.bf16 %v787, %v786
      %v809 = vpack.c.bf16 %v789, %v788
      %v810 = vpack.c.bf16 %v791, %v790
      %v811 = vpack.c.bf16 %v793, %v792
      %v812 = vpack.c.bf16 %v795, %v794
      %v813 = vpack.c.bf16 %v797, %v796
      %v814 = vld [vmem:[%s5] sm:$0xf]
      %v815 = vld [vmem:[%s5 + $0x4] sm:$0xf]
      %v816 = vld [vmem:[%s5 + $0x8] sm:$0xf]
      %v817 = vld [vmem:[%s5 + $0xc] sm:$0xf]
      %v822 = vunpack.c.l.b16 %v814
      %v823 = vunpack.c.l.b16 %v815
      %v824 = vunpack.c.l.b16 %v816
      %v825 = vunpack.c.l.b16 %v817
      %v826 = vpack.c.b16 %v823, %v822
      %v827 = vpack.c.b16 %v825, %v824
      %v831 = vsel %vm628, %v798, 0
      %v834 = vsel %vm628, %v799, 0
      %v837 = vsel %vm628, %v800, 0
      %v840 = vsel %vm628, %v801, 0
      %v843 = vsel %vm628, %v802, 0
      %v846 = vsel %vm628, %v803, 0
      %v849 = vsel %vm628, %v804, 0
      %v852 = vsel %vm628, %v805, 0
      %v855 = vsel %vm628, %v806, 0
      %v858 = vsel %vm628, %v807, 0
      %v861 = vsel %vm628, %v808, 0
      %v864 = vsel %vm628, %v809, 0
      %v867 = vsel %vm628, %v810, 0
      %v870 = vsel %vm628, %v811, 0
      %v873 = vsel %vm628, %v812, 0
      %v876 = vsel %vm628, %v813, 0
      %878 = vmatpush.bf16.msra.mxu0 0
      %879 = vmatpush.bf16.msra.mxu0 0
      %880 = vmatpush.bf16.msra.mxu0 0
      %881 = vmatpush.bf16.msra.mxu0 0
      %882 = vmatpush.bf16.msra.mxu0 0
      %883 = vmatpush.bf16.msra.mxu0 0
      %884 = vmatpush.bf16.msra.mxu0 %v827
      %885 = vmatpush.bf16.msra.mxu0 %v826
      %886 = vmatmul.bf16.gmra.mxu0 %v831
      %v887 = vpop.f32.mrf.mxu0
      %v888 = vadd.f32 0.0, %v887
      %v889 = vpop.f32.mrf.mxu0
      %v890 = vadd.f32 0.0, %v889
      %891 = vmatmul.bf16.gmra.mxu0 %v834
      %v892 = vpop.f32.mrf.mxu0
      %v893 = vadd.f32 0.0, %v892
      %v894 = vpop.f32.mrf.mxu0
      %v895 = vadd.f32 0.0, %v894
      %896 = vmatmul.bf16.gmra.mxu0 %v837
      %v897 = vpop.f32.mrf.mxu0
      %v898 = vadd.f32 0.0, %v897
      %v899 = vpop.f32.mrf.mxu0
      %v900 = vadd.f32 0.0, %v899
      %901 = vmatmul.bf16.gmra.mxu0 %v840
      %v902 = vpop.f32.mrf.mxu0
      %v903 = vadd.f32 0.0, %v902
      %v904 = vpop.f32.mrf.mxu0
      %v905 = vadd.f32 0.0, %v904
      %906 = vmatmul.bf16.gmra.mxu0 %v843
      %v907 = vpop.f32.mrf.mxu0
      %v908 = vadd.f32 0.0, %v907
      %v909 = vpop.f32.mrf.mxu0
      %v910 = vadd.f32 0.0, %v909
      %911 = vmatmul.bf16.gmra.mxu0 %v846
      %v912 = vpop.f32.mrf.mxu0
      %v913 = vadd.f32 0.0, %v912
      %v914 = vpop.f32.mrf.mxu0
      %v915 = vadd.f32 0.0, %v914
      %916 = vmatmul.bf16.gmra.mxu0 %v849
      %v917 = vpop.f32.mrf.mxu0
      %v918 = vadd.f32 0.0, %v917
      %v919 = vpop.f32.mrf.mxu0
      %v920 = vadd.f32 0.0, %v919
      %921 = vmatmul.bf16.gmra.mxu0 %v852
      %v922 = vpop.f32.mrf.mxu0
      %v923 = vadd.f32 0.0, %v922
      %v924 = vpop.f32.mrf.mxu0
      %v925 = vadd.f32 0.0, %v924
      %926 = vmatmul.bf16.gmra.mxu0 %v855
      %v927 = vpop.f32.mrf.mxu0
      %v928 = vadd.f32 0.0, %v927
      %v929 = vpop.f32.mrf.mxu0
      %v930 = vadd.f32 0.0, %v929
      %931 = vmatmul.bf16.gmra.mxu0 %v858
      %v932 = vpop.f32.mrf.mxu0
      %v933 = vadd.f32 0.0, %v932
      %v934 = vpop.f32.mrf.mxu0
      %v935 = vadd.f32 0.0, %v934
      %936 = vmatmul.bf16.gmra.mxu0 %v861
      %v937 = vpop.f32.mrf.mxu0
      %v938 = vadd.f32 0.0, %v937
      %v939 = vpop.f32.mrf.mxu0
      %v940 = vadd.f32 0.0, %v939
      %941 = vmatmul.bf16.gmra.mxu0 %v864
      %v942 = vpop.f32.mrf.mxu0
      %v943 = vadd.f32 0.0, %v942
      %v944 = vpop.f32.mrf.mxu0
      %v945 = vadd.f32 0.0, %v944
      %946 = vmatmul.bf16.gmra.mxu0 %v867
      %v947 = vpop.f32.mrf.mxu0
      %v948 = vadd.f32 0.0, %v947
      %v949 = vpop.f32.mrf.mxu0
      %v950 = vadd.f32 0.0, %v949
      %951 = vmatmul.bf16.gmra.mxu0 %v870
      %v952 = vpop.f32.mrf.mxu0
      %v953 = vadd.f32 0.0, %v952
      %v954 = vpop.f32.mrf.mxu0
      %v955 = vadd.f32 0.0, %v954
      %956 = vmatmul.bf16.gmra.mxu0 %v873
      %v957 = vpop.f32.mrf.mxu0
      %v958 = vadd.f32 0.0, %v957
      %v959 = vpop.f32.mrf.mxu0
      %v960 = vadd.f32 0.0, %v959
      %961 = vmatmul.bf16.gmra.mxu0 %v876
      %v962 = vpop.f32.mrf.mxu0
      %v963 = vadd.f32 0.0, %v962
      %v964 = vpop.f32.mrf.mxu0
      %v965 = vadd.f32 0.0, %v964
      %966 = vdwg.mxu0
      %vm967 = vcmask 588800
      %968 = vst.msk [vmem:[#allocation2] sm:$0xff] %vm967, %v888
      %969 = vst.msk [vmem:[#allocation2 + $0x8] sm:$0xff] %vm967, %v890
      %970 = vst.msk [vmem:[#allocation2 + $0x10] sm:$0xff] %vm967, %v893
      %971 = vst.msk [vmem:[#allocation2 + $0x18] sm:$0xff] %vm967, %v895
      %972 = vst.msk [vmem:[#allocation2 + $0x20] sm:$0xff] %vm967, %v898
      %973 = vst.msk [vmem:[#allocation2 + $0x28] sm:$0xff] %vm967, %v900
      %974 = vst.msk [vmem:[#allocation2 + $0x30] sm:$0xff] %vm967, %v903
      %975 = vst.msk [vmem:[#allocation2 + $0x38] sm:$0xff] %vm967, %v905
      %976 = vst.msk [vmem:[#allocation2 + $0x40] sm:$0xff] %vm967, %v908
      %977 = vst.msk [vmem:[#allocation2 + $0x48] sm:$0xff] %vm967, %v910
      %978 = vst.msk [vmem:[#allocation2 + $0x50] sm:$0xff] %vm967, %v913
      %979 = vst.msk [vmem:[#allocation2 + $0x58] sm:$0xff] %vm967, %v915
      %980 = vst.msk [vmem:[#allocation2 + $0x60] sm:$0xff] %vm967, %v918
      %981 = vst.msk [vmem:[#allocation2 + $0x68] sm:$0xff] %vm967, %v920
      %982 = vst.msk [vmem:[#allocation2 + $0x70] sm:$0xff] %vm967, %v923
      %983 = vst.msk [vmem:[#allocation2 + $0x78] sm:$0xff] %vm967, %v925
      %984 = vst.msk [vmem:[#allocation2 + $0x80] sm:$0xff] %vm967, %v928
      %985 = vst.msk [vmem:[#allocation2 + $0x88] sm:$0xff] %vm967, %v930
      %986 = vst.msk [vmem:[#allocation2 + $0x90] sm:$0xff] %vm967, %v933
      %987 = vst.msk [vmem:[#allocation2 + $0x98] sm:$0xff] %vm967, %v935
      %988 = vst.msk [vmem:[#allocation2 + $0xa0] sm:$0xff] %vm967, %v938
      %989 = vst.msk [vmem:[#allocation2 + $0xa8] sm:$0xff] %vm967, %v940
      %990 = vst.msk [vmem:[#allocation2 + $0xb0] sm:$0xff] %vm967, %v943
      %991 = vst.msk [vmem:[#allocation2 + $0xb8] sm:$0xff] %vm967, %v945
      %992 = vst.msk [vmem:[#allocation2 + $0xc0] sm:$0xff] %vm967, %v948
      %993 = vst.msk [vmem:[#allocation2 + $0xc8] sm:$0xff] %vm967, %v950
      %994 = vst.msk [vmem:[#allocation2 + $0xd0] sm:$0xff] %vm967, %v953
      %995 = vst.msk [vmem:[#allocation2 + $0xd8] sm:$0xff] %vm967, %v955
      %996 = vst.msk [vmem:[#allocation2 + $0xe0] sm:$0xff] %vm967, %v958
      %997 = vst.msk [vmem:[#allocation2 + $0xe8] sm:$0xff] %vm967, %v960
      %998 = vst.msk [vmem:[#allocation2 + $0xf0] sm:$0xff] %vm967, %v963
      %999 = vst.msk [vmem:[#allocation2 + $0xf8] sm:$0xff] %vm967, %v965
      %v1000 = vld [vmem:[#allocation2] sm:$0xff]
      %v1001 = vld [vmem:[#allocation2 + $0x8] sm:$0xff]
      %v1002 = vld [vmem:[#allocation2 + $0x10] sm:$0xff]
      %v1003 = vld [vmem:[#allocation2 + $0x18] sm:$0xff]
      %v1004 = vld [vmem:[#allocation2 + $0x20] sm:$0xff]
      %v1005 = vld [vmem:[#allocation2 + $0x28] sm:$0xff]
      %v1006 = vld [vmem:[#allocation2 + $0x30] sm:$0xff]
      %v1007 = vld [vmem:[#allocation2 + $0x38] sm:$0xff]
      %v1008 = vld [vmem:[#allocation2 + $0x40] sm:$0xff]
      %v1009 = vld [vmem:[#allocation2 + $0x48] sm:$0xff]
      %v1010 = vld [vmem:[#allocation2 + $0x50] sm:$0xff]
      %v1011 = vld [vmem:[#allocation2 + $0x58] sm:$0xff]
      %v1012 = vld [vmem:[#allocation2 + $0x60] sm:$0xff]
      %v1013 = vld [vmem:[#allocation2 + $0x68] sm:$0xff]
      %v1014 = vld [vmem:[#allocation2 + $0x70] sm:$0xff]
      %v1015 = vld [vmem:[#allocation2 + $0x78] sm:$0xff]
      %v1016 = vld [vmem:[#allocation2 + $0x80] sm:$0xff]
      %v1017 = vld [vmem:[#allocation2 + $0x88] sm:$0xff]
      %v1018 = vld [vmem:[#allocation2 + $0x90] sm:$0xff]
      %v1019 = vld [vmem:[#allocation2 + $0x98] sm:$0xff]
      %v1020 = vld [vmem:[#allocation2 + $0xa0] sm:$0xff]
      %v1021 = vld [vmem:[#allocation2 + $0xa8] sm:$0xff]
      %v1022 = vld [vmem:[#allocation2 + $0xb0] sm:$0xff]
      %v1023 = vld [vmem:[#allocation2 + $0xb8] sm:$0xff]
      %v1024 = vld [vmem:[#allocation2 + $0xc0] sm:$0xff]
      %v1025 = vld [vmem:[#allocation2 + $0xc8] sm:$0xff]
      %v1026 = vld [vmem:[#allocation2 + $0xd0] sm:$0xff]
      %v1027 = vld [vmem:[#allocation2 + $0xd8] sm:$0xff]
      %v1028 = vld [vmem:[#allocation2 + $0xe0] sm:$0xff]
      %v1029 = vld [vmem:[#allocation2 + $0xe8] sm:$0xff]
      %v1030 = vld [vmem:[#allocation2 + $0xf0] sm:$0xff]
      %v1031 = vld [vmem:[#allocation2 + $0xf8] sm:$0xff]
      %v1032 = vld [vmem:[%s6] sm:$0xff]
      %v1033 = vld [vmem:[%s6 + $0x8] sm:$0xff]
      %v1034 = vld [vmem:[%s6 + $0x10] sm:$0xff]
      %v1035 = vld [vmem:[%s6 + $0x18] sm:$0xff]
      %v1036 = vld [vmem:[%s6 + $0x20] sm:$0xff]
      %v1037 = vld [vmem:[%s6 + $0x28] sm:$0xff]
      %v1038 = vld [vmem:[%s6 + $0x30] sm:$0xff]
      %v1039 = vld [vmem:[%s6 + $0x38] sm:$0xff]
      %v1040 = vld [vmem:[%s6 + $0x40] sm:$0xff]
      %v1041 = vld [vmem:[%s6 + $0x48] sm:$0xff]
      %v1042 = vld [vmem:[%s6 + $0x50] sm:$0xff]
      %v1043 = vld [vmem:[%s6 + $0x58] sm:$0xff]
      %v1044 = vld [vmem:[%s6 + $0x60] sm:$0xff]
      %v1045 = vld [vmem:[%s6 + $0x68] sm:$0xff]
      %v1046 = vld [vmem:[%s6 + $0x70] sm:$0xff]
      %v1047 = vld [vmem:[%s6 + $0x78] sm:$0xff]
      %v1048 = vld [vmem:[%s6 + $0x80] sm:$0xff]
      %v1049 = vld [vmem:[%s6 + $0x88] sm:$0xff]
      %v1050 = vld [vmem:[%s6 + $0x90] sm:$0xff]
      %v1051 = vld [vmem:[%s6 + $0x98] sm:$0xff]
      %v1052 = vld [vmem:[%s6 + $0xa0] sm:$0xff]
      %v1053 = vld [vmem:[%s6 + $0xa8] sm:$0xff]
      %v1054 = vld [vmem:[%s6 + $0xb0] sm:$0xff]
      %v1055 = vld [vmem:[%s6 + $0xb8] sm:$0xff]
      %v1056 = vld [vmem:[%s6 + $0xc0] sm:$0xff]
      %v1057 = vld [vmem:[%s6 + $0xc8] sm:$0xff]
      %v1058 = vld [vmem:[%s6 + $0xd0] sm:$0xff]
      %v1059 = vld [vmem:[%s6 + $0xd8] sm:$0xff]
      %v1060 = vld [vmem:[%s6 + $0xe0] sm:$0xff]
      %v1061 = vld [vmem:[%s6 + $0xe8] sm:$0xff]
      %v1062 = vld [vmem:[%s6 + $0xf0] sm:$0xff]
      %v1063 = vld [vmem:[%s6 + $0xf8] sm:$0xff]
      %1096 = vrot.lane.b32.xlu0 %v1032, 32
      %v1097 = vpop.permute.xlu0 %1096
      %1098 = vrot.lane.b32.xlu0 %v1033, 32
      %v1099 = vpop.permute.xlu0 %1098
      %1100 = vrot.lane.b32.xlu0 %v1034, 32
      %v1101 = vpop.permute.xlu0 %1100
      %1102 = vrot.lane.b32.xlu0 %v1035, 32
      %v1103 = vpop.permute.xlu0 %1102
      %1104 = vrot.lane.b32.xlu0 %v1036, 32
      %v1105 = vpop.permute.xlu0 %1104
      %1106 = vrot.lane.b32.xlu0 %v1037, 32
      %v1107 = vpop.permute.xlu0 %1106
      %1108 = vrot.lane.b32.xlu0 %v1038, 32
      %v1109 = vpop.permute.xlu0 %1108
      %1110 = vrot.lane.b32.xlu0 %v1039, 32
      %v1111 = vpop.permute.xlu0 %1110
      %1112 = vrot.lane.b32.xlu0 %v1040, 32
      %v1113 = vpop.permute.xlu0 %1112
      %1114 = vrot.lane.b32.xlu0 %v1041, 32
      %v1115 = vpop.permute.xlu0 %1114
      %1116 = vrot.lane.b32.xlu0 %v1042, 32
      %v1117 = vpop.permute.xlu0 %1116
      %1118 = vrot.lane.b32.xlu0 %v1043, 32
      %v1119 = vpop.permute.xlu0 %1118
      %1120 = vrot.lane.b32.xlu0 %v1044, 32
      %v1121 = vpop.permute.xlu0 %1120
      %1122 = vrot.lane.b32.xlu0 %v1045, 32
      %v1123 = vpop.permute.xlu0 %1122
      %1124 = vrot.lane.b32.xlu0 %v1046, 32
      %v1125 = vpop.permute.xlu0 %1124
      %1126 = vrot.lane.b32.xlu0 %v1047, 32
      %v1127 = vpop.permute.xlu0 %1126
      %1128 = vrot.lane.b32.xlu0 %v1048, 32
      %v1129 = vpop.permute.xlu0 %1128
      %1130 = vrot.lane.b32.xlu0 %v1049, 32
      %v1131 = vpop.permute.xlu0 %1130
      %1132 = vrot.lane.b32.xlu0 %v1050, 32
      %v1133 = vpop.permute.xlu0 %1132
      %1134 = vrot.lane.b32.xlu0 %v1051, 32
      %v1135 = vpop.permute.xlu0 %1134
      %1136 = vrot.lane.b32.xlu0 %v1052, 32
      %v1137 = vpop.permute.xlu0 %1136
      %1138 = vrot.lane.b32.xlu0 %v1053, 32
      %v1139 = vpop.permute.xlu0 %1138
      %1140 = vrot.lane.b32.xlu0 %v1054, 32
      %v1141 = vpop.permute.xlu0 %1140
      %1142 = vrot.lane.b32.xlu0 %v1055, 32
      %v1143 = vpop.permute.xlu0 %1142
      %1144 = vrot.lane.b32.xlu0 %v1056, 32
      %v1145 = vpop.permute.xlu0 %1144
      %1146 = vrot.lane.b32.xlu0 %v1057, 32
      %v1147 = vpop.permute.xlu0 %1146
      %1148 = vrot.lane.b32.xlu0 %v1058, 32
      %v1149 = vpop.permute.xlu0 %1148
      %1150 = vrot.lane.b32.xlu0 %v1059, 32
      %v1151 = vpop.permute.xlu0 %1150
      %1152 = vrot.lane.b32.xlu0 %v1060, 32
      %v1153 = vpop.permute.xlu0 %1152
      %1154 = vrot.lane.b32.xlu0 %v1061, 32
      %v1155 = vpop.permute.xlu0 %1154
      %1156 = vrot.lane.b32.xlu0 %v1062, 32
      %v1157 = vpop.permute.xlu0 %1156
      %1158 = vrot.lane.b32.xlu0 %v1063, 32
      %v1159 = vpop.permute.xlu0 %1158
      %v1192 = vadd.f32 %v1000, %v1097
      %v1193 = vadd.f32 %v1001, %v1099
      %v1194 = vadd.f32 %v1002, %v1101
      %v1195 = vadd.f32 %v1003, %v1103
      %v1196 = vadd.f32 %v1004, %v1105
      %v1197 = vadd.f32 %v1005, %v1107
      %v1198 = vadd.f32 %v1006, %v1109
      %v1199 = vadd.f32 %v1007, %v1111
      %v1200 = vadd.f32 %v1008, %v1113
      %v1201 = vadd.f32 %v1009, %v1115
      %v1202 = vadd.f32 %v1010, %v1117
      %v1203 = vadd.f32 %v1011, %v1119
      %v1204 = vadd.f32 %v1012, %v1121
      %v1205 = vadd.f32 %v1013, %v1123
      %v1206 = vadd.f32 %v1014, %v1125
      %v1207 = vadd.f32 %v1015, %v1127
      %v1208 = vadd.f32 %v1016, %v1129
      %v1209 = vadd.f32 %v1017, %v1131
      %v1210 = vadd.f32 %v1018, %v1133
      %v1211 = vadd.f32 %v1019, %v1135
      %v1212 = vadd.f32 %v1020, %v1137
      %v1213 = vadd.f32 %v1021, %v1139
      %v1214 = vadd.f32 %v1022, %v1141
      %v1215 = vadd.f32 %v1023, %v1143
      %v1216 = vadd.f32 %v1024, %v1145
      %v1217 = vadd.f32 %v1025, %v1147
      %v1218 = vadd.f32 %v1026, %v1149
      %v1219 = vadd.f32 %v1027, %v1151
      %v1220 = vadd.f32 %v1028, %v1153
      %v1221 = vadd.f32 %v1029, %v1155
      %v1222 = vadd.f32 %v1030, %v1157
      %v1223 = vadd.f32 %v1031, %v1159
      %1256 = vrot.lane.b32.xlu0 %v1192, 96
      %v1257 = vpop.permute.xlu0 %1256
      %1258 = vrot.lane.b32.xlu0 %v1193, 96
      %v1259 = vpop.permute.xlu0 %1258
      %1260 = vrot.lane.b32.xlu0 %v1194, 96
      %v1261 = vpop.permute.xlu0 %1260
      %1262 = vrot.lane.b32.xlu0 %v1195, 96
      %v1263 = vpop.permute.xlu0 %1262
      %1264 = vrot.lane.b32.xlu0 %v1196, 96
      %v1265 = vpop.permute.xlu0 %1264
      %1266 = vrot.lane.b32.xlu0 %v1197, 96
      %v1267 = vpop.permute.xlu0 %1266
      %1268 = vrot.lane.b32.xlu0 %v1198, 96
      %v1269 = vpop.permute.xlu0 %1268
      %1270 = vrot.lane.b32.xlu0 %v1199, 96
      %v1271 = vpop.permute.xlu0 %1270
      %1272 = vrot.lane.b32.xlu0 %v1200, 96
      %v1273 = vpop.permute.xlu0 %1272
      %1274 = vrot.lane.b32.xlu0 %v1201, 96
      %v1275 = vpop.permute.xlu0 %1274
      %1276 = vrot.lane.b32.xlu0 %v1202, 96
      %v1277 = vpop.permute.xlu0 %1276
      %1278 = vrot.lane.b32.xlu0 %v1203, 96
      %v1279 = vpop.permute.xlu0 %1278
      %1280 = vrot.lane.b32.xlu0 %v1204, 96
      %v1281 = vpop.permute.xlu0 %1280
      %1282 = vrot.lane.b32.xlu0 %v1205, 96
      %v1283 = vpop.permute.xlu0 %1282
      %1284 = vrot.lane.b32.xlu0 %v1206, 96
      %v1285 = vpop.permute.xlu0 %1284
      %1286 = vrot.lane.b32.xlu0 %v1207, 96
      %v1287 = vpop.permute.xlu0 %1286
      %1288 = vrot.lane.b32.xlu0 %v1208, 96
      %v1289 = vpop.permute.xlu0 %1288
      %1290 = vrot.lane.b32.xlu0 %v1209, 96
      %v1291 = vpop.permute.xlu0 %1290
      %1292 = vrot.lane.b32.xlu0 %v1210, 96
      %v1293 = vpop.permute.xlu0 %1292
      %1294 = vrot.lane.b32.xlu0 %v1211, 96
      %v1295 = vpop.permute.xlu0 %1294
      %1296 = vrot.lane.b32.xlu0 %v1212, 96
      %v1297 = vpop.permute.xlu0 %1296
      %1298 = vrot.lane.b32.xlu0 %v1213, 96
      %v1299 = vpop.permute.xlu0 %1298
      %1300 = vrot.lane.b32.xlu0 %v1214, 96
      %v1301 = vpop.permute.xlu0 %1300
      %1302 = vrot.lane.b32.xlu0 %v1215, 96
      %v1303 = vpop.permute.xlu0 %1302
      %1304 = vrot.lane.b32.xlu0 %v1216, 96
      %v1305 = vpop.permute.xlu0 %1304
      %1306 = vrot.lane.b32.xlu0 %v1217, 96
      %v1307 = vpop.permute.xlu0 %1306
      %1308 = vrot.lane.b32.xlu0 %v1218, 96
      %v1309 = vpop.permute.xlu0 %1308
      %1310 = vrot.lane.b32.xlu0 %v1219, 96
      %v1311 = vpop.permute.xlu0 %1310
      %1312 = vrot.lane.b32.xlu0 %v1220, 96
      %v1313 = vpop.permute.xlu0 %1312
      %1314 = vrot.lane.b32.xlu0 %v1221, 96
      %v1315 = vpop.permute.xlu0 %1314
      %1316 = vrot.lane.b32.xlu0 %v1222, 96
      %v1317 = vpop.permute.xlu0 %1316
      %1318 = vrot.lane.b32.xlu0 %v1223, 96
      %v1319 = vpop.permute.xlu0 %1318
      %vm1352 = vcmask 64512
      %1353 = vst.msk [vmem:[%s280] sm:$0xff] %vm1352, %v1257
      %1354 = vst.msk [vmem:[%s280 + $0x8] sm:$0xff] %vm1352, %v1259
      %1355 = vst.msk [vmem:[%s280 + $0x10] sm:$0xff] %vm1352, %v1261
      %1356 = vst.msk [vmem:[%s280 + $0x18] sm:$0xff] %vm1352, %v1263
      %1357 = vst.msk [vmem:[%s280 + $0x20] sm:$0xff] %vm1352, %v1265
      %1358 = vst.msk [vmem:[%s280 + $0x28] sm:$0xff] %vm1352, %v1267
      %1359 = vst.msk [vmem:[%s280 + $0x30] sm:$0xff] %vm1352, %v1269
      %1360 = vst.msk [vmem:[%s280 + $0x38] sm:$0xff] %vm1352, %v1271
      %1361 = vst.msk [vmem:[%s280 + $0x40] sm:$0xff] %vm1352, %v1273
      %1362 = vst.msk [vmem:[%s280 + $0x48] sm:$0xff] %vm1352, %v1275
      %1363 = vst.msk [vmem:[%s280 + $0x50] sm:$0xff] %vm1352, %v1277
      %1364 = vst.msk [vmem:[%s280 + $0x58] sm:$0xff] %vm1352, %v1279
      %1365 = vst.msk [vmem:[%s280 + $0x60] sm:$0xff] %vm1352, %v1281
      %1366 = vst.msk [vmem:[%s280 + $0x68] sm:$0xff] %vm1352, %v1283
      %1367 = vst.msk [vmem:[%s280 + $0x70] sm:$0xff] %vm1352, %v1285
      %1368 = vst.msk [vmem:[%s280 + $0x78] sm:$0xff] %vm1352, %v1287
      %1369 = vst.msk [vmem:[%s280 + $0x80] sm:$0xff] %vm1352, %v1289
      %1370 = vst.msk [vmem:[%s280 + $0x88] sm:$0xff] %vm1352, %v1291
      %1371 = vst.msk [vmem:[%s280 + $0x90] sm:$0xff] %vm1352, %v1293
      %1372 = vst.msk [vmem:[%s280 + $0x98] sm:$0xff] %vm1352, %v1295
      %1373 = vst.msk [vmem:[%s280 + $0xa0] sm:$0xff] %vm1352, %v1297
      %1374 = vst.msk [vmem:[%s280 + $0xa8] sm:$0xff] %vm1352, %v1299
      %1375 = vst.msk [vmem:[%s280 + $0xb0] sm:$0xff] %vm1352, %v1301
      %1376 = vst.msk [vmem:[%s280 + $0xb8] sm:$0xff] %vm1352, %v1303
      %1377 = vst.msk [vmem:[%s280 + $0xc0] sm:$0xff] %vm1352, %v1305
      %1378 = vst.msk [vmem:[%s280 + $0xc8] sm:$0xff] %vm1352, %v1307
      %1379 = vst.msk [vmem:[%s280 + $0xd0] sm:$0xff] %vm1352, %v1309
      %1380 = vst.msk [vmem:[%s280 + $0xd8] sm:$0xff] %vm1352, %v1311
      %1381 = vst.msk [vmem:[%s280 + $0xe0] sm:$0xff] %vm1352, %v1313
      %1382 = vst.msk [vmem:[%s280 + $0xe8] sm:$0xff] %vm1352, %v1315
      %1383 = vst.msk [vmem:[%s280 + $0xf0] sm:$0xff] %vm1352, %v1317
      %1384 = vst.msk [vmem:[%s280 + $0xf8] sm:$0xff] %vm1352, %v1319
      %s1385 = scalar_lea.vmem %s280, 16
      %v1386 = vld [vmem:[%s1385 + $0x1] sm:$0xff]
      %v1387 = vld [vmem:[%s1385 + $0x9] sm:$0x7f]
      %v1388 = vld [vmem:[%s1385 + $0x11] sm:$0xff]
      %v1389 = vld [vmem:[%s1385 + $0x19] sm:$0x7f]
      %v1390 = vld [vmem:[%s1385 + $0x21] sm:$0xff]
      %v1391 = vld [vmem:[%s1385 + $0x29] sm:$0x7f]
      %v1392 = vld [vmem:[%s1385 + $0x31] sm:$0xff]
      %v1393 = vld [vmem:[%s1385 + $0x39] sm:$0x7f]
      %v1394 = vld [vmem:[%s1385 + $0x41] sm:$0xff]
      %v1395 = vld [vmem:[%s1385 + $0x49] sm:$0x7f]
      %v1396 = vld [vmem:[%s1385 + $0x51] sm:$0xff]
      %v1397 = vld [vmem:[%s1385 + $0x59] sm:$0x7f]
      %v1398 = vld [vmem:[%s1385 + $0x61] sm:$0xff]
      %v1399 = vld [vmem:[%s1385 + $0x69] sm:$0x7f]
      %v1400 = vld [vmem:[%s1385 + $0x71] sm:$0xff]
      %v1401 = vld [vmem:[%s1385 + $0x79] sm:$0x7f]
      %v1402 = vld [vmem:[%s1385 + $0x81] sm:$0xff]
      %v1403 = vld [vmem:[%s1385 + $0x89] sm:$0x7f]
      %v1404 = vld [vmem:[%s1385 + $0x91] sm:$0xff]
      %v1405 = vld [vmem:[%s1385 + $0x99] sm:$0x7f]
      %v1406 = vld [vmem:[%s1385 + $0xa1] sm:$0xff]
      %v1407 = vld [vmem:[%s1385 + $0xa9] sm:$0x7f]
      %v1408 = vld [vmem:[%s1385 + $0xb1] sm:$0xff]
      %v1409 = vld [vmem:[%s1385 + $0xb9] sm:$0x7f]
      %v1410 = vld [vmem:[%s1385 + $0xc1] sm:$0xff]
      %v1411 = vld [vmem:[%s1385 + $0xc9] sm:$0x7f]
      %v1412 = vld [vmem:[%s1385 + $0xd1] sm:$0xff]
      %v1413 = vld [vmem:[%s1385 + $0xd9] sm:$0x7f]
      %v1414 = vld [vmem:[%s1385 + $0xe1] sm:$0xff]
      %v1415 = vld [vmem:[%s1385 + $0xe9] sm:$0x7f]
      %v1416 = vld [vmem:[#allocation2] sm:$0xff]
      %v1417 = vld [vmem:[#allocation2 + $0x8] sm:$0x7f]
      %v1418 = vld [vmem:[#allocation2 + $0x10] sm:$0xff]
      %v1419 = vld [vmem:[#allocation2 + $0x18] sm:$0x7f]
      %v1420 = vld [vmem:[#allocation2 + $0x20] sm:$0xff]
      %v1421 = vld [vmem:[#allocation2 + $0x28] sm:$0x7f]
      %v1422 = vld [vmem:[#allocation2 + $0x30] sm:$0xff]
      %v1423 = vld [vmem:[#allocation2 + $0x38] sm:$0x7f]
      %v1424 = vld [vmem:[#allocation2 + $0x40] sm:$0xff]
      %v1425 = vld [vmem:[#allocation2 + $0x48] sm:$0x7f]
      %v1426 = vld [vmem:[#allocation2 + $0x50] sm:$0xff]
      %v1427 = vld [vmem:[#allocation2 + $0x58] sm:$0x7f]
      %v1428 = vld [vmem:[#allocation2 + $0x60] sm:$0xff]
      %v1429 = vld [vmem:[#allocation2 + $0x68] sm:$0x7f]
      %v1430 = vld [vmem:[#allocation2 + $0x70] sm:$0xff]
      %v1431 = vld [vmem:[#allocation2 + $0x78] sm:$0x7f]
      %v1432 = vld [vmem:[#allocation2 + $0x80] sm:$0xff]
      %v1433 = vld [vmem:[#allocation2 + $0x88] sm:$0x7f]
      %v1434 = vld [vmem:[#allocation2 + $0x90] sm:$0xff]
      %v1435 = vld [vmem:[#allocation2 + $0x98] sm:$0x7f]
      %v1436 = vld [vmem:[#allocation2 + $0xa0] sm:$0xff]
      %v1437 = vld [vmem:[#allocation2 + $0xa8] sm:$0x7f]
      %v1438 = vld [vmem:[#allocation2 + $0xb0] sm:$0xff]
      %v1439 = vld [vmem:[#allocation2 + $0xb8] sm:$0x7f]
      %v1440 = vld [vmem:[#allocation2 + $0xc0] sm:$0xff]
      %v1441 = vld [vmem:[#allocation2 + $0xc8] sm:$0x7f]
      %v1442 = vld [vmem:[#allocation2 + $0xd0] sm:$0xff]
      %v1443 = vld [vmem:[#allocation2 + $0xd8] sm:$0x7f]
      %v1444 = vld [vmem:[#allocation2 + $0xe0] sm:$0xff]
      %v1445 = vld [vmem:[#allocation2 + $0xe8] sm:$0x7f]
      %v1446 = vadd.f32 %v1386, %v1416
      %v1447 = vadd.f32 %v1387, %v1417
      %v1448 = vadd.f32 %v1388, %v1418
      %v1449 = vadd.f32 %v1389, %v1419
      %v1450 = vadd.f32 %v1390, %v1420
      %v1451 = vadd.f32 %v1391, %v1421
      %v1452 = vadd.f32 %v1392, %v1422
      %v1453 = vadd.f32 %v1393, %v1423
      %v1454 = vadd.f32 %v1394, %v1424
      %v1455 = vadd.f32 %v1395, %v1425
      %v1456 = vadd.f32 %v1396, %v1426
      %v1457 = vadd.f32 %v1397, %v1427
      %v1458 = vadd.f32 %v1398, %v1428
      %v1459 = vadd.f32 %v1399, %v1429
      %v1460 = vadd.f32 %v1400, %v1430
      %v1461 = vadd.f32 %v1401, %v1431
      %v1462 = vadd.f32 %v1402, %v1432
      %v1463 = vadd.f32 %v1403, %v1433
      %v1464 = vadd.f32 %v1404, %v1434
      %v1465 = vadd.f32 %v1405, %v1435
      %v1466 = vadd.f32 %v1406, %v1436
      %v1467 = vadd.f32 %v1407, %v1437
      %v1468 = vadd.f32 %v1408, %v1438
      %v1469 = vadd.f32 %v1409, %v1439
      %v1470 = vadd.f32 %v1410, %v1440
      %v1471 = vadd.f32 %v1411, %v1441
      %v1472 = vadd.f32 %v1412, %v1442
      %v1473 = vadd.f32 %v1413, %v1443
      %v1474 = vadd.f32 %v1414, %v1444
      %v1475 = vadd.f32 %v1415, %v1445
      %1476 = vst.msk [vmem:[%s1385 + $0x1] sm:$0xff] %vm1352, %v1446
      %vm1477 = vcmask 63488
      %1478 = vst.msk [vmem:[%s1385 + $0x9] sm:$0x7f] %vm1477, %v1447
      %1479 = vst.msk [vmem:[%s1385 + $0x11] sm:$0xff] %vm1352, %v1448
      %1480 = vst.msk [vmem:[%s1385 + $0x19] sm:$0x7f] %vm1477, %v1449
      %1481 = vst.msk [vmem:[%s1385 + $0x21] sm:$0xff] %vm1352, %v1450
      %1482 = vst.msk [vmem:[%s1385 + $0x29] sm:$0x7f] %vm1477, %v1451
      %1483 = vst.msk [vmem:[%s1385 + $0x31] sm:$0xff] %vm1352, %v1452
      %1484 = vst.msk [vmem:[%s1385 + $0x39] sm:$0x7f] %vm1477, %v1453
      %1485 = vst.msk [vmem:[%s1385 + $0x41] sm:$0xff] %vm1352, %v1454
      %1486 = vst.msk [vmem:[%s1385 + $0x49] sm:$0x7f] %vm1477, %v1455
      %1487 = vst.msk [vmem:[%s1385 + $0x51] sm:$0xff] %vm1352, %v1456
      %1488 = vst.msk [vmem:[%s1385 + $0x59] sm:$0x7f] %vm1477, %v1457
      %1489 = vst.msk [vmem:[%s1385 + $0x61] sm:$0xff] %vm1352, %v1458
      %1490 = vst.msk [vmem:[%s1385 + $0x69] sm:$0x7f] %vm1477, %v1459
      %1491 = vst.msk [vmem:[%s1385 + $0x71] sm:$0xff] %vm1352, %v1460
      %1492 = vst.msk [vmem:[%s1385 + $0x79] sm:$0x7f] %vm1477, %v1461
      %1493 = vst.msk [vmem:[%s1385 + $0x81] sm:$0xff] %vm1352, %v1462
      %1494 = vst.msk [vmem:[%s1385 + $0x89] sm:$0x7f] %vm1477, %v1463
      %1495 = vst.msk [vmem:[%s1385 + $0x91] sm:$0xff] %vm1352, %v1464
      %1496 = vst.msk [vmem:[%s1385 + $0x99] sm:$0x7f] %vm1477, %v1465
      %1497 = vst.msk [vmem:[%s1385 + $0xa1] sm:$0xff] %vm1352, %v1466
      %1498 = vst.msk [vmem:[%s1385 + $0xa9] sm:$0x7f] %vm1477, %v1467
      %1499 = vst.msk [vmem:[%s1385 + $0xb1] sm:$0xff] %vm1352, %v1468
      %1500 = vst.msk [vmem:[%s1385 + $0xb9] sm:$0x7f] %vm1477, %v1469
      %1501 = vst.msk [vmem:[%s1385 + $0xc1] sm:$0xff] %vm1352, %v1470
      %1502 = vst.msk [vmem:[%s1385 + $0xc9] sm:$0x7f] %vm1477, %v1471
      %1503 = vst.msk [vmem:[%s1385 + $0xd1] sm:$0xff] %vm1352, %v1472
      %1504 = vst.msk [vmem:[%s1385 + $0xd9] sm:$0x7f] %vm1477, %v1473
      %1505 = vst.msk [vmem:[%s1385 + $0xe1] sm:$0xff] %vm1352, %v1474
      %1506 = vst.msk [vmem:[%s1385 + $0xe9] sm:$0x7f] %vm1477, %v1475
      %v1507 = vld [vmem:[%s1385] sm:$0xff]
      %v1508 = vld [vmem:[%s1385 + $0x8] sm:$0xff]
      %v1509 = vld [vmem:[%s1385 + $0x10] sm:$0xff]
      %v1510 = vld [vmem:[%s1385 + $0x18] sm:$0xff]
      %v1511 = vld [vmem:[%s1385 + $0x20] sm:$0xff]
      %v1512 = vld [vmem:[%s1385 + $0x28] sm:$0xff]
      %v1513 = vld [vmem:[%s1385 + $0x30] sm:$0xff]
      %v1514 = vld [vmem:[%s1385 + $0x38] sm:$0xff]
      %v1515 = vld [vmem:[%s1385 + $0x40] sm:$0xff]
      %v1516 = vld [vmem:[%s1385 + $0x48] sm:$0xff]
      %v1517 = vld [vmem:[%s1385 + $0x50] sm:$0xff]
      %v1518 = vld [vmem:[%s1385 + $0x58] sm:$0xff]
      %v1519 = vld [vmem:[%s1385 + $0x60] sm:$0xff]
      %v1520 = vld [vmem:[%s1385 + $0x68] sm:$0xff]
      %v1521 = vld [vmem:[%s1385 + $0x70] sm:$0xff]
      %v1522 = vld [vmem:[%s1385 + $0x78] sm:$0xff]
      %v1523 = vld [vmem:[%s1385 + $0x80] sm:$0xff]
      %v1524 = vld [vmem:[%s1385 + $0x88] sm:$0xff]
      %v1525 = vld [vmem:[%s1385 + $0x90] sm:$0xff]
      %v1526 = vld [vmem:[%s1385 + $0x98] sm:$0xff]
      %v1527 = vld [vmem:[%s1385 + $0xa0] sm:$0xff]
      %v1528 = vld [vmem:[%s1385 + $0xa8] sm:$0xff]
      %v1529 = vld [vmem:[%s1385 + $0xb0] sm:$0xff]
      %v1530 = vld [vmem:[%s1385 + $0xb8] sm:$0xff]
      %v1531 = vld [vmem:[%s1385 + $0xc0] sm:$0xff]
      %v1532 = vld [vmem:[%s1385 + $0xc8] sm:$0xff]
      %v1533 = vld [vmem:[%s1385 + $0xd0] sm:$0xff]
      %v1534 = vld [vmem:[%s1385 + $0xd8] sm:$0xff]
      %v1535 = vld [vmem:[%s1385 + $0xe0] sm:$0xff]
      %v1536 = vld [vmem:[%s1385 + $0xe8] sm:$0xff]
      %v1537 = vld [vmem:[#allocation2] sm:$0xff]
      %v1538 = vld [vmem:[#allocation2 + $0x8] sm:$0xff]
      %v1539 = vld [vmem:[#allocation2 + $0x10] sm:$0xff]
      %v1540 = vld [vmem:[#allocation2 + $0x18] sm:$0xff]
      %v1541 = vld [vmem:[#allocation2 + $0x20] sm:$0xff]
      %v1542 = vld [vmem:[#allocation2 + $0x28] sm:$0xff]
      %v1543 = vld [vmem:[#allocation2 + $0x30] sm:$0xff]
      %v1544 = vld [vmem:[#allocation2 + $0x38] sm:$0xff]
      %v1545 = vld [vmem:[#allocation2 + $0x40] sm:$0xff]
      %v1546 = vld [vmem:[#allocation2 + $0x48] sm:$0xff]
      %v1547 = vld [vmem:[#allocation2 + $0x50] sm:$0xff]
      %v1548 = vld [vmem:[#allocation2 + $0x58] sm:$0xff]
      %v1549 = vld [vmem:[#allocation2 + $0x60] sm:$0xff]
      %v1550 = vld [vmem:[#allocation2 + $0x68] sm:$0xff]
      %v1551 = vld [vmem:[#allocation2 + $0x70] sm:$0xff]
      %v1552 = vld [vmem:[#allocation2 + $0x78] sm:$0xff]
      %v1553 = vld [vmem:[#allocation2 + $0x80] sm:$0xff]
      %v1554 = vld [vmem:[#allocation2 + $0x88] sm:$0xff]
      %v1555 = vld [vmem:[#allocation2 + $0x90] sm:$0xff]
      %v1556 = vld [vmem:[#allocation2 + $0x98] sm:$0xff]
      %v1557 = vld [vmem:[#allocation2 + $0xa0] sm:$0xff]
      %v1558 = vld [vmem:[#allocation2 + $0xa8] sm:$0xff]
      %v1559 = vld [vmem:[#allocation2 + $0xb0] sm:$0xff]
      %v1560 = vld [vmem:[#allocation2 + $0xb8] sm:$0xff]
      %v1561 = vld [vmem:[#allocation2 + $0xc0] sm:$0xff]
      %v1562 = vld [vmem:[#allocation2 + $0xc8] sm:$0xff]
      %v1563 = vld [vmem:[#allocation2 + $0xd0] sm:$0xff]
      %v1564 = vld [vmem:[#allocation2 + $0xd8] sm:$0xff]
      %v1565 = vld [vmem:[#allocation2 + $0xe0] sm:$0xff]
      %v1566 = vld [vmem:[#allocation2 + $0xe8] sm:$0xff]
      %1597 = vrot.lane.b32.xlu0 %v1537, 120
      %v1598 = vpop.permute.xlu0 %1597
      %1599 = vrot.lane.b32.xlu0 %v1538, 120
      %v1600 = vpop.permute.xlu0 %1599
      %1601 = vrot.lane.b32.xlu0 %v1539, 120
      %v1602 = vpop.permute.xlu0 %1601
      %1603 = vrot.lane.b32.xlu0 %v1540, 120
      %v1604 = vpop.permute.xlu0 %1603
      %1605 = vrot.lane.b32.xlu0 %v1541, 120
      %v1606 = vpop.permute.xlu0 %1605
      %1607 = vrot.lane.b32.xlu0 %v1542, 120
      %v1608 = vpop.permute.xlu0 %1607
      %1609 = vrot.lane.b32.xlu0 %v1543, 120
      %v1610 = vpop.permute.xlu0 %1609
      %1611 = vrot.lane.b32.xlu0 %v1544, 120
      %v1612 = vpop.permute.xlu0 %1611
      %1613 = vrot.lane.b32.xlu0 %v1545, 120
      %v1614 = vpop.permute.xlu0 %1613
      %1615 = vrot.lane.b32.xlu0 %v1546, 120
      %v1616 = vpop.permute.xlu0 %1615
      %1617 = vrot.lane.b32.xlu0 %v1547, 120
      %v1618 = vpop.permute.xlu0 %1617
      %1619 = vrot.lane.b32.xlu0 %v1548, 120
      %v1620 = vpop.permute.xlu0 %1619
      %1621 = vrot.lane.b32.xlu0 %v1549, 120
      %v1622 = vpop.permute.xlu0 %1621
      %1623 = vrot.lane.b32.xlu0 %v1550, 120
      %v1624 = vpop.permute.xlu0 %1623
      %1625 = vrot.lane.b32.xlu0 %v1551, 120
      %v1626 = vpop.permute.xlu0 %1625
      %1627 = vrot.lane.b32.xlu0 %v1552, 120
      %v1628 = vpop.permute.xlu0 %1627
      %1629 = vrot.lane.b32.xlu0 %v1553, 120
      %v1630 = vpop.permute.xlu0 %1629
      %1631 = vrot.lane.b32.xlu0 %v1554, 120
      %v1632 = vpop.permute.xlu0 %1631
      %1633 = vrot.lane.b32.xlu0 %v1555, 120
      %v1634 = vpop.permute.xlu0 %1633
      %1635 = vrot.lane.b32.xlu0 %v1556, 120
      %v1636 = vpop.permute.xlu0 %1635
      %1637 = vrot.lane.b32.xlu0 %v1557, 120
      %v1638 = vpop.permute.xlu0 %1637
      %1639 = vrot.lane.b32.xlu0 %v1558, 120
      %v1640 = vpop.permute.xlu0 %1639
      %1641 = vrot.lane.b32.xlu0 %v1559, 120
      %v1642 = vpop.permute.xlu0 %1641
      %1643 = vrot.lane.b32.xlu0 %v1560, 120
      %v1644 = vpop.permute.xlu0 %1643
      %1645 = vrot.lane.b32.xlu0 %v1561, 120
      %v1646 = vpop.permute.xlu0 %1645
      %1647 = vrot.lane.b32.xlu0 %v1562, 120
      %v1648 = vpop.permute.xlu0 %1647
      %1649 = vrot.lane.b32.xlu0 %v1563, 120
      %v1650 = vpop.permute.xlu0 %1649
      %1651 = vrot.lane.b32.xlu0 %v1564, 120
      %v1652 = vpop.permute.xlu0 %1651
      %1653 = vrot.lane.b32.xlu0 %v1565, 120
      %v1654 = vpop.permute.xlu0 %1653
      %1655 = vrot.lane.b32.xlu0 %v1566, 120
      %v1656 = vpop.permute.xlu0 %1655
      %v1687 = vadd.f32 %v1507, %v1598
      %v1688 = vadd.f32 %v1508, %v1600
      %v1689 = vadd.f32 %v1509, %v1602
      %v1690 = vadd.f32 %v1510, %v1604
      %v1691 = vadd.f32 %v1511, %v1606
      %v1692 = vadd.f32 %v1512, %v1608
      %v1693 = vadd.f32 %v1513, %v1610
      %v1694 = vadd.f32 %v1514, %v1612
      %v1695 = vadd.f32 %v1515, %v1614
      %v1696 = vadd.f32 %v1516, %v1616
      %v1697 = vadd.f32 %v1517, %v1618
      %v1698 = vadd.f32 %v1518, %v1620
      %v1699 = vadd.f32 %v1519, %v1622
      %v1700 = vadd.f32 %v1520, %v1624
      %v1701 = vadd.f32 %v1521, %v1626
      %v1702 = vadd.f32 %v1522, %v1628
      %v1703 = vadd.f32 %v1523, %v1630
      %v1704 = vadd.f32 %v1524, %v1632
      %v1705 = vadd.f32 %v1525, %v1634
      %v1706 = vadd.f32 %v1526, %v1636
      %v1707 = vadd.f32 %v1527, %v1638
      %v1708 = vadd.f32 %v1528, %v1640
      %v1709 = vadd.f32 %v1529, %v1642
      %v1710 = vadd.f32 %v1530, %v1644
      %v1711 = vadd.f32 %v1531, %v1646
      %v1712 = vadd.f32 %v1532, %v1648
      %v1713 = vadd.f32 %v1533, %v1650
      %v1714 = vadd.f32 %v1534, %v1652
      %v1715 = vadd.f32 %v1535, %v1654
      %v1716 = vadd.f32 %v1536, %v1656
      %1717 = vst.msk [vmem:[%s1385] sm:$0xff] %vm1352, %v1687
      %1718 = vst.msk [vmem:[%s1385 + $0x8] sm:$0xff] %vm1352, %v1688
      %1719 = vst.msk [vmem:[%s1385 + $0x10] sm:$0xff] %vm1352, %v1689
      %1720 = vst.msk [vmem:[%s1385 + $0x18] sm:$0xff] %vm1352, %v1690
      %1721 = vst.msk [vmem:[%s1385 + $0x20] sm:$0xff] %vm1352, %v1691
      %1722 = vst.msk [vmem:[%s1385 + $0x28] sm:$0xff] %vm1352, %v1692
      %1723 = vst.msk [vmem:[%s1385 + $0x30] sm:$0xff] %vm1352, %v1693
      %1724 = vst.msk [vmem:[%s1385 + $0x38] sm:$0xff] %vm1352, %v1694
      %1725 = vst.msk [vmem:[%s1385 + $0x40] sm:$0xff] %vm1352, %v1695
      %1726 = vst.msk [vmem:[%s1385 + $0x48] sm:$0xff] %vm1352, %v1696
      %1727 = vst.msk [vmem:[%s1385 + $0x50] sm:$0xff] %vm1352, %v1697
      %1728 = vst.msk [vmem:[%s1385 + $0x58] sm:$0xff] %vm1352, %v1698
      %1729 = vst.msk [vmem:[%s1385 + $0x60] sm:$0xff] %vm1352, %v1699
      %1730 = vst.msk [vmem:[%s1385 + $0x68] sm:$0xff] %vm1352, %v1700
      %1731 = vst.msk [vmem:[%s1385 + $0x70] sm:$0xff] %vm1352, %v1701
      %1732 = vst.msk [vmem:[%s1385 + $0x78] sm:$0xff] %vm1352, %v1702
      %1733 = vst.msk [vmem:[%s1385 + $0x80] sm:$0xff] %vm1352, %v1703
      %1734 = vst.msk [vmem:[%s1385 + $0x88] sm:$0xff] %vm1352, %v1704
      %1735 = vst.msk [vmem:[%s1385 + $0x90] sm:$0xff] %vm1352, %v1705
      %1736 = vst.msk [vmem:[%s1385 + $0x98] sm:$0xff] %vm1352, %v1706
      %1737 = vst.msk [vmem:[%s1385 + $0xa0] sm:$0xff] %vm1352, %v1707
      %1738 = vst.msk [vmem:[%s1385 + $0xa8] sm:$0xff] %vm1352, %v1708
      %1739 = vst.msk [vmem:[%s1385 + $0xb0] sm:$0xff] %vm1352, %v1709
      %1740 = vst.msk [vmem:[%s1385 + $0xb8] sm:$0xff] %vm1352, %v1710
      %1741 = vst.msk [vmem:[%s1385 + $0xc0] sm:$0xff] %vm1352, %v1711
      %1742 = vst.msk [vmem:[%s1385 + $0xc8] sm:$0xff] %vm1352, %v1712
      %1743 = vst.msk [vmem:[%s1385 + $0xd0] sm:$0xff] %vm1352, %v1713
      %1744 = vst.msk [vmem:[%s1385 + $0xd8] sm:$0xff] %vm1352, %v1714
      %1745 = vst.msk [vmem:[%s1385 + $0xe0] sm:$0xff] %vm1352, %v1715
      %1746 = vst.msk [vmem:[%s1385 + $0xe8] sm:$0xff] %vm1352, %v1716
      %v1747 = vld [vmem:[%s1385] sm:$0xff]
      %v1748 = vld [vmem:[%s1385 + $0x8] sm:$0x7f]
      %v1749 = vld [vmem:[%s1385 + $0x10] sm:$0xff]
      %v1750 = vld [vmem:[%s1385 + $0x18] sm:$0x7f]
      %v1751 = vld [vmem:[%s1385 + $0x20] sm:$0xff]
      %v1752 = vld [vmem:[%s1385 + $0x28] sm:$0x7f]
      %v1753 = vld [vmem:[%s1385 + $0x30] sm:$0xff]
      %v1754 = vld [vmem:[%s1385 + $0x38] sm:$0x7f]
      %v1755 = vld [vmem:[%s1385 + $0x40] sm:$0xff]
      %v1756 = vld [vmem:[%s1385 + $0x48] sm:$0x7f]
      %v1757 = vld [vmem:[%s1385 + $0x50] sm:$0xff]
      %v1758 = vld [vmem:[%s1385 + $0x58] sm:$0x7f]
      %v1759 = vld [vmem:[%s1385 + $0x60] sm:$0xff]
      %v1760 = vld [vmem:[%s1385 + $0x68] sm:$0x7f]
      %v1761 = vld [vmem:[%s1385 + $0x70] sm:$0xff]
      %v1762 = vld [vmem:[%s1385 + $0x78] sm:$0x7f]
      %v1763 = vld [vmem:[%s1385 + $0x80] sm:$0xff]
      %v1764 = vld [vmem:[%s1385 + $0x88] sm:$0x7f]
      %v1765 = vld [vmem:[%s1385 + $0x90] sm:$0xff]
      %v1766 = vld [vmem:[%s1385 + $0x98] sm:$0x7f]
      %v1767 = vld [vmem:[%s1385 + $0xa0] sm:$0xff]
      %v1768 = vld [vmem:[%s1385 + $0xa8] sm:$0x7f]
      %v1769 = vld [vmem:[%s1385 + $0xb0] sm:$0xff]
      %v1770 = vld [vmem:[%s1385 + $0xb8] sm:$0x7f]
      %v1771 = vld [vmem:[%s1385 + $0xc0] sm:$0xff]
      %v1772 = vld [vmem:[%s1385 + $0xc8] sm:$0x7f]
      %v1773 = vld [vmem:[%s1385 + $0xd0] sm:$0xff]
      %v1774 = vld [vmem:[%s1385 + $0xd8] sm:$0x7f]
      %v1775 = vld [vmem:[%s1385 + $0xe0] sm:$0xff]
      %v1776 = vld [vmem:[%s1385 + $0xe8] sm:$0x7f]
      %v1777 = vld [vmem:[#allocation2 + $0x1] sm:$0xff]
      %v1778 = vld [vmem:[#allocation2 + $0x9] sm:$0x7f]
      %v1779 = vld [vmem:[#allocation2 + $0x11] sm:$0xff]
      %v1780 = vld [vmem:[#allocation2 + $0x19] sm:$0x7f]
      %v1781 = vld [vmem:[#allocation2 + $0x21] sm:$0xff]
      %v1782 = vld [vmem:[#allocation2 + $0x29] sm:$0x7f]
      %v1783 = vld [vmem:[#allocation2 + $0x31] sm:$0xff]
      %v1784 = vld [vmem:[#allocation2 + $0x39] sm:$0x7f]
      %v1785 = vld [vmem:[#allocation2 + $0x41] sm:$0xff]
      %v1786 = vld [vmem:[#allocation2 + $0x49] sm:$0x7f]
      %v1787 = vld [vmem:[#allocation2 + $0x51] sm:$0xff]
      %v1788 = vld [vmem:[#allocation2 + $0x59] sm:$0x7f]
      %v1789 = vld [vmem:[#allocation2 + $0x61] sm:$0xff]
      %v1790 = vld [vmem:[#allocation2 + $0x69] sm:$0x7f]
      %v1791 = vld [vmem:[#allocation2 + $0x71] sm:$0xff]
      %v1792 = vld [vmem:[#allocation2 + $0x79] sm:$0x7f]
      %v1793 = vld [vmem:[#allocation2 + $0x81] sm:$0xff]
      %v1794 = vld [vmem:[#allocation2 + $0x89] sm:$0x7f]
      %v1795 = vld [vmem:[#allocation2 + $0x91] sm:$0xff]
      %v1796 = vld [vmem:[#allocation2 + $0x99] sm:$0x7f]
      %v1797 = vld [vmem:[#allocation2 + $0xa1] sm:$0xff]
      %v1798 = vld [vmem:[#allocation2 + $0xa9] sm:$0x7f]
      %v1799 = vld [vmem:[#allocation2 + $0xb1] sm:$0xff]
      %v1800 = vld [vmem:[#allocation2 + $0xb9] sm:$0x7f]
      %v1801 = vld [vmem:[#allocation2 + $0xc1] sm:$0xff]
      %v1802 = vld [vmem:[#allocation2 + $0xc9] sm:$0x7f]
      %v1803 = vld [vmem:[#allocation2 + $0xd1] sm:$0xff]
      %v1804 = vld [vmem:[#allocation2 + $0xd9] sm:$0x7f]
      %v1805 = vld [vmem:[#allocation2 + $0xe1] sm:$0xff]
      %v1806 = vld [vmem:[#allocation2 + $0xe9] sm:$0x7f]
      %1837 = vrot.lane.b32.xlu0 %v1777, 112
      %v1838 = vpop.permute.xlu0 %1837
      %1839 = vrot.lane.b32.xlu0 %v1778, 112
      %v1840 = vpop.permute.xlu0 %1839
      %1841 = vrot.lane.b32.xlu0 %v1779, 112
      %v1842 = vpop.permute.xlu0 %1841
      %1843 = vrot.lane.b32.xlu0 %v1780, 112
      %v1844 = vpop.permute.xlu0 %1843
      %1845 = vrot.lane.b32.xlu0 %v1781, 112
      %v1846 = vpop.permute.xlu0 %1845
      %1847 = vrot.lane.b32.xlu0 %v1782, 112
      %v1848 = vpop.permute.xlu0 %1847
      %1849 = vrot.lane.b32.xlu0 %v1783, 112
      %v1850 = vpop.permute.xlu0 %1849
      %1851 = vrot.lane.b32.xlu0 %v1784, 112
      %v1852 = vpop.permute.xlu0 %1851
      %1853 = vrot.lane.b32.xlu0 %v1785, 112
      %v1854 = vpop.permute.xlu0 %1853
      %1855 = vrot.lane.b32.xlu0 %v1786, 112
      %v1856 = vpop.permute.xlu0 %1855
      %1857 = vrot.lane.b32.xlu0 %v1787, 112
      %v1858 = vpop.permute.xlu0 %1857
      %1859 = vrot.lane.b32.xlu0 %v1788, 112
      %v1860 = vpop.permute.xlu0 %1859
      %1861 = vrot.lane.b32.xlu0 %v1789, 112
      %v1862 = vpop.permute.xlu0 %1861
      %1863 = vrot.lane.b32.xlu0 %v1790, 112
      %v1864 = vpop.permute.xlu0 %1863
      %1865 = vrot.lane.b32.xlu0 %v1791, 112
      %v1866 = vpop.permute.xlu0 %1865
      %1867 = vrot.lane.b32.xlu0 %v1792, 112
      %v1868 = vpop.permute.xlu0 %1867
      %1869 = vrot.lane.b32.xlu0 %v1793, 112
      %v1870 = vpop.permute.xlu0 %1869
      %1871 = vrot.lane.b32.xlu0 %v1794, 112
      %v1872 = vpop.permute.xlu0 %1871
      %1873 = vrot.lane.b32.xlu0 %v1795, 112
      %v1874 = vpop.permute.xlu0 %1873
      %1875 = vrot.lane.b32.xlu0 %v1796, 112
      %v1876 = vpop.permute.xlu0 %1875
      %1877 = vrot.lane.b32.xlu0 %v1797, 112
      %v1878 = vpop.permute.xlu0 %1877
      %1879 = vrot.lane.b32.xlu0 %v1798, 112
      %v1880 = vpop.permute.xlu0 %1879
      %1881 = vrot.lane.b32.xlu0 %v1799, 112
      %v1882 = vpop.permute.xlu0 %1881
      %1883 = vrot.lane.b32.xlu0 %v1800, 112
      %v1884 = vpop.permute.xlu0 %1883
      %1885 = vrot.lane.b32.xlu0 %v1801, 112
      %v1886 = vpop.permute.xlu0 %1885
      %1887 = vrot.lane.b32.xlu0 %v1802, 112
      %v1888 = vpop.permute.xlu0 %1887
      %1889 = vrot.lane.b32.xlu0 %v1803, 112
      %v1890 = vpop.permute.xlu0 %1889
      %1891 = vrot.lane.b32.xlu0 %v1804, 112
      %v1892 = vpop.permute.xlu0 %1891
      %1893 = vrot.lane.b32.xlu0 %v1805, 112
      %v1894 = vpop.permute.xlu0 %1893
      %1895 = vrot.lane.b32.xlu0 %v1806, 112
      %v1896 = vpop.permute.xlu0 %1895
      %v1927 = vadd.f32 %v1747, %v1838
      %v1928 = vadd.f32 %v1748, %v1840
      %v1929 = vadd.f32 %v1749, %v1842
      %v1930 = vadd.f32 %v1750, %v1844
      %v1931 = vadd.f32 %v1751, %v1846
      %v1932 = vadd.f32 %v1752, %v1848
      %v1933 = vadd.f32 %v1753, %v1850
      %v1934 = vadd.f32 %v1754, %v1852
      %v1935 = vadd.f32 %v1755, %v1854
      %v1936 = vadd.f32 %v1756, %v1856
      %v1937 = vadd.f32 %v1757, %v1858
      %v1938 = vadd.f32 %v1758, %v1860
      %v1939 = vadd.f32 %v1759, %v1862
      %v1940 = vadd.f32 %v1760, %v1864
      %v1941 = vadd.f32 %v1761, %v1866
      %v1942 = vadd.f32 %v1762, %v1868
      %v1943 = vadd.f32 %v1763, %v1870
      %v1944 = vadd.f32 %v1764, %v1872
      %v1945 = vadd.f32 %v1765, %v1874
      %v1946 = vadd.f32 %v1766, %v1876
      %v1947 = vadd.f32 %v1767, %v1878
      %v1948 = vadd.f32 %v1768, %v1880
      %v1949 = vadd.f32 %v1769, %v1882
      %v1950 = vadd.f32 %v1770, %v1884
      %v1951 = vadd.f32 %v1771, %v1886
      %v1952 = vadd.f32 %v1772, %v1888
      %v1953 = vadd.f32 %v1773, %v1890
      %v1954 = vadd.f32 %v1774, %v1892
      %v1955 = vadd.f32 %v1775, %v1894
      %v1956 = vadd.f32 %v1776, %v1896
      %1957 = vst.msk [vmem:[%s1385] sm:$0xff] %vm1352, %v1927
      %1958 = vst.msk [vmem:[%s1385 + $0x8] sm:$0x7f] %vm1477, %v1928
      %1959 = vst.msk [vmem:[%s1385 + $0x10] sm:$0xff] %vm1352, %v1929
      %1960 = vst.msk [vmem:[%s1385 + $0x18] sm:$0x7f] %vm1477, %v1930
      %1961 = vst.msk [vmem:[%s1385 + $0x20] sm:$0xff] %vm1352, %v1931
      %1962 = vst.msk [vmem:[%s1385 + $0x28] sm:$0x7f] %vm1477, %v1932
      %1963 = vst.msk [vmem:[%s1385 + $0x30] sm:$0xff] %vm1352, %v1933
      %1964 = vst.msk [vmem:[%s1385 + $0x38] sm:$0x7f] %vm1477, %v1934
      %1965 = vst.msk [vmem:[%s1385 + $0x40] sm:$0xff] %vm1352, %v1935
      %1966 = vst.msk [vmem:[%s1385 + $0x48] sm:$0x7f] %vm1477, %v1936
      %1967 = vst.msk [vmem:[%s1385 + $0x50] sm:$0xff] %vm1352, %v1937
      %1968 = vst.msk [vmem:[%s1385 + $0x58] sm:$0x7f] %vm1477, %v1938
      %1969 = vst.msk [vmem:[%s1385 + $0x60] sm:$0xff] %vm1352, %v1939
      %1970 = vst.msk [vmem:[%s1385 + $0x68] sm:$0x7f] %vm1477, %v1940
      %1971 = vst.msk [vmem:[%s1385 + $0x70] sm:$0xff] %vm1352, %v1941
      %1972 = vst.msk [vmem:[%s1385 + $0x78] sm:$0x7f] %vm1477, %v1942
      %1973 = vst.msk [vmem:[%s1385 + $0x80] sm:$0xff] %vm1352, %v1943
      %1974 = vst.msk [vmem:[%s1385 + $0x88] sm:$0x7f] %vm1477, %v1944
      %1975 = vst.msk [vmem:[%s1385 + $0x90] sm:$0xff] %vm1352, %v1945
      %1976 = vst.msk [vmem:[%s1385 + $0x98] sm:$0x7f] %vm1477, %v1946
      %1977 = vst.msk [vmem:[%s1385 + $0xa0] sm:$0xff] %vm1352, %v1947
      %1978 = vst.msk [vmem:[%s1385 + $0xa8] sm:$0x7f] %vm1477, %v1948
      %1979 = vst.msk [vmem:[%s1385 + $0xb0] sm:$0xff] %vm1352, %v1949
      %1980 = vst.msk [vmem:[%s1385 + $0xb8] sm:$0x7f] %vm1477, %v1950
      %1981 = vst.msk [vmem:[%s1385 + $0xc0] sm:$0xff] %vm1352, %v1951
      %1982 = vst.msk [vmem:[%s1385 + $0xc8] sm:$0x7f] %vm1477, %v1952
      %1983 = vst.msk [vmem:[%s1385 + $0xd0] sm:$0xff] %vm1352, %v1953
      %1984 = vst.msk [vmem:[%s1385 + $0xd8] sm:$0x7f] %vm1477, %v1954
      %1985 = vst.msk [vmem:[%s1385 + $0xe0] sm:$0xff] %vm1352, %v1955
      %1986 = vst.msk [vmem:[%s1385 + $0xe8] sm:$0x7f] %vm1477, %v1956
      %v1987 = vld [vmem:[%s280 + $0x1] sm:$0xff]
      %v1988 = vld [vmem:[%s280 + $0x9] sm:$0x7f]
      %v1989 = vld [vmem:[%s280 + $0x11] sm:$0xff]
      %v1990 = vld [vmem:[%s280 + $0x19] sm:$0x7f]
      %v1991 = vld [vmem:[%s280 + $0x21] sm:$0xff]
      %v1992 = vld [vmem:[%s280 + $0x29] sm:$0x7f]
      %v1993 = vld [vmem:[%s280 + $0x31] sm:$0xff]
      %v1994 = vld [vmem:[%s280 + $0x39] sm:$0x7f]
      %v1995 = vld [vmem:[%s280 + $0x41] sm:$0xff]
      %v1996 = vld [vmem:[%s280 + $0x49] sm:$0x7f]
      %v1997 = vld [vmem:[%s280 + $0x51] sm:$0xff]
      %v1998 = vld [vmem:[%s280 + $0x59] sm:$0x7f]
      %v1999 = vld [vmem:[%s280 + $0x61] sm:$0xff]
      %v2000 = vld [vmem:[%s280 + $0x69] sm:$0x7f]
      %v2001 = vld [vmem:[%s280 + $0x71] sm:$0xff]
      %v2002 = vld [vmem:[%s280 + $0x79] sm:$0x7f]
      %v2003 = vld [vmem:[%s280 + $0x81] sm:$0xff]
      %v2004 = vld [vmem:[%s280 + $0x89] sm:$0x7f]
      %v2005 = vld [vmem:[%s280 + $0x91] sm:$0xff]
      %v2006 = vld [vmem:[%s280 + $0x99] sm:$0x7f]
      %v2007 = vld [vmem:[%s280 + $0xa1] sm:$0xff]
      %v2008 = vld [vmem:[%s280 + $0xa9] sm:$0x7f]
      %v2009 = vld [vmem:[%s280 + $0xb1] sm:$0xff]
      %v2010 = vld [vmem:[%s280 + $0xb9] sm:$0x7f]
      %v2011 = vld [vmem:[%s280 + $0xc1] sm:$0xff]
      %v2012 = vld [vmem:[%s280 + $0xc9] sm:$0x7f]
      %v2013 = vld [vmem:[%s280 + $0xd1] sm:$0xff]
      %v2014 = vld [vmem:[%s280 + $0xd9] sm:$0x7f]
      %v2015 = vld [vmem:[%s280 + $0xe1] sm:$0xff]
      %v2016 = vld [vmem:[%s280 + $0xe9] sm:$0x7f]
      %v2017 = vld [vmem:[%s280 + $0xf1] sm:$0xff]
      %v2018 = vld [vmem:[%s280 + $0xf9] sm:$0x7f]
      %v2019 = vld [vmem:[#allocation2] sm:$0xff]
      %v2020 = vld [vmem:[#allocation2 + $0x8] sm:$0x7f]
      %v2021 = vld [vmem:[#allocation2 + $0x10] sm:$0xff]
      %v2022 = vld [vmem:[#allocation2 + $0x18] sm:$0x7f]
      %v2023 = vld [vmem:[#allocation2 + $0x20] sm:$0xff]
      %v2024 = vld [vmem:[#allocation2 + $0x28] sm:$0x7f]
      %v2025 = vld [vmem:[#allocation2 + $0x30] sm:$0xff]
      %v2026 = vld [vmem:[#allocation2 + $0x38] sm:$0x7f]
      %v2027 = vld [vmem:[#allocation2 + $0x40] sm:$0xff]
      %v2028 = vld [vmem:[#allocation2 + $0x48] sm:$0x7f]
      %v2029 = vld [vmem:[#allocation2 + $0x50] sm:$0xff]
      %v2030 = vld [vmem:[#allocation2 + $0x58] sm:$0x7f]
      %v2031 = vld [vmem:[#allocation2 + $0x60] sm:$0xff]
      %v2032 = vld [vmem:[#allocation2 + $0x68] sm:$0x7f]
      %v2033 = vld [vmem:[#allocation2 + $0x70] sm:$0xff]
      %v2034 = vld [vmem:[#allocation2 + $0x78] sm:$0x7f]
      %v2035 = vld [vmem:[#allocation2 + $0x80] sm:$0xff]
      %v2036 = vld [vmem:[#allocation2 + $0x88] sm:$0x7f]
      %v2037 = vld [vmem:[#allocation2 + $0x90] sm:$0xff]
      %v2038 = vld [vmem:[#allocation2 + $0x98] sm:$0x7f]
      %v2039 = vld [vmem:[#allocation2 + $0xa0] sm:$0xff]
      %v2040 = vld [vmem:[#allocation2 + $0xa8] sm:$0x7f]
      %v2041 = vld [vmem:[#allocation2 + $0xb0] sm:$0xff]
      %v2042 = vld [vmem:[#allocation2 + $0xb8] sm:$0x7f]
      %v2043 = vld [vmem:[#allocation2 + $0xc0] sm:$0xff]
      %v2044 = vld [vmem:[#allocation2 + $0xc8] sm:$0x7f]
      %v2045 = vld [vmem:[#allocation2 + $0xd0] sm:$0xff]
      %v2046 = vld [vmem:[#allocation2 + $0xd8] sm:$0x7f]
      %v2047 = vld [vmem:[#allocation2 + $0xe0] sm:$0xff]
      %v2048 = vld [vmem:[#allocation2 + $0xe8] sm:$0x7f]
      %v2049 = vld [vmem:[#allocation2 + $0xf0] sm:$0xff]
      %v2050 = vld [vmem:[#allocation2 + $0xf8] sm:$0x7f]
      %2083 = vrot.lane.b32.xlu0 %v2019, 104
      %v2084 = vpop.permute.xlu0 %2083
      %2085 = vrot.lane.b32.xlu0 %v2020, 104
      %v2086 = vpop.permute.xlu0 %2085
      %2087 = vrot.lane.b32.xlu0 %v2021, 104
      %v2088 = vpop.permute.xlu0 %2087
      %2089 = vrot.lane.b32.xlu0 %v2022, 104
      %v2090 = vpop.permute.xlu0 %2089
      %2091 = vrot.lane.b32.xlu0 %v2023, 104
      %v2092 = vpop.permute.xlu0 %2091
      %2093 = vrot.lane.b32.xlu0 %v2024, 104
      %v2094 = vpop.permute.xlu0 %2093
      %2095 = vrot.lane.b32.xlu0 %v2025, 104
      %v2096 = vpop.permute.xlu0 %2095
      %2097 = vrot.lane.b32.xlu0 %v2026, 104
      %v2098 = vpop.permute.xlu0 %2097
      %2099 = vrot.lane.b32.xlu0 %v2027, 104
      %v2100 = vpop.permute.xlu0 %2099
      %2101 = vrot.lane.b32.xlu0 %v2028, 104
      %v2102 = vpop.permute.xlu0 %2101
      %2103 = vrot.lane.b32.xlu0 %v2029, 104
      %v2104 = vpop.permute.xlu0 %2103
      %2105 = vrot.lane.b32.xlu0 %v2030, 104
      %v2106 = vpop.permute.xlu0 %2105
      %2107 = vrot.lane.b32.xlu0 %v2031, 104
      %v2108 = vpop.permute.xlu0 %2107
      %2109 = vrot.lane.b32.xlu0 %v2032, 104
      %v2110 = vpop.permute.xlu0 %2109
      %2111 = vrot.lane.b32.xlu0 %v2033, 104
      %v2112 = vpop.permute.xlu0 %2111
      %2113 = vrot.lane.b32.xlu0 %v2034, 104
      %v2114 = vpop.permute.xlu0 %2113
      %2115 = vrot.lane.b32.xlu0 %v2035, 104
      %v2116 = vpop.permute.xlu0 %2115
      %2117 = vrot.lane.b32.xlu0 %v2036, 104
      %v2118 = vpop.permute.xlu0 %2117
      %2119 = vrot.lane.b32.xlu0 %v2037, 104
      %v2120 = vpop.permute.xlu0 %2119
      %2121 = vrot.lane.b32.xlu0 %v2038, 104
      %v2122 = vpop.permute.xlu0 %2121
      %2123 = vrot.lane.b32.xlu0 %v2039, 104
      %v2124 = vpop.permute.xlu0 %2123
      %2125 = vrot.lane.b32.xlu0 %v2040, 104
      %v2126 = vpop.permute.xlu0 %2125
      %2127 = vrot.lane.b32.xlu0 %v2041, 104
      %v2128 = vpop.permute.xlu0 %2127
      %2129 = vrot.lane.b32.xlu0 %v2042, 104
      %v2130 = vpop.permute.xlu0 %2129
      %2131 = vrot.lane.b32.xlu0 %v2043, 104
      %v2132 = vpop.permute.xlu0 %2131
      %2133 = vrot.lane.b32.xlu0 %v2044, 104
      %v2134 = vpop.permute.xlu0 %2133
      %2135 = vrot.lane.b32.xlu0 %v2045, 104
      %v2136 = vpop.permute.xlu0 %2135
      %2137 = vrot.lane.b32.xlu0 %v2046, 104
      %v2138 = vpop.permute.xlu0 %2137
      %2139 = vrot.lane.b32.xlu0 %v2047, 104
      %v2140 = vpop.permute.xlu0 %2139
      %2141 = vrot.lane.b32.xlu0 %v2048, 104
      %v2142 = vpop.permute.xlu0 %2141
      %2143 = vrot.lane.b32.xlu0 %v2049, 104
      %v2144 = vpop.permute.xlu0 %2143
      %2145 = vrot.lane.b32.xlu0 %v2050, 104
      %v2146 = vpop.permute.xlu0 %2145
      %v2179 = vadd.f32 %v1987, %v2084
      %v2180 = vadd.f32 %v1988, %v2086
      %v2181 = vadd.f32 %v1989, %v2088
      %v2182 = vadd.f32 %v1990, %v2090
      %v2183 = vadd.f32 %v1991, %v2092
      %v2184 = vadd.f32 %v1992, %v2094
      %v2185 = vadd.f32 %v1993, %v2096
      %v2186 = vadd.f32 %v1994, %v2098
      %v2187 = vadd.f32 %v1995, %v2100
      %v2188 = vadd.f32 %v1996, %v2102
      %v2189 = vadd.f32 %v1997, %v2104
      %v2190 = vadd.f32 %v1998, %v2106
      %v2191 = vadd.f32 %v1999, %v2108
      %v2192 = vadd.f32 %v2000, %v2110
      %v2193 = vadd.f32 %v2001, %v2112
      %v2194 = vadd.f32 %v2002, %v2114
      %v2195 = vadd.f32 %v2003, %v2116
      %v2196 = vadd.f32 %v2004, %v2118
      %v2197 = vadd.f32 %v2005, %v2120
      %v2198 = vadd.f32 %v2006, %v2122
      %v2199 = vadd.f32 %v2007, %v2124
      %v2200 = vadd.f32 %v2008, %v2126
      %v2201 = vadd.f32 %v2009, %v2128
      %v2202 = vadd.f32 %v2010, %v2130
      %v2203 = vadd.f32 %v2011, %v2132
      %v2204 = vadd.f32 %v2012, %v2134
      %v2205 = vadd.f32 %v2013, %v2136
      %v2206 = vadd.f32 %v2014, %v2138
      %v2207 = vadd.f32 %v2015, %v2140
      %v2208 = vadd.f32 %v2016, %v2142
      %v2209 = vadd.f32 %v2017, %v2144
      %v2210 = vadd.f32 %v2018, %v2146
      %2211 = vst.msk [vmem:[%s280 + $0x1] sm:$0xff] %vm1352, %v2179
      %2212 = vst.msk [vmem:[%s280 + $0x9] sm:$0x7f] %vm1477, %v2180
      %2213 = vst.msk [vmem:[%s280 + $0x11] sm:$0xff] %vm1352, %v2181
      %2214 = vst.msk [vmem:[%s280 + $0x19] sm:$0x7f] %vm1477, %v2182
      %2215 = vst.msk [vmem:[%s280 + $0x21] sm:$0xff] %vm1352, %v2183
      %2216 = vst.msk [vmem:[%s280 + $0x29] sm:$0x7f] %vm1477, %v2184
      %2217 = vst.msk [vmem:[%s280 + $0x31] sm:$0xff] %vm1352, %v2185
      %2218 = vst.msk [vmem:[%s280 + $0x39] sm:$0x7f] %vm1477, %v2186
      %2219 = vst.msk [vmem:[%s280 + $0x41] sm:$0xff] %vm1352, %v2187
      %2220 = vst.msk [vmem:[%s280 + $0x49] sm:$0x7f] %vm1477, %v2188
      %2221 = vst.msk [vmem:[%s280 + $0x51] sm:$0xff] %vm1352, %v2189
      %2222 = vst.msk [vmem:[%s280 + $0x59] sm:$0x7f] %vm1477, %v2190
      %2223 = vst.msk [vmem:[%s280 + $0x61] sm:$0xff] %vm1352, %v2191
      %2224 = vst.msk [vmem:[%s280 + $0x69] sm:$0x7f] %vm1477, %v2192
      %2225 = vst.msk [vmem:[%s280 + $0x71] sm:$0xff] %vm1352, %v2193
      %2226 = vst.msk [vmem:[%s280 + $0x79] sm:$0x7f] %vm1477, %v2194
      %2227 = vst.msk [vmem:[%s280 + $0x81] sm:$0xff] %vm1352, %v2195
      %2228 = vst.msk [vmem:[%s280 + $0x89] sm:$0x7f] %vm1477, %v2196
      %2229 = vst.msk [vmem:[%s280 + $0x91] sm:$0xff] %vm1352, %v2197
      %2230 = vst.msk [vmem:[%s280 + $0x99] sm:$0x7f] %vm1477, %v2198
      %2231 = vst.msk [vmem:[%s280 + $0xa1] sm:$0xff] %vm1352, %v2199
      %2232 = vst.msk [vmem:[%s280 + $0xa9] sm:$0x7f] %vm1477, %v2200
      %2233 = vst.msk [vmem:[%s280 + $0xb1] sm:$0xff] %vm1352, %v2201
      %2234 = vst.msk [vmem:[%s280 + $0xb9] sm:$0x7f] %vm1477, %v2202
      %2235 = vst.msk [vmem:[%s280 + $0xc1] sm:$0xff] %vm1352, %v2203
      %2236 = vst.msk [vmem:[%s280 + $0xc9] sm:$0x7f] %vm1477, %v2204
      %2237 = vst.msk [vmem:[%s280 + $0xd1] sm:$0xff] %vm1352, %v2205
      %2238 = vst.msk [vmem:[%s280 + $0xd9] sm:$0x7f] %vm1477, %v2206
      %2239 = vst.msk [vmem:[%s280 + $0xe1] sm:$0xff] %vm1352, %v2207
      %2240 = vst.msk [vmem:[%s280 + $0xe9] sm:$0x7f] %vm1477, %v2208
      %2241 = vst.msk [vmem:[%s280 + $0xf1] sm:$0xff] %vm1352, %v2209
      %2242 = vst.msk [vmem:[%s280 + $0xf9] sm:$0x7f] %vm1477, %v2210
      %v2243 = vld [vmem:[%s280] sm:$0xff]
      %v2244 = vld [vmem:[%s280 + $0x8] sm:$0x7f]
      %v2245 = vld [vmem:[%s280 + $0x10] sm:$0xff]
      %v2246 = vld [vmem:[%s280 + $0x18] sm:$0x7f]
      %v2247 = vld [vmem:[%s280 + $0x20] sm:$0xff]
      %v2248 = vld [vmem:[%s280 + $0x28] sm:$0x7f]
      %v2249 = vld [vmem:[%s280 + $0x30] sm:$0xff]
      %v2250 = vld [vmem:[%s280 + $0x38] sm:$0x7f]
      %v2251 = vld [vmem:[%s280 + $0x40] sm:$0xff]
      %v2252 = vld [vmem:[%s280 + $0x48] sm:$0x7f]
      %v2253 = vld [vmem:[%s280 + $0x50] sm:$0xff]
      %v2254 = vld [vmem:[%s280 + $0x58] sm:$0x7f]
      %v2255 = vld [vmem:[%s280 + $0x60] sm:$0xff]
      %v2256 = vld [vmem:[%s280 + $0x68] sm:$0x7f]
      %v2257 = vld [vmem:[%s280 + $0x70] sm:$0xff]
      %v2258 = vld [vmem:[%s280 + $0x78] sm:$0x7f]
      %v2259 = vld [vmem:[%s280 + $0x80] sm:$0xff]
      %v2260 = vld [vmem:[%s280 + $0x88] sm:$0x7f]
      %v2261 = vld [vmem:[%s280 + $0x90] sm:$0xff]
      %v2262 = vld [vmem:[%s280 + $0x98] sm:$0x7f]
      %v2263 = vld [vmem:[%s280 + $0xa0] sm:$0xff]
      %v2264 = vld [vmem:[%s280 + $0xa8] sm:$0x7f]
      %v2265 = vld [vmem:[%s280 + $0xb0] sm:$0xff]
      %v2266 = vld [vmem:[%s280 + $0xb8] sm:$0x7f]
      %v2267 = vld [vmem:[%s280 + $0xc0] sm:$0xff]
      %v2268 = vld [vmem:[%s280 + $0xc8] sm:$0x7f]
      %v2269 = vld [vmem:[%s280 + $0xd0] sm:$0xff]
      %v2270 = vld [vmem:[%s280 + $0xd8] sm:$0x7f]
      %v2271 = vld [vmem:[%s280 + $0xe0] sm:$0xff]
      %v2272 = vld [vmem:[%s280 + $0xe8] sm:$0x7f]
      %v2273 = vld [vmem:[%s280 + $0xf0] sm:$0xff]
      %v2274 = vld [vmem:[%s280 + $0xf8] sm:$0x7f]
      %v2275 = vld [vmem:[#allocation2 + $0x1] sm:$0xff]
      %v2276 = vld [vmem:[#allocation2 + $0x9] sm:$0x7f]
      %v2277 = vld [vmem:[#allocation2 + $0x11] sm:$0xff]
      %v2278 = vld [vmem:[#allocation2 + $0x19] sm:$0x7f]
      %v2279 = vld [vmem:[#allocation2 + $0x21] sm:$0xff]
      %v2280 = vld [vmem:[#allocation2 + $0x29] sm:$0x7f]
      %v2281 = vld [vmem:[#allocation2 + $0x31] sm:$0xff]
      %v2282 = vld [vmem:[#allocation2 + $0x39] sm:$0x7f]
      %v2283 = vld [vmem:[#allocation2 + $0x41] sm:$0xff]
      %v2284 = vld [vmem:[#allocation2 + $0x49] sm:$0x7f]
      %v2285 = vld [vmem:[#allocation2 + $0x51] sm:$0xff]
      %v2286 = vld [vmem:[#allocation2 + $0x59] sm:$0x7f]
      %v2287 = vld [vmem:[#allocation2 + $0x61] sm:$0xff]
      %v2288 = vld [vmem:[#allocation2 + $0x69] sm:$0x7f]
      %v2289 = vld [vmem:[#allocation2 + $0x71] sm:$0xff]
      %v2290 = vld [vmem:[#allocation2 + $0x79] sm:$0x7f]
      %v2291 = vld [vmem:[#allocation2 + $0x81] sm:$0xff]
      %v2292 = vld [vmem:[#allocation2 + $0x89] sm:$0x7f]
      %v2293 = vld [vmem:[#allocation2 + $0x91] sm:$0xff]
      %v2294 = vld [vmem:[#allocation2 + $0x99] sm:$0x7f]
      %v2295 = vld [vmem:[#allocation2 + $0xa1] sm:$0xff]
      %v2296 = vld [vmem:[#allocation2 + $0xa9] sm:$0x7f]
      %v2297 = vld [vmem:[#allocation2 + $0xb1] sm:$0xff]
      %v2298 = vld [vmem:[#allocation2 + $0xb9] sm:$0x7f]
      %v2299 = vld [vmem:[#allocation2 + $0xc1] sm:$0xff]
      %v2300 = vld [vmem:[#allocation2 + $0xc9] sm:$0x7f]
      %v2301 = vld [vmem:[#allocation2 + $0xd1] sm:$0xff]
      %v2302 = vld [vmem:[#allocation2 + $0xd9] sm:$0x7f]
      %v2303 = vld [vmem:[#allocation2 + $0xe1] sm:$0xff]
      %v2304 = vld [vmem:[#allocation2 + $0xe9] sm:$0x7f]
      %v2305 = vld [vmem:[#allocation2 + $0xf1] sm:$0xff]
      %v2306 = vld [vmem:[#allocation2 + $0xf9] sm:$0x7f]
      %2339 = vrot.lane.b32.xlu0 %v2275, 88
      %v2340 = vpop.permute.xlu0 %2339
      %2341 = vrot.lane.b32.xlu0 %v2276, 88
      %v2342 = vpop.permute.xlu0 %2341
      %2343 = vrot.lane.b32.xlu0 %v2277, 88
      %v2344 = vpop.permute.xlu0 %2343
      %2345 = vrot.lane.b32.xlu0 %v2278, 88
      %v2346 = vpop.permute.xlu0 %2345
      %2347 = vrot.lane.b32.xlu0 %v2279, 88
      %v2348 = vpop.permute.xlu0 %2347
      %2349 = vrot.lane.b32.xlu0 %v2280, 88
      %v2350 = vpop.permute.xlu0 %2349
      %2351 = vrot.lane.b32.xlu0 %v2281, 88
      %v2352 = vpop.permute.xlu0 %2351
      %2353 = vrot.lane.b32.xlu0 %v2282, 88
      %v2354 = vpop.permute.xlu0 %2353
      %2355 = vrot.lane.b32.xlu0 %v2283, 88
      %v2356 = vpop.permute.xlu0 %2355
      %2357 = vrot.lane.b32.xlu0 %v2284, 88
      %v2358 = vpop.permute.xlu0 %2357
      %2359 = vrot.lane.b32.xlu0 %v2285, 88
      %v2360 = vpop.permute.xlu0 %2359
      %2361 = vrot.lane.b32.xlu0 %v2286, 88
      %v2362 = vpop.permute.xlu0 %2361
      %2363 = vrot.lane.b32.xlu0 %v2287, 88
      %v2364 = vpop.permute.xlu0 %2363
      %2365 = vrot.lane.b32.xlu0 %v2288, 88
      %v2366 = vpop.permute.xlu0 %2365
      %2367 = vrot.lane.b32.xlu0 %v2289, 88
      %v2368 = vpop.permute.xlu0 %2367
      %2369 = vrot.lane.b32.xlu0 %v2290, 88
      %v2370 = vpop.permute.xlu0 %2369
      %2371 = vrot.lane.b32.xlu0 %v2291, 88
      %v2372 = vpop.permute.xlu0 %2371
      %2373 = vrot.lane.b32.xlu0 %v2292, 88
      %v2374 = vpop.permute.xlu0 %2373
      %2375 = vrot.lane.b32.xlu0 %v2293, 88
      %v2376 = vpop.permute.xlu0 %2375
      %2377 = vrot.lane.b32.xlu0 %v2294, 88
      %v2378 = vpop.permute.xlu0 %2377
      %2379 = vrot.lane.b32.xlu0 %v2295, 88
      %v2380 = vpop.permute.xlu0 %2379
      %2381 = vrot.lane.b32.xlu0 %v2296, 88
      %v2382 = vpop.permute.xlu0 %2381
      %2383 = vrot.lane.b32.xlu0 %v2297, 88
      %v2384 = vpop.permute.xlu0 %2383
      %2385 = vrot.lane.b32.xlu0 %v2298, 88
      %v2386 = vpop.permute.xlu0 %2385
      %2387 = vrot.lane.b32.xlu0 %v2299, 88
      %v2388 = vpop.permute.xlu0 %2387
      %2389 = vrot.lane.b32.xlu0 %v2300, 88
      %v2390 = vpop.permute.xlu0 %2389
      %2391 = vrot.lane.b32.xlu0 %v2301, 88
      %v2392 = vpop.permute.xlu0 %2391
      %2393 = vrot.lane.b32.xlu0 %v2302, 88
      %v2394 = vpop.permute.xlu0 %2393
      %2395 = vrot.lane.b32.xlu0 %v2303, 88
      %v2396 = vpop.permute.xlu0 %2395
      %2397 = vrot.lane.b32.xlu0 %v2304, 88
      %v2398 = vpop.permute.xlu0 %2397
      %2399 = vrot.lane.b32.xlu0 %v2305, 88
      %v2400 = vpop.permute.xlu0 %2399
      %2401 = vrot.lane.b32.xlu0 %v2306, 88
      %v2402 = vpop.permute.xlu0 %2401
      %v2435 = vadd.f32 %v2243, %v2340
      %v2436 = vadd.f32 %v2244, %v2342
      %v2437 = vadd.f32 %v2245, %v2344
      %v2438 = vadd.f32 %v2246, %v2346
      %v2439 = vadd.f32 %v2247, %v2348
      %v2440 = vadd.f32 %v2248, %v2350
      %v2441 = vadd.f32 %v2249, %v2352
      %v2442 = vadd.f32 %v2250, %v2354
      %v2443 = vadd.f32 %v2251, %v2356
      %v2444 = vadd.f32 %v2252, %v2358
      %v2445 = vadd.f32 %v2253, %v2360
      %v2446 = vadd.f32 %v2254, %v2362
      %v2447 = vadd.f32 %v2255, %v2364
      %v2448 = vadd.f32 %v2256, %v2366
      %v2449 = vadd.f32 %v2257, %v2368
      %v2450 = vadd.f32 %v2258, %v2370
      %v2451 = vadd.f32 %v2259, %v2372
      %v2452 = vadd.f32 %v2260, %v2374
      %v2453 = vadd.f32 %v2261, %v2376
      %v2454 = vadd.f32 %v2262, %v2378
      %v2455 = vadd.f32 %v2263, %v2380
      %v2456 = vadd.f32 %v2264, %v2382
      %v2457 = vadd.f32 %v2265, %v2384
      %v2458 = vadd.f32 %v2266, %v2386
      %v2459 = vadd.f32 %v2267, %v2388
      %v2460 = vadd.f32 %v2268, %v2390
      %v2461 = vadd.f32 %v2269, %v2392
      %v2462 = vadd.f32 %v2270, %v2394
      %v2463 = vadd.f32 %v2271, %v2396
      %v2464 = vadd.f32 %v2272, %v2398
      %v2465 = vadd.f32 %v2273, %v2400
      %v2466 = vadd.f32 %v2274, %v2402
      %2467 = vst.msk [vmem:[%s280] sm:$0xff] %vm1352, %v2435
      %2468 = vst.msk [vmem:[%s280 + $0x8] sm:$0x7f] %vm1477, %v2436
      %2469 = vst.msk [vmem:[%s280 + $0x10] sm:$0xff] %vm1352, %v2437
      %2470 = vst.msk [vmem:[%s280 + $0x18] sm:$0x7f] %vm1477, %v2438
      %2471 = vst.msk [vmem:[%s280 + $0x20] sm:$0xff] %vm1352, %v2439
      %2472 = vst.msk [vmem:[%s280 + $0x28] sm:$0x7f] %vm1477, %v2440
      %2473 = vst.msk [vmem:[%s280 + $0x30] sm:$0xff] %vm1352, %v2441
      %2474 = vst.msk [vmem:[%s280 + $0x38] sm:$0x7f] %vm1477, %v2442
      %2475 = vst.msk [vmem:[%s280 + $0x40] sm:$0xff] %vm1352, %v2443
      %2476 = vst.msk [vmem:[%s280 + $0x48] sm:$0x7f] %vm1477, %v2444
      %2477 = vst.msk [vmem:[%s280 + $0x50] sm:$0xff] %vm1352, %v2445
      %2478 = vst.msk [vmem:[%s280 + $0x58] sm:$0x7f] %vm1477, %v2446
      %2479 = vst.msk [vmem:[%s280 + $0x60] sm:$0xff] %vm1352, %v2447
      %2480 = vst.msk [vmem:[%s280 + $0x68] sm:$0x7f] %vm1477, %v2448
      %2481 = vst.msk [vmem:[%s280 + $0x70] sm:$0xff] %vm1352, %v2449
      %2482 = vst.msk [vmem:[%s280 + $0x78] sm:$0x7f] %vm1477, %v2450
      %2483 = vst.msk [vmem:[%s280 + $0x80] sm:$0xff] %vm1352, %v2451
      %2484 = vst.msk [vmem:[%s280 + $0x88] sm:$0x7f] %vm1477, %v2452
      %2485 = vst.msk [vmem:[%s280 + $0x90] sm:$0xff] %vm1352, %v2453
      %2486 = vst.msk [vmem:[%s280 + $0x98] sm:$0x7f] %vm1477, %v2454
      %2487 = vst.msk [vmem:[%s280 + $0xa0] sm:$0xff] %vm1352, %v2455
      %2488 = vst.msk [vmem:[%s280 + $0xa8] sm:$0x7f] %vm1477, %v2456
      %2489 = vst.msk [vmem:[%s280 + $0xb0] sm:$0xff] %vm1352, %v2457
      %2490 = vst.msk [vmem:[%s280 + $0xb8] sm:$0x7f] %vm1477, %v2458
      %2491 = vst.msk [vmem:[%s280 + $0xc0] sm:$0xff] %vm1352, %v2459
      %2492 = vst.msk [vmem:[%s280 + $0xc8] sm:$0x7f] %vm1477, %v2460
      %2493 = vst.msk [vmem:[%s280 + $0xd0] sm:$0xff] %vm1352, %v2461
      %2494 = vst.msk [vmem:[%s280 + $0xd8] sm:$0x7f] %vm1477, %v2462
      %2495 = vst.msk [vmem:[%s280 + $0xe0] sm:$0xff] %vm1352, %v2463
      %2496 = vst.msk [vmem:[%s280 + $0xe8] sm:$0x7f] %vm1477, %v2464
      %2497 = vst.msk [vmem:[%s280 + $0xf0] sm:$0xff] %vm1352, %v2465
      %2498 = vst.msk [vmem:[%s280 + $0xf8] sm:$0x7f] %vm1477, %v2466
      %v2499 = vld [vmem:[%s280 + $0x1] sm:$0xff]
      %v2500 = vld [vmem:[%s280 + $0x9] sm:$0x7f]
      %v2501 = vld [vmem:[%s280 + $0x11] sm:$0xff]
      %v2502 = vld [vmem:[%s280 + $0x19] sm:$0x7f]
      %v2503 = vld [vmem:[%s280 + $0x21] sm:$0xff]
      %v2504 = vld [vmem:[%s280 + $0x29] sm:$0x7f]
      %v2505 = vld [vmem:[%s280 + $0x31] sm:$0xff]
      %v2506 = vld [vmem:[%s280 + $0x39] sm:$0x7f]
      %v2507 = vld [vmem:[%s280 + $0x41] sm:$0xff]
      %v2508 = vld [vmem:[%s280 + $0x49] sm:$0x7f]
      %v2509 = vld [vmem:[%s280 + $0x51] sm:$0xff]
      %v2510 = vld [vmem:[%s280 + $0x59] sm:$0x7f]
      %v2511 = vld [vmem:[%s280 + $0x61] sm:$0xff]
      %v2512 = vld [vmem:[%s280 + $0x69] sm:$0x7f]
      %v2513 = vld [vmem:[%s280 + $0x71] sm:$0xff]
      %v2514 = vld [vmem:[%s280 + $0x79] sm:$0x7f]
      %v2515 = vld [vmem:[%s280 + $0x81] sm:$0xff]
      %v2516 = vld [vmem:[%s280 + $0x89] sm:$0x7f]
      %v2517 = vld [vmem:[%s280 + $0x91] sm:$0xff]
      %v2518 = vld [vmem:[%s280 + $0x99] sm:$0x7f]
      %v2519 = vld [vmem:[%s280 + $0xa1] sm:$0xff]
      %v2520 = vld [vmem:[%s280 + $0xa9] sm:$0x7f]
      %v2521 = vld [vmem:[%s280 + $0xb1] sm:$0xff]
      %v2522 = vld [vmem:[%s280 + $0xb9] sm:$0x7f]
      %v2523 = vld [vmem:[%s280 + $0xc1] sm:$0xff]
      %v2524 = vld [vmem:[%s280 + $0xc9] sm:$0x7f]
      %v2525 = vld [vmem:[%s280 + $0xd1] sm:$0xff]
      %v2526 = vld [vmem:[%s280 + $0xd9] sm:$0x7f]
      %v2527 = vld [vmem:[%s280 + $0xe1] sm:$0xff]
      %v2528 = vld [vmem:[%s280 + $0xe9] sm:$0x7f]
      %s2529 = scalar_lea.vmem [#allocation2], 16
      %v2530 = vld [vmem:[%s2529] sm:$0xff]
      %v2531 = vld [vmem:[%s2529 + $0x8] sm:$0x7f]
      %v2532 = vld [vmem:[%s2529 + $0x10] sm:$0xff]
      %v2533 = vld [vmem:[%s2529 + $0x18] sm:$0x7f]
      %v2534 = vld [vmem:[%s2529 + $0x20] sm:$0xff]
      %v2535 = vld [vmem:[%s2529 + $0x28] sm:$0x7f]
      %v2536 = vld [vmem:[%s2529 + $0x30] sm:$0xff]
      %v2537 = vld [vmem:[%s2529 + $0x38] sm:$0x7f]
      %v2538 = vld [vmem:[%s2529 + $0x40] sm:$0xff]
      %v2539 = vld [vmem:[%s2529 + $0x48] sm:$0x7f]
      %v2540 = vld [vmem:[%s2529 + $0x50] sm:$0xff]
      %v2541 = vld [vmem:[%s2529 + $0x58] sm:$0x7f]
      %v2542 = vld [vmem:[%s2529 + $0x60] sm:$0xff]
      %v2543 = vld [vmem:[%s2529 + $0x68] sm:$0x7f]
      %v2544 = vld [vmem:[%s2529 + $0x70] sm:$0xff]
      %v2545 = vld [vmem:[%s2529 + $0x78] sm:$0x7f]
      %v2546 = vld [vmem:[%s2529 + $0x80] sm:$0xff]
      %v2547 = vld [vmem:[%s2529 + $0x88] sm:$0x7f]
      %v2548 = vld [vmem:[%s2529 + $0x90] sm:$0xff]
      %v2549 = vld [vmem:[%s2529 + $0x98] sm:$0x7f]
      %v2550 = vld [vmem:[%s2529 + $0xa0] sm:$0xff]
      %v2551 = vld [vmem:[%s2529 + $0xa8] sm:$0x7f]
      %v2552 = vld [vmem:[%s2529 + $0xb0] sm:$0xff]
      %v2553 = vld [vmem:[%s2529 + $0xb8] sm:$0x7f]
      %v2554 = vld [vmem:[%s2529 + $0xc0] sm:$0xff]
      %v2555 = vld [vmem:[%s2529 + $0xc8] sm:$0x7f]
      %v2556 = vld [vmem:[%s2529 + $0xd0] sm:$0xff]
      %v2557 = vld [vmem:[%s2529 + $0xd8] sm:$0x7f]
      %v2558 = vld [vmem:[%s2529 + $0xe0] sm:$0xff]
      %v2559 = vld [vmem:[%s2529 + $0xe8] sm:$0x7f]
      %2590 = vrot.lane.b32.xlu0 %v2530, 80
      %v2591 = vpop.permute.xlu0 %2590
      %2592 = vrot.lane.b32.xlu0 %v2531, 80
      %v2593 = vpop.permute.xlu0 %2592
      %2594 = vrot.lane.b32.xlu0 %v2532, 80
      %v2595 = vpop.permute.xlu0 %2594
      %2596 = vrot.lane.b32.xlu0 %v2533, 80
      %v2597 = vpop.permute.xlu0 %2596
      %2598 = vrot.lane.b32.xlu0 %v2534, 80
      %v2599 = vpop.permute.xlu0 %2598
      %2600 = vrot.lane.b32.xlu0 %v2535, 80
      %v2601 = vpop.permute.xlu0 %2600
      %2602 = vrot.lane.b32.xlu0 %v2536, 80
      %v2603 = vpop.permute.xlu0 %2602
      %2604 = vrot.lane.b32.xlu0 %v2537, 80
      %v2605 = vpop.permute.xlu0 %2604
      %2606 = vrot.lane.b32.xlu0 %v2538, 80
      %v2607 = vpop.permute.xlu0 %2606
      %2608 = vrot.lane.b32.xlu0 %v2539, 80
      %v2609 = vpop.permute.xlu0 %2608
      %2610 = vrot.lane.b32.xlu0 %v2540, 80
      %v2611 = vpop.permute.xlu0 %2610
      %2612 = vrot.lane.b32.xlu0 %v2541, 80
      %v2613 = vpop.permute.xlu0 %2612
      %2614 = vrot.lane.b32.xlu0 %v2542, 80
      %v2615 = vpop.permute.xlu0 %2614
      %2616 = vrot.lane.b32.xlu0 %v2543, 80
      %v2617 = vpop.permute.xlu0 %2616
      %2618 = vrot.lane.b32.xlu0 %v2544, 80
      %v2619 = vpop.permute.xlu0 %2618
      %2620 = vrot.lane.b32.xlu0 %v2545, 80
      %v2621 = vpop.permute.xlu0 %2620
      %2622 = vrot.lane.b32.xlu0 %v2546, 80
      %v2623 = vpop.permute.xlu0 %2622
      %2624 = vrot.lane.b32.xlu0 %v2547, 80
      %v2625 = vpop.permute.xlu0 %2624
      %2626 = vrot.lane.b32.xlu0 %v2548, 80
      %v2627 = vpop.permute.xlu0 %2626
      %2628 = vrot.lane.b32.xlu0 %v2549, 80
      %v2629 = vpop.permute.xlu0 %2628
      %2630 = vrot.lane.b32.xlu0 %v2550, 80
      %v2631 = vpop.permute.xlu0 %2630
      %2632 = vrot.lane.b32.xlu0 %v2551, 80
      %v2633 = vpop.permute.xlu0 %2632
      %2634 = vrot.lane.b32.xlu0 %v2552, 80
      %v2635 = vpop.permute.xlu0 %2634
      %2636 = vrot.lane.b32.xlu0 %v2553, 80
      %v2637 = vpop.permute.xlu0 %2636
      %2638 = vrot.lane.b32.xlu0 %v2554, 80
      %v2639 = vpop.permute.xlu0 %2638
      %2640 = vrot.lane.b32.xlu0 %v2555, 80
      %v2641 = vpop.permute.xlu0 %2640
      %2642 = vrot.lane.b32.xlu0 %v2556, 80
      %v2643 = vpop.permute.xlu0 %2642
      %2644 = vrot.lane.b32.xlu0 %v2557, 80
      %v2645 = vpop.permute.xlu0 %2644
      %2646 = vrot.lane.b32.xlu0 %v2558, 80
      %v2647 = vpop.permute.xlu0 %2646
      %2648 = vrot.lane.b32.xlu0 %v2559, 80
      %v2649 = vpop.permute.xlu0 %2648
      %v2680 = vadd.f32 %v2499, %v2591
      %v2681 = vadd.f32 %v2500, %v2593
      %v2682 = vadd.f32 %v2501, %v2595
      %v2683 = vadd.f32 %v2502, %v2597
      %v2684 = vadd.f32 %v2503, %v2599
      %v2685 = vadd.f32 %v2504, %v2601
      %v2686 = vadd.f32 %v2505, %v2603
      %v2687 = vadd.f32 %v2506, %v2605
      %v2688 = vadd.f32 %v2507, %v2607
      %v2689 = vadd.f32 %v2508, %v2609
      %v2690 = vadd.f32 %v2509, %v2611
      %v2691 = vadd.f32 %v2510, %v2613
      %v2692 = vadd.f32 %v2511, %v2615
      %v2693 = vadd.f32 %v2512, %v2617
      %v2694 = vadd.f32 %v2513, %v2619
      %v2695 = vadd.f32 %v2514, %v2621
      %v2696 = vadd.f32 %v2515, %v2623
      %v2697 = vadd.f32 %v2516, %v2625
      %v2698 = vadd.f32 %v2517, %v2627
      %v2699 = vadd.f32 %v2518, %v2629
      %v2700 = vadd.f32 %v2519, %v2631
      %v2701 = vadd.f32 %v2520, %v2633
      %v2702 = vadd.f32 %v2521, %v2635
      %v2703 = vadd.f32 %v2522, %v2637
      %v2704 = vadd.f32 %v2523, %v2639
      %v2705 = vadd.f32 %v2524, %v2641
      %v2706 = vadd.f32 %v2525, %v2643
      %v2707 = vadd.f32 %v2526, %v2645
      %v2708 = vadd.f32 %v2527, %v2647
      %v2709 = vadd.f32 %v2528, %v2649
      %2710 = vst.msk [vmem:[%s280 + $0x1] sm:$0xff] %vm1352, %v2680
      %2711 = vst.msk [vmem:[%s280 + $0x9] sm:$0x7f] %vm1477, %v2681
      %2712 = vst.msk [vmem:[%s280 + $0x11] sm:$0xff] %vm1352, %v2682
      %2713 = vst.msk [vmem:[%s280 + $0x19] sm:$0x7f] %vm1477, %v2683
      %2714 = vst.msk [vmem:[%s280 + $0x21] sm:$0xff] %vm1352, %v2684
      %2715 = vst.msk [vmem:[%s280 + $0x29] sm:$0x7f] %vm1477, %v2685
      %2716 = vst.msk [vmem:[%s280 + $0x31] sm:$0xff] %vm1352, %v2686
      %2717 = vst.msk [vmem:[%s280 + $0x39] sm:$0x7f] %vm1477, %v2687
      %2718 = vst.msk [vmem:[%s280 + $0x41] sm:$0xff] %vm1352, %v2688
      %2719 = vst.msk [vmem:[%s280 + $0x49] sm:$0x7f] %vm1477, %v2689
      %2720 = vst.msk [vmem:[%s280 + $0x51] sm:$0xff] %vm1352, %v2690
      %2721 = vst.msk [vmem:[%s280 + $0x59] sm:$0x7f] %vm1477, %v2691
      %2722 = vst.msk [vmem:[%s280 + $0x61] sm:$0xff] %vm1352, %v2692
      %2723 = vst.msk [vmem:[%s280 + $0x69] sm:$0x7f] %vm1477, %v2693
      %2724 = vst.msk [vmem:[%s280 + $0x71] sm:$0xff] %vm1352, %v2694
      %2725 = vst.msk [vmem:[%s280 + $0x79] sm:$0x7f] %vm1477, %v2695
      %2726 = vst.msk [vmem:[%s280 + $0x81] sm:$0xff] %vm1352, %v2696
      %2727 = vst.msk [vmem:[%s280 + $0x89] sm:$0x7f] %vm1477, %v2697
      %2728 = vst.msk [vmem:[%s280 + $0x91] sm:$0xff] %vm1352, %v2698
      %2729 = vst.msk [vmem:[%s280 + $0x99] sm:$0x7f] %vm1477, %v2699
      %2730 = vst.msk [vmem:[%s280 + $0xa1] sm:$0xff] %vm1352, %v2700
      %2731 = vst.msk [vmem:[%s280 + $0xa9] sm:$0x7f] %vm1477, %v2701
      %2732 = vst.msk [vmem:[%s280 + $0xb1] sm:$0xff] %vm1352, %v2702
      %2733 = vst.msk [vmem:[%s280 + $0xb9] sm:$0x7f] %vm1477, %v2703
      %2734 = vst.msk [vmem:[%s280 + $0xc1] sm:$0xff] %vm1352, %v2704
      %2735 = vst.msk [vmem:[%s280 + $0xc9] sm:$0x7f] %vm1477, %v2705
      %2736 = vst.msk [vmem:[%s280 + $0xd1] sm:$0xff] %vm1352, %v2706
      %2737 = vst.msk [vmem:[%s280 + $0xd9] sm:$0x7f] %vm1477, %v2707
      %2738 = vst.msk [vmem:[%s280 + $0xe1] sm:$0xff] %vm1352, %v2708
      %2739 = vst.msk [vmem:[%s280 + $0xe9] sm:$0x7f] %vm1477, %v2709
      %v2740 = vld [vmem:[%s280] sm:$0xff]
      %v2741 = vld [vmem:[%s280 + $0x8] sm:$0xff]
      %v2742 = vld [vmem:[%s280 + $0x10] sm:$0xff]
      %v2743 = vld [vmem:[%s280 + $0x18] sm:$0xff]
      %v2744 = vld [vmem:[%s280 + $0x20] sm:$0xff]
      %v2745 = vld [vmem:[%s280 + $0x28] sm:$0xff]
      %v2746 = vld [vmem:[%s280 + $0x30] sm:$0xff]
      %v2747 = vld [vmem:[%s280 + $0x38] sm:$0xff]
      %v2748 = vld [vmem:[%s280 + $0x40] sm:$0xff]
      %v2749 = vld [vmem:[%s280 + $0x48] sm:$0xff]
      %v2750 = vld [vmem:[%s280 + $0x50] sm:$0xff]
      %v2751 = vld [vmem:[%s280 + $0x58] sm:$0xff]
      %v2752 = vld [vmem:[%s280 + $0x60] sm:$0xff]
      %v2753 = vld [vmem:[%s280 + $0x68] sm:$0xff]
      %v2754 = vld [vmem:[%s280 + $0x70] sm:$0xff]
      %v2755 = vld [vmem:[%s280 + $0x78] sm:$0xff]
      %v2756 = vld [vmem:[%s280 + $0x80] sm:$0xff]
      %v2757 = vld [vmem:[%s280 + $0x88] sm:$0xff]
      %v2758 = vld [vmem:[%s280 + $0x90] sm:$0xff]
      %v2759 = vld [vmem:[%s280 + $0x98] sm:$0xff]
      %v2760 = vld [vmem:[%s280 + $0xa0] sm:$0xff]
      %v2761 = vld [vmem:[%s280 + $0xa8] sm:$0xff]
      %v2762 = vld [vmem:[%s280 + $0xb0] sm:$0xff]
      %v2763 = vld [vmem:[%s280 + $0xb8] sm:$0xff]
      %v2764 = vld [vmem:[%s280 + $0xc0] sm:$0xff]
      %v2765 = vld [vmem:[%s280 + $0xc8] sm:$0xff]
      %v2766 = vld [vmem:[%s280 + $0xd0] sm:$0xff]
      %v2767 = vld [vmem:[%s280 + $0xd8] sm:$0xff]
      %v2768 = vld [vmem:[%s280 + $0xe0] sm:$0xff]
      %v2769 = vld [vmem:[%s280 + $0xe8] sm:$0xff]
      %v2770 = vld [vmem:[%s2529] sm:$0xff]
      %v2771 = vld [vmem:[%s2529 + $0x8] sm:$0xff]
      %v2772 = vld [vmem:[%s2529 + $0x10] sm:$0xff]
      %v2773 = vld [vmem:[%s2529 + $0x18] sm:$0xff]
      %v2774 = vld [vmem:[%s2529 + $0x20] sm:$0xff]
      %v2775 = vld [vmem:[%s2529 + $0x28] sm:$0xff]
      %v2776 = vld [vmem:[%s2529 + $0x30] sm:$0xff]
      %v2777 = vld [vmem:[%s2529 + $0x38] sm:$0xff]
      %v2778 = vld [vmem:[%s2529 + $0x40] sm:$0xff]
      %v2779 = vld [vmem:[%s2529 + $0x48] sm:$0xff]
      %v2780 = vld [vmem:[%s2529 + $0x50] sm:$0xff]
      %v2781 = vld [vmem:[%s2529 + $0x58] sm:$0xff]
      %v2782 = vld [vmem:[%s2529 + $0x60] sm:$0xff]
      %v2783 = vld [vmem:[%s2529 + $0x68] sm:$0xff]
      %v2784 = vld [vmem:[%s2529 + $0x70] sm:$0xff]
      %v2785 = vld [vmem:[%s2529 + $0x78] sm:$0xff]
      %v2786 = vld [vmem:[%s2529 + $0x80] sm:$0xff]
      %v2787 = vld [vmem:[%s2529 + $0x88] sm:$0xff]
      %v2788 = vld [vmem:[%s2529 + $0x90] sm:$0xff]
      %v2789 = vld [vmem:[%s2529 + $0x98] sm:$0xff]
      %v2790 = vld [vmem:[%s2529 + $0xa0] sm:$0xff]
      %v2791 = vld [vmem:[%s2529 + $0xa8] sm:$0xff]
      %v2792 = vld [vmem:[%s2529 + $0xb0] sm:$0xff]
      %v2793 = vld [vmem:[%s2529 + $0xb8] sm:$0xff]
      %v2794 = vld [vmem:[%s2529 + $0xc0] sm:$0xff]
      %v2795 = vld [vmem:[%s2529 + $0xc8] sm:$0xff]
      %v2796 = vld [vmem:[%s2529 + $0xd0] sm:$0xff]
      %v2797 = vld [vmem:[%s2529 + $0xd8] sm:$0xff]
      %v2798 = vld [vmem:[%s2529 + $0xe0] sm:$0xff]
      %v2799 = vld [vmem:[%s2529 + $0xe8] sm:$0xff]
      %2830 = vrot.lane.b32.xlu0 %v2770, 72
      %v2831 = vpop.permute.xlu0 %2830
      %2832 = vrot.lane.b32.xlu0 %v2771, 72
      %v2833 = vpop.permute.xlu0 %2832
      %2834 = vrot.lane.b32.xlu0 %v2772, 72
      %v2835 = vpop.permute.xlu0 %2834
      %2836 = vrot.lane.b32.xlu0 %v2773, 72
      %v2837 = vpop.permute.xlu0 %2836
      %2838 = vrot.lane.b32.xlu0 %v2774, 72
      %v2839 = vpop.permute.xlu0 %2838
      %2840 = vrot.lane.b32.xlu0 %v2775, 72
      %v2841 = vpop.permute.xlu0 %2840
      %2842 = vrot.lane.b32.xlu0 %v2776, 72
      %v2843 = vpop.permute.xlu0 %2842
      %2844 = vrot.lane.b32.xlu0 %v2777, 72
      %v2845 = vpop.permute.xlu0 %2844
      %2846 = vrot.lane.b32.xlu0 %v2778, 72
      %v2847 = vpop.permute.xlu0 %2846
      %2848 = vrot.lane.b32.xlu0 %v2779, 72
      %v2849 = vpop.permute.xlu0 %2848
      %2850 = vrot.lane.b32.xlu0 %v2780, 72
      %v2851 = vpop.permute.xlu0 %2850
      %2852 = vrot.lane.b32.xlu0 %v2781, 72
      %v2853 = vpop.permute.xlu0 %2852
      %2854 = vrot.lane.b32.xlu0 %v2782, 72
      %v2855 = vpop.permute.xlu0 %2854
      %2856 = vrot.lane.b32.xlu0 %v2783, 72
      %v2857 = vpop.permute.xlu0 %2856
      %2858 = vrot.lane.b32.xlu0 %v2784, 72
      %v2859 = vpop.permute.xlu0 %2858
      %2860 = vrot.lane.b32.xlu0 %v2785, 72
      %v2861 = vpop.permute.xlu0 %2860
      %2862 = vrot.lane.b32.xlu0 %v2786, 72
      %v2863 = vpop.permute.xlu0 %2862
      %2864 = vrot.lane.b32.xlu0 %v2787, 72
      %v2865 = vpop.permute.xlu0 %2864
      %2866 = vrot.lane.b32.xlu0 %v2788, 72
      %v2867 = vpop.permute.xlu0 %2866
      %2868 = vrot.lane.b32.xlu0 %v2789, 72
      %v2869 = vpop.permute.xlu0 %2868
      %2870 = vrot.lane.b32.xlu0 %v2790, 72
      %v2871 = vpop.permute.xlu0 %2870
      %2872 = vrot.lane.b32.xlu0 %v2791, 72
      %v2873 = vpop.permute.xlu0 %2872
      %2874 = vrot.lane.b32.xlu0 %v2792, 72
      %v2875 = vpop.permute.xlu0 %2874
      %2876 = vrot.lane.b32.xlu0 %v2793, 72
      %v2877 = vpop.permute.xlu0 %2876
      %2878 = vrot.lane.b32.xlu0 %v2794, 72
      %v2879 = vpop.permute.xlu0 %2878
      %2880 = vrot.lane.b32.xlu0 %v2795, 72
      %v2881 = vpop.permute.xlu0 %2880
      %2882 = vrot.lane.b32.xlu0 %v2796, 72
      %v2883 = vpop.permute.xlu0 %2882
      %2884 = vrot.lane.b32.xlu0 %v2797, 72
      %v2885 = vpop.permute.xlu0 %2884
      %2886 = vrot.lane.b32.xlu0 %v2798, 72
      %v2887 = vpop.permute.xlu0 %2886
      %2888 = vrot.lane.b32.xlu0 %v2799, 72
      %v2889 = vpop.permute.xlu0 %2888
      %v2920 = vadd.f32 %v2740, %v2831
      %v2921 = vadd.f32 %v2741, %v2833
      %v2922 = vadd.f32 %v2742, %v2835
      %v2923 = vadd.f32 %v2743, %v2837
      %v2924 = vadd.f32 %v2744, %v2839
      %v2925 = vadd.f32 %v2745, %v2841
      %v2926 = vadd.f32 %v2746, %v2843
      %v2927 = vadd.f32 %v2747, %v2845
      %v2928 = vadd.f32 %v2748, %v2847
      %v2929 = vadd.f32 %v2749, %v2849
      %v2930 = vadd.f32 %v2750, %v2851
      %v2931 = vadd.f32 %v2751, %v2853
      %v2932 = vadd.f32 %v2752, %v2855
      %v2933 = vadd.f32 %v2753, %v2857
      %v2934 = vadd.f32 %v2754, %v2859
      %v2935 = vadd.f32 %v2755, %v2861
      %v2936 = vadd.f32 %v2756, %v2863
      %v2937 = vadd.f32 %v2757, %v2865
      %v2938 = vadd.f32 %v2758, %v2867
      %v2939 = vadd.f32 %v2759, %v2869
      %v2940 = vadd.f32 %v2760, %v2871
      %v2941 = vadd.f32 %v2761, %v2873
      %v2942 = vadd.f32 %v2762, %v2875
      %v2943 = vadd.f32 %v2763, %v2877
      %v2944 = vadd.f32 %v2764, %v2879
      %v2945 = vadd.f32 %v2765, %v2881
      %v2946 = vadd.f32 %v2766, %v2883
      %v2947 = vadd.f32 %v2767, %v2885
      %v2948 = vadd.f32 %v2768, %v2887
      %v2949 = vadd.f32 %v2769, %v2889
      %2950 = vst.msk [vmem:[%s280] sm:$0xff] %vm1352, %v2920
      %2951 = vst.msk [vmem:[%s280 + $0x8] sm:$0xff] %vm1352, %v2921
      %2952 = vst.msk [vmem:[%s280 + $0x10] sm:$0xff] %vm1352, %v2922
      %2953 = vst.msk [vmem:[%s280 + $0x18] sm:$0xff] %vm1352, %v2923
      %2954 = vst.msk [vmem:[%s280 + $0x20] sm:$0xff] %vm1352, %v2924
      %2955 = vst.msk [vmem:[%s280 + $0x28] sm:$0xff] %vm1352, %v2925
      %2956 = vst.msk [vmem:[%s280 + $0x30] sm:$0xff] %vm1352, %v2926
      %2957 = vst.msk [vmem:[%s280 + $0x38] sm:$0xff] %vm1352, %v2927
      %2958 = vst.msk [vmem:[%s280 + $0x40] sm:$0xff] %vm1352, %v2928
      %2959 = vst.msk [vmem:[%s280 + $0x48] sm:$0xff] %vm1352, %v2929
      %2960 = vst.msk [vmem:[%s280 + $0x50] sm:$0xff] %vm1352, %v2930
      %2961 = vst.msk [vmem:[%s280 + $0x58] sm:$0xff] %vm1352, %v2931
      %2962 = vst.msk [vmem:[%s280 + $0x60] sm:$0xff] %vm1352, %v2932
      %2963 = vst.msk [vmem:[%s280 + $0x68] sm:$0xff] %vm1352, %v2933
      %2964 = vst.msk [vmem:[%s280 + $0x70] sm:$0xff] %vm1352, %v2934
      %2965 = vst.msk [vmem:[%s280 + $0x78] sm:$0xff] %vm1352, %v2935
      %2966 = vst.msk [vmem:[%s280 + $0x80] sm:$0xff] %vm1352, %v2936
      %2967 = vst.msk [vmem:[%s280 + $0x88] sm:$0xff] %vm1352, %v2937
      %2968 = vst.msk [vmem:[%s280 + $0x90] sm:$0xff] %vm1352, %v2938
      %2969 = vst.msk [vmem:[%s280 + $0x98] sm:$0xff] %vm1352, %v2939
      %2970 = vst.msk [vmem:[%s280 + $0xa0] sm:$0xff] %vm1352, %v2940
      %2971 = vst.msk [vmem:[%s280 + $0xa8] sm:$0xff] %vm1352, %v2941
      %2972 = vst.msk [vmem:[%s280 + $0xb0] sm:$0xff] %vm1352, %v2942
      %2973 = vst.msk [vmem:[%s280 + $0xb8] sm:$0xff] %vm1352, %v2943
      %2974 = vst.msk [vmem:[%s280 + $0xc0] sm:$0xff] %vm1352, %v2944
      %2975 = vst.msk [vmem:[%s280 + $0xc8] sm:$0xff] %vm1352, %v2945
      %2976 = vst.msk [vmem:[%s280 + $0xd0] sm:$0xff] %vm1352, %v2946
      %2977 = vst.msk [vmem:[%s280 + $0xd8] sm:$0xff] %vm1352, %v2947
      %2978 = vst.msk [vmem:[%s280 + $0xe0] sm:$0xff] %vm1352, %v2948
      %2979 = vst.msk [vmem:[%s280 + $0xe8] sm:$0xff] %vm1352, %v2949
      %v2980 = vld [vmem:[%s280] sm:$0xff]
      %v2981 = vld [vmem:[%s280 + $0x8] sm:$0x7f]
      %v2982 = vld [vmem:[%s280 + $0x10] sm:$0xff]
      %v2983 = vld [vmem:[%s280 + $0x18] sm:$0x7f]
      %v2984 = vld [vmem:[%s280 + $0x20] sm:$0xff]
      %v2985 = vld [vmem:[%s280 + $0x28] sm:$0x7f]
      %v2986 = vld [vmem:[%s280 + $0x30] sm:$0xff]
      %v2987 = vld [vmem:[%s280 + $0x38] sm:$0x7f]
      %v2988 = vld [vmem:[%s280 + $0x40] sm:$0xff]
      %v2989 = vld [vmem:[%s280 + $0x48] sm:$0x7f]
      %v2990 = vld [vmem:[%s280 + $0x50] sm:$0xff]
      %v2991 = vld [vmem:[%s280 + $0x58] sm:$0x7f]
      %v2992 = vld [vmem:[%s280 + $0x60] sm:$0xff]
      %v2993 = vld [vmem:[%s280 + $0x68] sm:$0x7f]
      %v2994 = vld [vmem:[%s280 + $0x70] sm:$0xff]
      %v2995 = vld [vmem:[%s280 + $0x78] sm:$0x7f]
      %v2996 = vld [vmem:[%s280 + $0x80] sm:$0xff]
      %v2997 = vld [vmem:[%s280 + $0x88] sm:$0x7f]
      %v2998 = vld [vmem:[%s280 + $0x90] sm:$0xff]
      %v2999 = vld [vmem:[%s280 + $0x98] sm:$0x7f]
      %v3000 = vld [vmem:[%s280 + $0xa0] sm:$0xff]
      %v3001 = vld [vmem:[%s280 + $0xa8] sm:$0x7f]
      %v3002 = vld [vmem:[%s280 + $0xb0] sm:$0xff]
      %v3003 = vld [vmem:[%s280 + $0xb8] sm:$0x7f]
      %v3004 = vld [vmem:[%s280 + $0xc0] sm:$0xff]
      %v3005 = vld [vmem:[%s280 + $0xc8] sm:$0x7f]
      %v3006 = vld [vmem:[%s280 + $0xd0] sm:$0xff]
      %v3007 = vld [vmem:[%s280 + $0xd8] sm:$0x7f]
      %v3008 = vld [vmem:[%s280 + $0xe0] sm:$0xff]
      %v3009 = vld [vmem:[%s280 + $0xe8] sm:$0x7f]
      %v3010 = vld [vmem:[%s2529 + $0x1] sm:$0xff]
      %v3011 = vld [vmem:[%s2529 + $0x9] sm:$0x7f]
      %v3012 = vld [vmem:[%s2529 + $0x11] sm:$0xff]
      %v3013 = vld [vmem:[%s2529 + $0x19] sm:$0x7f]
      %v3014 = vld [vmem:[%s2529 + $0x21] sm:$0xff]
      %v3015 = vld [vmem:[%s2529 + $0x29] sm:$0x7f]
      %v3016 = vld [vmem:[%s2529 + $0x31] sm:$0xff]
      %v3017 = vld [vmem:[%s2529 + $0x39] sm:$0x7f]
      %v3018 = vld [vmem:[%s2529 + $0x41] sm:$0xff]
      %v3019 = vld [vmem:[%s2529 + $0x49] sm:$0x7f]
      %v3020 = vld [vmem:[%s2529 + $0x51] sm:$0xff]
      %v3021 = vld [vmem:[%s2529 + $0x59] sm:$0x7f]
      %v3022 = vld [vmem:[%s2529 + $0x61] sm:$0xff]
      %v3023 = vld [vmem:[%s2529 + $0x69] sm:$0x7f]
      %v3024 = vld [vmem:[%s2529 + $0x71] sm:$0xff]
      %v3025 = vld [vmem:[%s2529 + $0x79] sm:$0x7f]
      %v3026 = vld [vmem:[%s2529 + $0x81] sm:$0xff]
      %v3027 = vld [vmem:[%s2529 + $0x89] sm:$0x7f]
      %v3028 = vld [vmem:[%s2529 + $0x91] sm:$0xff]
      %v3029 = vld [vmem:[%s2529 + $0x99] sm:$0x7f]
      %v3030 = vld [vmem:[%s2529 + $0xa1] sm:$0xff]
      %v3031 = vld [vmem:[%s2529 + $0xa9] sm:$0x7f]
      %v3032 = vld [vmem:[%s2529 + $0xb1] sm:$0xff]
      %v3033 = vld [vmem:[%s2529 + $0xb9] sm:$0x7f]
      %v3034 = vld [vmem:[%s2529 + $0xc1] sm:$0xff]
      %v3035 = vld [vmem:[%s2529 + $0xc9] sm:$0x7f]
      %v3036 = vld [vmem:[%s2529 + $0xd1] sm:$0xff]
      %v3037 = vld [vmem:[%s2529 + $0xd9] sm:$0x7f]
      %v3038 = vld [vmem:[%s2529 + $0xe1] sm:$0xff]
      %v3039 = vld [vmem:[%s2529 + $0xe9] sm:$0x7f]
      %3070 = vrot.lane.b32.xlu0 %v3010, 64
      %v3071 = vpop.permute.xlu0 %3070
      %3072 = vrot.lane.b32.xlu0 %v3011, 64
      %v3073 = vpop.permute.xlu0 %3072
      %3074 = vrot.lane.b32.xlu0 %v3012, 64
      %v3075 = vpop.permute.xlu0 %3074
      %3076 = vrot.lane.b32.xlu0 %v3013, 64
      %v3077 = vpop.permute.xlu0 %3076
      %3078 = vrot.lane.b32.xlu0 %v3014, 64
      %v3079 = vpop.permute.xlu0 %3078
      %3080 = vrot.lane.b32.xlu0 %v3015, 64
      %v3081 = vpop.permute.xlu0 %3080
      %3082 = vrot.lane.b32.xlu0 %v3016, 64
      %v3083 = vpop.permute.xlu0 %3082
      %3084 = vrot.lane.b32.xlu0 %v3017, 64
      %v3085 = vpop.permute.xlu0 %3084
      %3086 = vrot.lane.b32.xlu0 %v3018, 64
      %v3087 = vpop.permute.xlu0 %3086
      %3088 = vrot.lane.b32.xlu0 %v3019, 64
      %v3089 = vpop.permute.xlu0 %3088
      %3090 = vrot.lane.b32.xlu0 %v3020, 64
      %v3091 = vpop.permute.xlu0 %3090
      %3092 = vrot.lane.b32.xlu0 %v3021, 64
      %v3093 = vpop.permute.xlu0 %3092
      %3094 = vrot.lane.b32.xlu0 %v3022, 64
      %v3095 = vpop.permute.xlu0 %3094
      %3096 = vrot.lane.b32.xlu0 %v3023, 64
      %v3097 = vpop.permute.xlu0 %3096
      %3098 = vrot.lane.b32.xlu0 %v3024, 64
      %v3099 = vpop.permute.xlu0 %3098
      %3100 = vrot.lane.b32.xlu0 %v3025, 64
      %v3101 = vpop.permute.xlu0 %3100
      %3102 = vrot.lane.b32.xlu0 %v3026, 64
      %v3103 = vpop.permute.xlu0 %3102
      %3104 = vrot.lane.b32.xlu0 %v3027, 64
      %v3105 = vpop.permute.xlu0 %3104
      %3106 = vrot.lane.b32.xlu0 %v3028, 64
      %v3107 = vpop.permute.xlu0 %3106
      %3108 = vrot.lane.b32.xlu0 %v3029, 64
      %v3109 = vpop.permute.xlu0 %3108
      %3110 = vrot.lane.b32.xlu0 %v3030, 64
      %v3111 = vpop.permute.xlu0 %3110
      %3112 = vrot.lane.b32.xlu0 %v3031, 64
      %v3113 = vpop.permute.xlu0 %3112
      %3114 = vrot.lane.b32.xlu0 %v3032, 64
      %v3115 = vpop.permute.xlu0 %3114
      %3116 = vrot.lane.b32.xlu0 %v3033, 64
      %v3117 = vpop.permute.xlu0 %3116
      %3118 = vrot.lane.b32.xlu0 %v3034, 64
      %v3119 = vpop.permute.xlu0 %3118
      %3120 = vrot.lane.b32.xlu0 %v3035, 64
      %v3121 = vpop.permute.xlu0 %3120
      %3122 = vrot.lane.b32.xlu0 %v3036, 64
      %v3123 = vpop.permute.xlu0 %3122
      %3124 = vrot.lane.b32.xlu0 %v3037, 64
      %v3125 = vpop.permute.xlu0 %3124
      %3126 = vrot.lane.b32.xlu0 %v3038, 64
      %v3127 = vpop.permute.xlu0 %3126
      %3128 = vrot.lane.b32.xlu0 %v3039, 64
      %v3129 = vpop.permute.xlu0 %3128
      %v3160 = vadd.f32 %v2980, %v3071
      %v3161 = vadd.f32 %v2981, %v3073
      %v3162 = vadd.f32 %v2982, %v3075
      %v3163 = vadd.f32 %v2983, %v3077
      %v3164 = vadd.f32 %v2984, %v3079
      %v3165 = vadd.f32 %v2985, %v3081
      %v3166 = vadd.f32 %v2986, %v3083
      %v3167 = vadd.f32 %v2987, %v3085
      %v3168 = vadd.f32 %v2988, %v3087
      %v3169 = vadd.f32 %v2989, %v3089
      %v3170 = vadd.f32 %v2990, %v3091
      %v3171 = vadd.f32 %v2991, %v3093
      %v3172 = vadd.f32 %v2992, %v3095
      %v3173 = vadd.f32 %v2993, %v3097
      %v3174 = vadd.f32 %v2994, %v3099
      %v3175 = vadd.f32 %v2995, %v3101
      %v3176 = vadd.f32 %v2996, %v3103
      %v3177 = vadd.f32 %v2997, %v3105
      %v3178 = vadd.f32 %v2998, %v3107
      %v3179 = vadd.f32 %v2999, %v3109
      %v3180 = vadd.f32 %v3000, %v3111
      %v3181 = vadd.f32 %v3001, %v3113
      %v3182 = vadd.f32 %v3002, %v3115
      %v3183 = vadd.f32 %v3003, %v3117
      %v3184 = vadd.f32 %v3004, %v3119
      %v3185 = vadd.f32 %v3005, %v3121
      %v3186 = vadd.f32 %v3006, %v3123
      %v3187 = vadd.f32 %v3007, %v3125
      %v3188 = vadd.f32 %v3008, %v3127
      %v3189 = vadd.f32 %v3009, %v3129
      %3190 = vst.msk [vmem:[%s280] sm:$0xff] %vm1352, %v3160
      %3191 = vst.msk [vmem:[%s280 + $0x8] sm:$0x7f] %vm1477, %v3161
      %3192 = vst.msk [vmem:[%s280 + $0x10] sm:$0xff] %vm1352, %v3162
      %3193 = vst.msk [vmem:[%s280 + $0x18] sm:$0x7f] %vm1477, %v3163
      %3194 = vst.msk [vmem:[%s280 + $0x20] sm:$0xff] %vm1352, %v3164
      %3195 = vst.msk [vmem:[%s280 + $0x28] sm:$0x7f] %vm1477, %v3165
      %3196 = vst.msk [vmem:[%s280 + $0x30] sm:$0xff] %vm1352, %v3166
      %3197 = vst.msk [vmem:[%s280 + $0x38] sm:$0x7f] %vm1477, %v3167
      %3198 = vst.msk [vmem:[%s280 + $0x40] sm:$0xff] %vm1352, %v3168
      %3199 = vst.msk [vmem:[%s280 + $0x48] sm:$0x7f] %vm1477, %v3169
      %3200 = vst.msk [vmem:[%s280 + $0x50] sm:$0xff] %vm1352, %v3170
      %3201 = vst.msk [vmem:[%s280 + $0x58] sm:$0x7f] %vm1477, %v3171
      %3202 = vst.msk [vmem:[%s280 + $0x60] sm:$0xff] %vm1352, %v3172
      %3203 = vst.msk [vmem:[%s280 + $0x68] sm:$0x7f] %vm1477, %v3173
      %3204 = vst.msk [vmem:[%s280 + $0x70] sm:$0xff] %vm1352, %v3174
      %3205 = vst.msk [vmem:[%s280 + $0x78] sm:$0x7f] %vm1477, %v3175
      %3206 = vst.msk [vmem:[%s280 + $0x80] sm:$0xff] %vm1352, %v3176
      %3207 = vst.msk [vmem:[%s280 + $0x88] sm:$0x7f] %vm1477, %v3177
      %3208 = vst.msk [vmem:[%s280 + $0x90] sm:$0xff] %vm1352, %v3178
      %3209 = vst.msk [vmem:[%s280 + $0x98] sm:$0x7f] %vm1477, %v3179
      %3210 = vst.msk [vmem:[%s280 + $0xa0] sm:$0xff] %vm1352, %v3180
      %3211 = vst.msk [vmem:[%s280 + $0xa8] sm:$0x7f] %vm1477, %v3181
      %3212 = vst.msk [vmem:[%s280 + $0xb0] sm:$0xff] %vm1352, %v3182
      %3213 = vst.msk [vmem:[%s280 + $0xb8] sm:$0x7f] %vm1477, %v3183
      %3214 = vst.msk [vmem:[%s280 + $0xc0] sm:$0xff] %vm1352, %v3184
      %3215 = vst.msk [vmem:[%s280 + $0xc8] sm:$0x7f] %vm1477, %v3185
      %3216 = vst.msk [vmem:[%s280 + $0xd0] sm:$0xff] %vm1352, %v3186
      %3217 = vst.msk [vmem:[%s280 + $0xd8] sm:$0x7f] %vm1477, %v3187
      %3218 = vst.msk [vmem:[%s280 + $0xe0] sm:$0xff] %vm1352, %v3188
      %3219 = vst.msk [vmem:[%s280 + $0xe8] sm:$0x7f] %vm1477, %v3189
      %p3220 = scmp.lt.s32.totalorder %s18, 1
      %s3221 = scalar_select %p3220, %s18, 1
      %s3222 = smul.addr %s3221, 32
      %s3223 = smul.addr %s3222, 8
      %s3224 = scalar_lea.vmem %s7, %s3223
      // Predicated region
      $region49: #{tpu_custom_call.1} parent=47 // pred_check
        %p3225 = pneg %p188
      $region50: #{tpu_custom_call.1} parent=47 // pred_check_branch
        %3227 = sbr.rel (%p3225) target = $region52
      $region51: #{tpu_custom_call.1} parent=47 // pred_region
        _
      $region52: #{tpu_custom_call.1} parent=47 // pred_fallthru
        _
    $region48: #{tpu_custom_call.1} parent=5 // pred_fallthru
      _
    %p3228 = scmp.le.s32.totalorder 2, %s13
    // Predicated region
    $region53: #{tpu_custom_call.1} parent=5 // pred_check
      %p3229 = pneg %p3228
    $region54: #{tpu_custom_call.1} parent=5 // pred_check_branch
      %3231 = sbr.rel (%p3229) target = $region56
    $region55: #{tpu_custom_call.1} parent=5 // pred_region
      %s3232 = ssub.s32 %s13, 2
      // Predicated region
      $region57: #{tpu_custom_call.1} parent=55 // pred_check
        %p3233 = pneg %p194
      $region58: #{tpu_custom_call.1} parent=55 // pred_check_branch
        %3235 = sbr.rel (%p3233) target = $region60
      $region59: #{tpu_custom_call.1} parent=55 // pred_region
        %p3236 = scmp.lt.s32.totalorder %s19, 1
        %s3237 = scalar_select %p3236, %s19, 1
        %s3238 = smul.addr %s3237, 32
        %s3239 = smul.addr %s3238, 8
        %s3240 = scalar_lea.vmem %s7, %s3239
      $region60: #{tpu_custom_call.1} parent=55 // pred_fallthru
        _
    $region56: #{tpu_custom_call.1} parent=5 // pred_fallthru
      _
  $region6: #{tpu_custom_call.1} parent=0 // loop_footer
    %s17 = sadd.s32 1, %s13
  $region7: #{tpu_custom_call.1} parent=0 // loop_footer_branch
    %12 = sbr.rel target = $region3
  $region8: #{tpu_custom_call.1} parent=0 // loop_exit
    _

</llo_original>
